<compile_context>
chip_gen: v6e
topology: v6e:2x2x1
jax: 0.10.0
libtpu: 0.0.40
codegen_flags: <defaults>
</compile_context>

<pallas_src>
import functools

import jax
import jax.numpy as jnp
from jax import lax
from jax.experimental import pallas as pl
from jax.experimental.pallas import tpu as pltpu


def _round_up(n, m):
    return ((n + m - 1) // m) * m


def _pick_tile(dim, target, align):
    """Largest tile <= target that divides dim and is `align`-aligned, else dim."""
    if dim <= target:
        return dim
    t = (target // align) * align
    while t >= align:
        if dim % t == 0:
            return t
        t -= align
    return dim


# -----------------------------------------------------------------------------
# Kernel 1: tiled dense linear  y = x @ W + b   (qkv and proj layers)
# -----------------------------------------------------------------------------
def _linear_kernel(x_ref, w_ref, b_ref, o_ref, acc_ref):
    @pl.when(pl.program_id(2) == 0)
    def _():
        acc_ref[...] = jnp.zeros_like(acc_ref)

    acc_ref[...] += jnp.dot(x_ref[...], w_ref[...],
                            preferred_element_type=jnp.float32)

    @pl.when(pl.program_id(2) == pl.num_programs(2) - 1)
    def _():
        o_ref[...] = (acc_ref[...] + b_ref[...]).astype(o_ref.dtype)


def pallas_linear(x2d, w, b, *, out_dtype=None,
                  tm_target=256, tn_target=512, tk_target=512):
    """x2d: (M, Cin), w: (Cin, Cout), b: (Cout,) -> (M, Cout) in out_dtype."""
    M, Cin = x2d.shape
    Cout = w.shape[1]
    out_dtype = out_dtype if out_dtype is not None else x2d.dtype

    # bf16 MXU operands, f32 accumulation / bias.
    xb = x2d.astype(jnp.bfloat16)
    wb = w.astype(jnp.bfloat16)
    b2d = b.astype(jnp.float32).reshape(1, Cout)

    # M axis: pad to a tile multiple instead of degrading to tiny tiles.
    # (bf16 sublane packing -> 16-row alignment.)
    tm = min(tm_target, _round_up(M, 16))
    Mp = _round_up(M, tm)
    if Mp != M:
        xb = jnp.pad(xb, ((0, Mp - M), (0, 0)))

    tn = _pick_tile(Cout, tn_target, 128)   # lane axis of w / b / out
    tk = _pick_tile(Cin, tk_target, 128)    # reduction axis

    grid = (Mp // tm, Cout // tn, Cin // tk)
    cost = pl.CostEstimate(
        flops=2 * Mp * Cin * Cout,
        transcendentals=0,
        # include K-loop re-reads of x and w across the (i, j) grid
        bytes_accessed=2 * (Mp * Cin * (Cout // tn) + Cin * Cout * (Mp // tm))
        + jnp.dtype(out_dtype).itemsize * Mp * Cout + 4 * Cout)

    y = pl.pallas_call(
        _linear_kernel,
        out_shape=jax.ShapeDtypeStruct((Mp, Cout), out_dtype),
        grid_spec=pltpu.PrefetchScalarGridSpec(
            num_scalar_prefetch=0,
            grid=grid,
            in_specs=[
                pl.BlockSpec((tm, tk), lambda i, j, k: (i, k)),
                pl.BlockSpec((tk, tn), lambda i, j, k: (k, j)),
                pl.BlockSpec((1, tn), lambda i, j, k: (0, j)),
            ],
            out_specs=pl.BlockSpec((tm, tn), lambda i, j, k: (i, j)),
            scratch_shapes=[pltpu.VMEM((tm, tn), jnp.float32)],
        ),
        compiler_params=pltpu.CompilerParams(
            dimension_semantics=("parallel", "parallel", "arbitrary")),
        cost_estimate=cost,
    )(xb, wb, b2d)
    return y if Mp == M else y[:M]


# -----------------------------------------------------------------------------
# Kernel 2: multi-head attention.  Grid = (batch, q-tile).  K/V stay resident
# per batch element; each head's PV result lands in a (tq, C) f32 VMEM scratch,
# then a single lane-dense store writes the merged heads to HBM.
# -----------------------------------------------------------------------------
def _attn_kernel(q_ref, k_ref, v_ref, o_ref, acc_ref, *, num_heads, n_real):
    c = q_ref.shape[-1]
    hd = c // num_heads
    n_keys = k_ref.shape[1]

    q_all = q_ref[0]        # (tq, C)  bf16  (scale already folded into weights)
    k_all = k_ref[0]        # (Np, C)  bf16
    v_all = v_ref[0]        # (Np, C)  bf16

    need_mask = n_real < n_keys
    if need_mask:
        key_mask = lax.broadcasted_iota(jnp.int32, (1, n_keys), 1) < n_real
        neg_big = jnp.float32(-1e30)

    for h in range(num_heads):                       # static unroll over heads
        lo = h * hd
        q = q_all[:, lo:lo + hd]
        k = k_all[:, lo:lo + hd]
        v = v_all[:, lo:lo + hd]

        # Contract over hd directly -> no k.T relayout of the K tile.
        s = lax.dot_general(q, k, (((1,), (1,)), ((), ())),
                            preferred_element_type=jnp.float32)      # (tq, Np)
        if need_mask:
            s = jnp.where(key_mask, s, neg_big)

        m = jnp.max(s, axis=-1, keepdims=True)
        p = jnp.exp(s - m)                                           # f32
        l = jnp.sum(p, axis=-1, keepdims=True)

        pv = jnp.dot(p.astype(jnp.bfloat16), v,
                     preferred_element_type=jnp.float32)             # (tq, hd)
        # normalize after PV (tq*hd mults instead of tq*Np); EUP reciprocal
        acc_ref[:, lo:lo + hd] = pv * pl.reciprocal(l, approx=True)

    # single full-width, lane-dense store of the merged heads
    o_ref[0] = acc_ref[...].astype(o_ref.dtype)


def pallas_attention(q, k, v, num_heads, n_real):
    """q/k/v: (B, Np, C) bf16 (token axis already padded) -> (B, Np, C) bf16."""
    B, Np, C = q.shape
    hd = C // num_heads

    if Np % 128 == 0:
        tq = 256 if Np % 256 == 0 else 128
    else:
        tq = Np                       # defensive: wrapper always pads to 128k
    grid = (B, Np // tq)

    kern = functools.partial(_attn_kernel, num_heads=num_heads, n_real=n_real)
    cost = pl.CostEstimate(
        flops=4 * B * num_heads * Np * Np * hd,
        transcendentals=B * num_heads * Np * Np,
        bytes_accessed=2 * (3 * B * Np * C + B * Np * C))

    # TODO(synk): for very long sequences (Np >~ 4096) add a KV grid axis with
    # online-softmax (m, l) scratch instead of holding full (tq, Np) scores.
    return pl.pallas_call(
        kern,
        out_shape=jax.ShapeDtypeStruct((B, Np, C), jnp.bfloat16),
        grid_spec=pltpu.PrefetchScalarGridSpec(
            num_scalar_prefetch=0,
            grid=grid,
            in_specs=[
                pl.BlockSpec((1, tq, C), lambda b, i: (b, i, 0)),
                pl.BlockSpec((1, Np, C), lambda b, i: (b, 0, 0)),
                pl.BlockSpec((1, Np, C), lambda b, i: (b, 0, 0)),
            ],
            out_specs=pl.BlockSpec((1, tq, C), lambda b, i: (b, i, 0)),
            scratch_shapes=[pltpu.VMEM((tq, C), jnp.float32)],
        ),
        compiler_params=pltpu.CompilerParams(
            dimension_semantics=("parallel", "parallel"),
            vmem_limit_bytes=64 * 1024 * 1024),
        cost_estimate=cost,
    )(q, k, v)


# -----------------------------------------------------------------------------
# Module wrapper — pad tokens once, run everything at the padded length,
# slice the pad off at the end.  No XLA transposes between pallas_calls.
# -----------------------------------------------------------------------------
def attention_forward(x, params, num_heads):
    B, N, C = x.shape
    hd = C // num_heads
    scale = float(hd) ** -0.5

    # Fold the softmax scale into the q columns of w_qkv / b_qkv (trace time).
    col_scale = jnp.concatenate([jnp.full((C,), scale, jnp.float32),
                                 jnp.ones((2 * C,), jnp.float32)])
    w_qkv = params["w_qkv"] * col_scale[None, :]
    b_qkv = params["b_qkv"] * col_scale

    # Pad the token axis to a multiple of 128: gives the linears a full-height
    # MXU tile (M = B*Np) and attention clean (8,128) tiles; padded keys are
    # masked in-kernel, padded rows sliced off below.
    Np = _round_up(N, 128)
    xp = jnp.pad(x, ((0, 0), (0, Np - N), (0, 0))) if Np != N else x

    # qkv linear over flattened tokens, bf16 output slab.
    qkv = pallas_linear(xp.reshape(B * Np, C), w_qkv, b_qkv,
                        out_dtype=jnp.bfloat16)
    qkv = qkv.reshape(B, Np, 3 * C)
    q = qkv[..., :C]
    k = qkv[..., C:2 * C]
    v = qkv[..., 2 * C:]

    # fused multi-head attention; attn_drop = 0 -> identity
    o = pallas_attention(q, k, v, num_heads, n_real=N)      # (B, Np, C) bf16

    # proj linear; proj_drop = 0 -> identity
    y = pallas_linear(o.reshape(B * Np, C), params["w_proj"], params["b_proj"],
                      out_dtype=x.dtype)
    y = y.reshape(B, Np, C)
    return y[:, :N, :] if Np != N else y


def init_params(key, channels):
    k1, k2, k3, k4 = jax.random.split(key, 4)
    s = 0.02
    return {
        # stored as (Cin, Cout) for y = x @ W + b (PyTorch stores (Cout, Cin))
        "w_qkv": s * jax.random.normal(k1, (channels, 3 * channels), jnp.float32),
        "b_qkv": s * jax.random.normal(k2, (3 * channels,), jnp.float32),
        "w_proj": s * jax.random.normal(k3, (channels, channels), jnp.float32),
        "b_proj": s * jax.random.normal(k4, (channels,), jnp.float32),
    }


def reference_forward(x, params, num_heads):
    B, N, C = x.shape
    hd = C // num_heads
    scale = float(hd) ** -0.5
    qkv = x.reshape(B * N, C) @ params["w_qkv"] + params["b_qkv"]
    qkv = qkv.reshape(B, N, 3, num_heads, hd).transpose(2, 0, 3, 1, 4)
    q, k, v = qkv[0] * scale, qkv[1], qkv[2]
    attn = jnp.einsum("bhnd,bhmd->bhnm", q, k)
    attn = jax.nn.softmax(attn, axis=-1)
    o = jnp.einsum("bhnm,bhmd->bhnd", attn, v).transpose(0, 2, 1, 3).reshape(B, N, C)
    return (o.reshape(B * N, C) @ params["w_proj"] + params["b_proj"]).reshape(B, N, C)


if __name__ == "__main__":
    # Small shapes consistent with the module: Attention(channels=32, num_heads=4)
    # on x: (B=2, N=16, C=32)  -> head_dim = 8.
    B, N, C, H = 2, 16, 32, 4

    key = jax.random.PRNGKey(0)
    kx, kp = jax.random.split(key)
    x = jax.random.normal(kx, (B, N, C), jnp.float32)
    params = init_params(kp, C)

    fwd = jax.jit(functools.partial(attention_forward, num_heads=H))
    out = jax.block_until_ready(fwd(x, params))

    ref = reference_forward(x, params, num_heads=H)
    assert out.shape == (B, N, C)
    # bf16 MXU operands + EUP approximate reciprocal -> tolerance looser than f32.
    assert jnp.allclose(out, ref, atol=1e-2, rtol=5e-2), "mismatch vs. JAX reference"

    print("KERNEL_OK")
</pallas_src>

<mosaic_0001>
module attributes {stable_mosaic.version = 11 : i64} {
  func.func @_linear_kernel(%arg0: i32, %arg1: i32, %arg2: i32, %arg3: memref<256x32xbf16, #tpu.memory_space<vmem>>, %arg4: memref<32x32xbf16, #tpu.memory_space<vmem>>, %arg5: memref<1x32xf32, #tpu.memory_space<vmem>>, %arg6: memref<256x32xf32, #tpu.memory_space<vmem>>, %arg7: memref<256x32xf32, #tpu.memory_space<vmem>>) attributes {dimension_semantics = [#tpu.dimension_semantics<parallel>, #tpu.dimension_semantics<parallel>, #tpu.dimension_semantics<arbitrary>], iteration_bounds = array<i64: 1, 1, 1>, scalar_prefetch = 0 : i64, scratch_operands = 1 : i64, tpu.core_type = #tpu.core_type<tc>, window_params = [{transform_indices = @transform_0, window_bounds = array<i64: 256, 32>}, {transform_indices = @transform_1, window_bounds = array<i64: 32, 32>}, {transform_indices = @transform_2, window_bounds = array<i64: 1, 32>}, {transform_indices = @transform_3, window_bounds = array<i64: 256, 32>}]} {
    %c0_i32 = arith.constant 0 : i32
    %0 = arith.cmpi eq, %arg2, %c0_i32 : i32
    %1 = arith.extui %0 : i1 to i32
    %c0_i32_0 = arith.constant 0 : i32
    %2 = arith.cmpi ne, %1, %c0_i32_0 : i32
    scf.if %2 {
      %cst_10 = arith.constant 0.000000e+00 : f32
      %12 = vector.broadcast %cst_10 : f32 to vector<256x32xf32>
      %c0_11 = arith.constant 0 : index
      %c0_12 = arith.constant 0 : index
      %13 = vector.load %arg7[%c0_11, %c0_12] : memref<256x32xf32, #tpu.memory_space<vmem>>, vector<256x32xf32>
      tpu.vector_store %arg7[%c0_11, %c0_12], %12 {strides = array<i32>} : memref<256x32xf32, #tpu.memory_space<vmem>>, vector<256x32xf32>,
    } else {
    }
    %c0 = arith.constant 0 : index
    %c0_1 = arith.constant 0 : index
    %3 = vector.load %arg7[%c0, %c0_1] : memref<256x32xf32, #tpu.memory_space<vmem>>, vector<256x32xf32>
    %c0_2 = arith.constant 0 : index
    %c0_3 = arith.constant 0 : index
    %4 = vector.load %arg3[%c0_2, %c0_3] : memref<256x32xbf16, #tpu.memory_space<vmem>>, vector<256x32xbf16>
    %c0_4 = arith.constant 0 : index
    %c0_5 = arith.constant 0 : index
    %5 = vector.load %arg4[%c0_4, %c0_5] : memref<32x32xbf16, #tpu.memory_space<vmem>>, vector<32x32xbf16>
    %cst = arith.constant dense<0.000000e+00> : vector<256x32xf32>
    %6 = tpu.matmul %4, %5, %cst {dimension_numbers = #tpu.dot_dimension_numbers<[1], [0], [0], [1], [0, 0, 1, 1], [], []>} : vector<256x32xbf16>, vector<32x32xbf16>, vector<256x32xf32> -> vector<256x32xf32>
    %7 = arith.addf %3, %6 : vector<256x32xf32>
    %c0_6 = arith.constant 0 : index
    %c0_7 = arith.constant 0 : index
    %8 = vector.load %arg7[%c0_6, %c0_7] : memref<256x32xf32, #tpu.memory_space<vmem>>, vector<256x32xf32>
    tpu.vector_store %arg7[%c0_6, %c0_7], %7 {strides = array<i32>} : memref<256x32xf32, #tpu.memory_space<vmem>>, vector<256x32xf32>,
    %c0_i32_8 = arith.constant 0 : i32
    %9 = arith.cmpi eq, %arg2, %c0_i32_8 : i32
    %10 = arith.extui %9 : i1 to i32
    %c0_i32_9 = arith.constant 0 : i32
    %11 = arith.cmpi ne, %10, %c0_i32_9 : i32
    scf.if %11 {
      %c0_10 = arith.constant 0 : index
      %c0_11 = arith.constant 0 : index
      %12 = vector.load %arg7[%c0_10, %c0_11] : memref<256x32xf32, #tpu.memory_space<vmem>>, vector<256x32xf32>
      %c0_12 = arith.constant 0 : index
      %c0_13 = arith.constant 0 : index
      %13 = vector.load %arg5[%c0_12, %c0_13] : memref<1x32xf32, #tpu.memory_space<vmem>>, vector<1x32xf32>
      %14 = vector.broadcast %13 : vector<1x32xf32> to vector<256x32xf32>
      %15 = arith.addf %12, %14 : vector<256x32xf32>
      %c0_14 = arith.constant 0 : index
      %c0_15 = arith.constant 0 : index
      %16 = vector.load %arg6[%c0_14, %c0_15] : memref<256x32xf32, #tpu.memory_space<vmem>>, vector<256x32xf32>
      tpu.vector_store %arg6[%c0_14, %c0_15], %15 {strides = array<i32>} : memref<256x32xf32, #tpu.memory_space<vmem>>, vector<256x32xf32>,
    } else {
    }
    return
  }
  func.func @transform_0(%arg0: i32, %arg1: i32, %arg2: i32) -> (i32, i32) {
    %c0_i32 = arith.constant 0 : i32
    return %arg0, %arg2 : i32, i32
  }
  func.func @transform_1(%arg0: i32, %arg1: i32, %arg2: i32) -> (i32, i32) {
    %c0_i32 = arith.constant 0 : i32
    return %arg2, %arg1 : i32, i32
  }
  func.func @transform_2(%arg0: i32, %arg1: i32, %arg2: i32) -> (i32, i32) {
    %c0_i32 = arith.constant 0 : i32
    %c0_i32_0 = arith.constant 0 : i32
    return %c0_i32, %arg1 : i32, i32
  }
  func.func @transform_3(%arg0: i32, %arg1: i32, %arg2: i32) -> (i32, i32) {
    %c0_i32 = arith.constant 0 : i32
    return %arg0, %arg1 : i32, i32
  }
}

module attributes {stable_mosaic.version = 11 : i64} {
  func.func @_attn_kernel(%arg0: i32, %arg1: i32, %arg2: memref<1x128x32xbf16, #tpu.memory_space<vmem>>, %arg3: memref<1x128x32xbf16, #tpu.memory_space<vmem>>, %arg4: memref<1x128x32xbf16, #tpu.memory_space<vmem>>, %arg5: memref<1x128x32xbf16, #tpu.memory_space<vmem>>, %arg6: memref<128x32xf32, #tpu.memory_space<vmem>>) attributes {dimension_semantics = [#tpu.dimension_semantics<parallel>, #tpu.dimension_semantics<parallel>], iteration_bounds = array<i64: 2, 1>, scalar_prefetch = 0 : i64, scratch_operands = 1 : i64, tpu.core_type = #tpu.core_type<tc>, window_params = [{transform_indices = @transform_0, window_bounds = array<i64: 1, 128, 32>}, {transform_indices = @transform_1, window_bounds = array<i64: 1, 128, 32>}, {transform_indices = @transform_2, window_bounds = array<i64: 1, 128, 32>}, {transform_indices = @transform_3, window_bounds = array<i64: 1, 128, 32>}]} {
    %c0 = arith.constant 0 : index
    %c0_0 = arith.constant 0 : index
    %c0_1 = arith.constant 0 : index
    %0 = vector.load %arg2[%c0, %c0_0, %c0_1] : memref<1x128x32xbf16, #tpu.memory_space<vmem>>, vector<1x128x32xbf16>
    %1 = vector.shape_cast %0 : vector<1x128x32xbf16> to vector<128x32xbf16>
    %c0_2 = arith.constant 0 : index
    %c0_3 = arith.constant 0 : index
    %c0_4 = arith.constant 0 : index
    %2 = vector.load %arg3[%c0_2, %c0_3, %c0_4] : memref<1x128x32xbf16, #tpu.memory_space<vmem>>, vector<1x128x32xbf16>
    %3 = vector.shape_cast %2 : vector<1x128x32xbf16> to vector<128x32xbf16>
    %c0_5 = arith.constant 0 : index
    %c0_6 = arith.constant 0 : index
    %c0_7 = arith.constant 0 : index
    %4 = vector.load %arg4[%c0_5, %c0_6, %c0_7] : memref<1x128x32xbf16, #tpu.memory_space<vmem>>, vector<1x128x32xbf16>
    %5 = vector.shape_cast %4 : vector<1x128x32xbf16> to vector<128x32xbf16>
    %6 = tpu.iota {dimensions = array<i32: 1>} : vector<1x128xi32>
    %c16_i32 = arith.constant 16 : i32
    %7 = vector.broadcast %c16_i32 : i32 to vector<1x128xi32>
    %8 = arith.cmpi slt, %6, %7 : vector<1x128xi32>
    %9 = vector.extract_strided_slice %1 {offsets = [0, 0], sizes = [128, 8], strides = [1, 1]} : vector<128x32xbf16> to vector<128x8xbf16>
    %10 = vector.extract_strided_slice %3 {offsets = [0, 0], sizes = [128, 8], strides = [1, 1]} : vector<128x32xbf16> to vector<128x8xbf16>
    %11 = vector.extract_strided_slice %5 {offsets = [0, 0], sizes = [128, 8], strides = [1, 1]} : vector<128x32xbf16> to vector<128x8xbf16>
    %cst = arith.constant dense<0.000000e+00> : vector<128x128xf32>
    %12 = tpu.matmul %9, %10, %cst {dimension_numbers = #tpu.dot_dimension_numbers<[1], [1], [0], [0], [0, 0, 1, 0], [], []>} : vector<128x8xbf16>, vector<128x8xbf16>, vector<128x128xf32> -> vector<128x128xf32>
    %cst_8 = arith.constant -1.000000e+30 : f32
    %13 = vector.shape_cast %8 : vector<1x128xi1> to vector<1x128xi1>
    %14 = vector.broadcast %13 : vector<1x128xi1> to vector<128x128xi1>
    %15 = vector.broadcast %cst_8 : f32 to vector<128x128xf32>
    %16 = arith.select %14, %12, %15 : vector<128x128xi1>, vector<128x128xf32>
    %cst_9 = arith.constant dense<0xFF800000> : vector<128xf32>
    %17 = vector.multi_reduction <maximumf>, %16, %cst_9 [1] : vector<128x128xf32> to vector<128xf32>
    %18 = vector.shape_cast %17 : vector<128xf32> to vector<128x1xf32>
    %19 = vector.broadcast %18 : vector<128x1xf32> to vector<128x128xf32>
    %20 = arith.subf %16, %19 : vector<128x128xf32>
    %21 = math.exp %20 : vector<128x128xf32>
    %cst_10 = arith.constant dense<0.000000e+00> : vector<128xf32>
    %22 = vector.multi_reduction <add>, %21, %cst_10 [1] : vector<128x128xf32> to vector<128xf32>
    %23 = vector.shape_cast %22 : vector<128xf32> to vector<128x1xf32>
    %24 = arith.truncf %21 : vector<128x128xf32> to vector<128x128xbf16>
    %cst_11 = arith.constant dense<0.000000e+00> : vector<128x8xf32>
    %25 = tpu.matmul %24, %11, %cst_11 {dimension_numbers = #tpu.dot_dimension_numbers<[1], [0], [0], [1], [0, 0, 1, 1], [], []>} : vector<128x128xbf16>, vector<128x8xbf16>, vector<128x8xf32> -> vector<128x8xf32>
    %26 = tpu.reciprocal %23 {approx = true} : vector<128x1xf32> -> vector<128x1xf32>
    %27 = vector.broadcast %26 : vector<128x1xf32> to vector<128x8xf32>
    %28 = arith.mulf %25, %27 : vector<128x8xf32>
    %c0_12 = arith.constant 0 : index
    %c0_13 = arith.constant 0 : index
    %29 = vector.load %arg6[%c0_12, %c0_13] : memref<128x32xf32, #tpu.memory_space<vmem>>, vector<128x8xf32>
    tpu.vector_store %arg6[%c0_12, %c0_13], %28 {strides = array<i32>} : memref<128x32xf32, #tpu.memory_space<vmem>>, vector<128x8xf32>,
    %30 = vector.extract_strided_slice %1 {offsets = [0, 8], sizes = [128, 8], strides = [1, 1]} : vector<128x32xbf16> to vector<128x8xbf16>
    %31 = vector.extract_strided_slice %3 {offsets = [0, 8], sizes = [128, 8], strides = [1, 1]} : vector<128x32xbf16> to vector<128x8xbf16>
    %32 = vector.extract_strided_slice %5 {offsets = [0, 8], sizes = [128, 8], strides = [1, 1]} : vector<128x32xbf16> to vector<128x8xbf16>
    %cst_14 = arith.constant dense<0.000000e+00> : vector<128x128xf32>
    %33 = tpu.matmul %30, %31, %cst_14 {dimension_numbers = #tpu.dot_dimension_numbers<[1], [1], [0], [0], [0, 0, 1, 0], [], []>} : vector<128x8xbf16>, vector<128x8xbf16>, vector<128x128xf32> -> vector<128x128xf32>
    %cst_15 = arith.constant -1.000000e+30 : f32
    %34 = vector.shape_cast %8 : vector<1x128xi1> to vector<1x128xi1>
    %35 = vector.broadcast %34 : vector<1x128xi1> to vector<128x128xi1>
    %36 = vector.broadcast %cst_15 : f32 to vector<128x128xf32>
    %37 = arith.select %35, %33, %36 : vector<128x128xi1>, vector<128x128xf32>
    %cst_16 = arith.constant dense<0xFF800000> : vector<128xf32>
    %38 = vector.multi_reduction <maximumf>, %37, %cst_16 [1] : vector<128x128xf32> to vector<128xf32>
    %39 = vector.shape_cast %38 : vector<128xf32> to vector<128x1xf32>
    %40 = vector.broadcast %39 : vector<128x1xf32> to vector<128x128xf32>
    %41 = arith.subf %37, %40 : vector<128x128xf32>
    %42 = math.exp %41 : vector<128x128xf32>
    %cst_17 = arith.constant dense<0.000000e+00> : vector<128xf32>
    %43 = vector.multi_reduction <add>, %42, %cst_17 [1] : vector<128x128xf32> to vector<128xf32>
    %44 = vector.shape_cast %43 : vector<128xf32> to vector<128x1xf32>
    %45 = arith.truncf %42 : vector<128x128xf32> to vector<128x128xbf16>
    %cst_18 = arith.constant dense<0.000000e+00> : vector<128x8xf32>
    %46 = tpu.matmul %45, %32, %cst_18 {dimension_numbers = #tpu.dot_dimension_numbers<[1], [0], [0], [1], [0, 0, 1, 1], [], []>} : vector<128x128xbf16>, vector<128x8xbf16>, vector<128x8xf32> -> vector<128x8xf32>
    %47 = tpu.reciprocal %44 {approx = true} : vector<128x1xf32> -> vector<128x1xf32>
    %48 = vector.broadcast %47 : vector<128x1xf32> to vector<128x8xf32>
    %49 = arith.mulf %46, %48 : vector<128x8xf32>
    %c0_19 = arith.constant 0 : index
    %c8 = arith.constant 8 : index
    %50 = vector.load %arg6[%c0_19, %c8] : memref<128x32xf32, #tpu.memory_space<vmem>>, vector<128x8xf32>
    tpu.vector_store %arg6[%c0_19, %c8], %49 {strides = array<i32>} : memref<128x32xf32, #tpu.memory_space<vmem>>, vector<128x8xf32>,
    %51 = vector.extract_strided_slice %1 {offsets = [0, 16], sizes = [128, 8], strides = [1, 1]} : vector<128x32xbf16> to vector<128x8xbf16>
    %52 = vector.extract_strided_slice %3 {offsets = [0, 16], sizes = [128, 8], strides = [1, 1]} : vector<128x32xbf16> to vector<128x8xbf16>
    %53 = vector.extract_strided_slice %5 {offsets = [0, 16], sizes = [128, 8], strides = [1, 1]} : vector<128x32xbf16> to vector<128x8xbf16>
    %cst_20 = arith.constant dense<0.000000e+00> : vector<128x128xf32>
    %54 = tpu.matmul %51, %52, %cst_20 {dimension_numbers = #tpu.dot_dimension_numbers<[1], [1], [0], [0], [0, 0, 1, 0], [], []>} : vector<128x8xbf16>, vector<128x8xbf16>, vector<128x128xf32> -> vector<128x128xf32>
    %cst_21 = arith.constant -1.000000e+30 : f32
    %55 = vector.shape_cast %8 : vector<1x128xi1> to vector<1x128xi1>
    %56 = vector.broadcast %55 : vector<1x128xi1> to vector<128x128xi1>
    %57 = vector.broadcast %cst_21 : f32 to vector<128x128xf32>
    %58 = arith.select %56, %54, %57 : vector<128x128xi1>, vector<128x128xf32>
    %cst_22 = arith.constant dense<0xFF800000> : vector<128xf32>
    %59 = vector.multi_reduction <maximumf>, %58, %cst_22 [1] : vector<128x128xf32> to vector<128xf32>
    %60 = vector.shape_cast %59 : vector<128xf32> to vector<128x1xf32>
    %61 = vector.broadcast %60 : vector<128x1xf32> to vector<128x128xf32>
    %62 = arith.subf %58, %61 : vector<128x128xf32>
    %63 = math.exp %62 : vector<128x128xf32>
    %cst_23 = arith.constant dense<0.000000e+00> : vector<128xf32>
    %64 = vector.multi_reduction <add>, %63, %cst_23 [1] : vector<128x128xf32> to vector<128xf32>
    %65 = vector.shape_cast %64 : vector<128xf32> to vector<128x1xf32>
    %66 = arith.truncf %63 : vector<128x128xf32> to vector<128x128xbf16>
    %cst_24 = arith.constant dense<0.000000e+00> : vector<128x8xf32>
    %67 = tpu.matmul %66, %53, %cst_24 {dimension_numbers = #tpu.dot_dimension_numbers<[1], [0], [0], [1], [0, 0, 1, 1], [], []>} : vector<128x128xbf16>, vector<128x8xbf16>, vector<128x8xf32> -> vector<128x8xf32>
    %68 = tpu.reciprocal %65 {approx = true} : vector<128x1xf32> -> vector<128x1xf32>
    %69 = vector.broadcast %68 : vector<128x1xf32> to vector<128x8xf32>
    %70 = arith.mulf %67, %69 : vector<128x8xf32>
    %c0_25 = arith.constant 0 : index
    %c16 = arith.constant 16 : index
    %71 = vector.load %arg6[%c0_25, %c16] : memref<128x32xf32, #tpu.memory_space<vmem>>, vector<128x8xf32>
    tpu.vector_store %arg6[%c0_25, %c16], %70 {strides = array<i32>} : memref<128x32xf32, #tpu.memory_space<vmem>>, vector<128x8xf32>,
    %72 = vector.extract_strided_slice %1 {offsets = [0, 24], sizes = [128, 8], strides = [1, 1]} : vector<128x32xbf16> to vector<128x8xbf16>
    %73 = vector.extract_strided_slice %3 {offsets = [0, 24], sizes = [128, 8], strides = [1, 1]} : vector<128x32xbf16> to vector<128x8xbf16>
    %74 = vector.extract_strided_slice %5 {offsets = [0, 24], sizes = [128, 8], strides = [1, 1]} : vector<128x32xbf16> to vector<128x8xbf16>
    %cst_26 = arith.constant dense<0.000000e+00> : vector<128x128xf32>
    %75 = tpu.matmul %72, %73, %cst_26 {dimension_numbers = #tpu.dot_dimension_numbers<[1], [1], [0], [0], [0, 0, 1, 0], [], []>} : vector<128x8xbf16>, vector<128x8xbf16>, vector<128x128xf32> -> vector<128x128xf32>
    %cst_27 = arith.constant -1.000000e+30 : f32
    %76 = vector.shape_cast %8 : vector<1x128xi1> to vector<1x128xi1>
    %77 = vector.broadcast %76 : vector<1x128xi1> to vector<128x128xi1>
    %78 = vector.broadcast %cst_27 : f32 to vector<128x128xf32>
    %79 = arith.select %77, %75, %78 : vector<128x128xi1>, vector<128x128xf32>
    %cst_28 = arith.constant dense<0xFF800000> : vector<128xf32>
    %80 = vector.multi_reduction <maximumf>, %79, %cst_28 [1] : vector<128x128xf32> to vector<128xf32>
    %81 = vector.shape_cast %80 : vector<128xf32> to vector<128x1xf32>
    %82 = vector.broadcast %81 : vector<128x1xf32> to vector<128x128xf32>
    %83 = arith.subf %79, %82 : vector<128x128xf32>
    %84 = math.exp %83 : vector<128x128xf32>
    %cst_29 = arith.constant dense<0.000000e+00> : vector<128xf32>
    %85 = vector.multi_reduction <add>, %84, %cst_29 [1] : vector<128x128xf32> to vector<128xf32>
    %86 = vector.shape_cast %85 : vector<128xf32> to vector<128x1xf32>
    %87 = arith.truncf %84 : vector<128x128xf32> to vector<128x128xbf16>
    %cst_30 = arith.constant dense<0.000000e+00> : vector<128x8xf32>
    %88 = tpu.matmul %87, %74, %cst_30 {dimension_numbers = #tpu.dot_dimension_numbers<[1], [0], [0], [1], [0, 0, 1, 1], [], []>} : vector<128x128xbf16>, vector<128x8xbf16>, vector<128x8xf32> -> vector<128x8xf32>
    %89 = tpu.reciprocal %86 {approx = true} : vector<128x1xf32> -> vector<128x1xf32>
    %90 = vector.broadcast %89 : vector<128x1xf32> to vector<128x8xf32>
    %91 = arith.mulf %88, %90 : vector<128x8xf32>
    %c0_31 = arith.constant 0 : index
    %c24 = arith.constant 24 : index
    %92 = vector.load %arg6[%c0_31, %c24] : memref<128x32xf32, #tpu.memory_space<vmem>>, vector<128x8xf32>
    tpu.vector_store %arg6[%c0_31, %c24], %91 {strides = array<i32>} : memref<128x32xf32, #tpu.memory_space<vmem>>, vector<128x8xf32>,
    %c0_32 = arith.constant 0 : index
    %c0_33 = arith.constant 0 : index
    %93 = vector.load %arg6[%c0_32, %c0_33] : memref<128x32xf32, #tpu.memory_space<vmem>>, vector<128x32xf32>
    %94 = arith.truncf %93 : vector<128x32xf32> to vector<128x32xbf16>
    %c0_34 = arith.constant 0 : index
    %c0_35 = arith.constant 0 : index
    %c0_36 = arith.constant 0 : index
    %95 = vector.load %arg5[%c0_34, %c0_35, %c0_36] : memref<1x128x32xbf16, #tpu.memory_space<vmem>>, vector<1x128x32xbf16>
    %96 = vector.shape_cast %95 : vector<1x128x32xbf16> to vector<128x32xbf16>
    %97 = vector.shape_cast %94 : vector<128x32xbf16> to vector<1x128x32xbf16>
    tpu.vector_store %arg5[%c0_34, %c0_35, %c0_36], %97 {strides = array<i32>} : memref<1x128x32xbf16, #tpu.memory_space<vmem>>, vector<1x128x32xbf16>,
    return
  }
  func.func @transform_0(%arg0: i32, %arg1: i32) -> (i32, i32, i32) {
    %c0_i32 = arith.constant 0 : i32
    %c0_i32_0 = arith.constant 0 : i32
    return %arg0, %arg1, %c0_i32 : i32, i32, i32
  }
  func.func @transform_1(%arg0: i32, %arg1: i32) -> (i32, i32, i32) {
    %c0_i32 = arith.constant 0 : i32
    %c0_i32_0 = arith.constant 0 : i32
    %c0_i32_1 = arith.constant 0 : i32
    return %arg0, %c0_i32, %c0_i32_0 : i32, i32, i32
  }
  func.func @transform_2(%arg0: i32, %arg1: i32) -> (i32, i32, i32) {
    %c0_i32 = arith.constant 0 : i32
    %c0_i32_0 = arith.constant 0 : i32
    %c0_i32_1 = arith.constant 0 : i32
    return %arg0, %c0_i32, %c0_i32_0 : i32, i32, i32
  }
  func.func @transform_3(%arg0: i32, %arg1: i32) -> (i32, i32, i32) {
    %c0_i32 = arith.constant 0 : i32
    %c0_i32_0 = arith.constant 0 : i32
    return %arg0, %arg1, %c0_i32 : i32, i32, i32
  }
}

module attributes {stable_mosaic.version = 11 : i64} {
  func.func @_linear_kernel(%arg0: i32, %arg1: i32, %arg2: i32, %arg3: memref<256x32xbf16, #tpu.memory_space<vmem>>, %arg4: memref<32x96xbf16, #tpu.memory_space<vmem>>, %arg5: memref<1x96xf32, #tpu.memory_space<vmem>>, %arg6: memref<256x96xbf16, #tpu.memory_space<vmem>>, %arg7: memref<256x96xf32, #tpu.memory_space<vmem>>) attributes {dimension_semantics = [#tpu.dimension_semantics<parallel>, #tpu.dimension_semantics<parallel>, #tpu.dimension_semantics<arbitrary>], iteration_bounds = array<i64: 1, 1, 1>, scalar_prefetch = 0 : i64, scratch_operands = 1 : i64, tpu.core_type = #tpu.core_type<tc>, window_params = [{transform_indices = @transform_0, window_bounds = array<i64: 256, 32>}, {transform_indices = @transform_1, window_bounds = array<i64: 32, 96>}, {transform_indices = @transform_2, window_bounds = array<i64: 1, 96>}, {transform_indices = @transform_3, window_bounds = array<i64: 256, 96>}]} {
    %c0_i32 = arith.constant 0 : i32
    %0 = arith.cmpi eq, %arg2, %c0_i32 : i32
    %1 = arith.extui %0 : i1 to i32
    %c0_i32_0 = arith.constant 0 : i32
    %2 = arith.cmpi ne, %1, %c0_i32_0 : i32
    scf.if %2 {
      %cst_10 = arith.constant 0.000000e+00 : f32
      %12 = vector.broadcast %cst_10 : f32 to vector<256x96xf32>
      %c0_11 = arith.constant 0 : index
      %c0_12 = arith.constant 0 : index
      %13 = vector.load %arg7[%c0_11, %c0_12] : memref<256x96xf32, #tpu.memory_space<vmem>>, vector<256x96xf32>
      tpu.vector_store %arg7[%c0_11, %c0_12], %12 {strides = array<i32>} : memref<256x96xf32, #tpu.memory_space<vmem>>, vector<256x96xf32>,
    } else {
    }
    %c0 = arith.constant 0 : index
    %c0_1 = arith.constant 0 : index
    %3 = vector.load %arg7[%c0, %c0_1] : memref<256x96xf32, #tpu.memory_space<vmem>>, vector<256x96xf32>
    %c0_2 = arith.constant 0 : index
    %c0_3 = arith.constant 0 : index
    %4 = vector.load %arg3[%c0_2, %c0_3] : memref<256x32xbf16, #tpu.memory_space<vmem>>, vector<256x32xbf16>
    %c0_4 = arith.constant 0 : index
    %c0_5 = arith.constant 0 : index
    %5 = vector.load %arg4[%c0_4, %c0_5] : memref<32x96xbf16, #tpu.memory_space<vmem>>, vector<32x96xbf16>
    %cst = arith.constant dense<0.000000e+00> : vector<256x96xf32>
    %6 = tpu.matmul %4, %5, %cst {dimension_numbers = #tpu.dot_dimension_numbers<[1], [0], [0], [1], [0, 0, 1, 1], [], []>} : vector<256x32xbf16>, vector<32x96xbf16>, vector<256x96xf32> -> vector<256x96xf32>
    %7 = arith.addf %3, %6 : vector<256x96xf32>
    %c0_6 = arith.constant 0 : index
    %c0_7 = arith.constant 0 : index
    %8 = vector.load %arg7[%c0_6, %c0_7] : memref<256x96xf32, #tpu.memory_space<vmem>>, vector<256x96xf32>
    tpu.vector_store %arg7[%c0_6, %c0_7], %7 {strides = array<i32>} : memref<256x96xf32, #tpu.memory_space<vmem>>, vector<256x96xf32>,
    %c0_i32_8 = arith.constant 0 : i32
    %9 = arith.cmpi eq, %arg2, %c0_i32_8 : i32
    %10 = arith.extui %9 : i1 to i32
    %c0_i32_9 = arith.constant 0 : i32
    %11 = arith.cmpi ne, %10, %c0_i32_9 : i32
    scf.if %11 {
      %c0_10 = arith.constant 0 : index
      %c0_11 = arith.constant 0 : index
      %12 = vector.load %arg7[%c0_10, %c0_11] : memref<256x96xf32, #tpu.memory_space<vmem>>, vector<256x96xf32>
      %c0_12 = arith.constant 0 : index
      %c0_13 = arith.constant 0 : index
      %13 = vector.load %arg5[%c0_12, %c0_13] : memref<1x96xf32, #tpu.memory_space<vmem>>, vector<1x96xf32>
      %14 = vector.broadcast %13 : vector<1x96xf32> to vector<256x96xf32>
      %15 = arith.addf %12, %14 : vector<256x96xf32>
      %16 = arith.truncf %15 : vector<256x96xf32> to vector<256x96xbf16>
      %c0_14 = arith.constant 0 : index
      %c0_15 = arith.constant 0 : index
      %17 = vector.load %arg6[%c0_14, %c0_15] : memref<256x96xbf16, #tpu.memory_space<vmem>>, vector<256x96xbf16>
      tpu.vector_store %arg6[%c0_14, %c0_15], %16 {strides = array<i32>} : memref<256x96xbf16, #tpu.memory_space<vmem>>, vector<256x96xbf16>,
    } else {
    }
    return
  }
  func.func @transform_0(%arg0: i32, %arg1: i32, %arg2: i32) -> (i32, i32) {
    %c0_i32 = arith.constant 0 : i32
    return %arg0, %arg2 : i32, i32
  }
  func.func @transform_1(%arg0: i32, %arg1: i32, %arg2: i32) -> (i32, i32) {
    %c0_i32 = arith.constant 0 : i32
    return %arg2, %arg1 : i32, i32
  }
  func.func @transform_2(%arg0: i32, %arg1: i32, %arg2: i32) -> (i32, i32) {
    %c0_i32 = arith.constant 0 : i32
    %c0_i32_0 = arith.constant 0 : i32
    return %c0_i32, %arg1 : i32, i32
  }
  func.func @transform_3(%arg0: i32, %arg1: i32, %arg2: i32) -> (i32, i32) {
    %c0_i32 = arith.constant 0 : i32
    return %arg0, %arg1 : i32, i32
  }
}

</mosaic_0001>

<llo_original>
// kernel: attention_forward.5
$region0: #{attention_forward.5}
  #allocation0 [shape = 'u32[]', space=smem, size = 0x4, offset = 0x4, fixed_abs, tag = 'smem constant byte address 0x4 - core index']
  #allocation1 [shape = 'u32[144,128]{1,0:T(1,128)}', space=vmem, size = 0x12000, scoped, tag = 'internal scratch']
  #allocation2 [shape = 'f32[256,32]{1,0:T(8,128)}', space=vmem, size = 0x20000, scoped, tag = 'scratch operand']
  %s0 = inlined_call_operand.vmem [shape: bf16[256,32], index: 0, kind: input, shape index: {}]
  %s1 = inlined_call_operand.vmem [shape: bf16[32,32], index: 1, kind: input, shape index: {}]
  %s2 = inlined_call_operand.vmem [shape: f32[1,32], index: 2, kind: input, shape index: {}]
  %s3 = inlined_call_operand.vmem [shape: f32[256,32], index: 3, kind: output, shape index: {}]
  %s4 = sld [smem:[#allocation0]]
  $region30: #{attention_forward.5} parent=0
    _
  %s6 = ssub.s32 1, %s4
  %s7 = scalar_select 0, %s6, %s4
  // Predicated region
  $region2: #{attention_forward.5} parent=0 // pred_check
    _
  $region3: #{attention_forward.5} parent=0 // pred_check_branch
    %9 = sbr.rel (0) target = $region5
  $region4: #{attention_forward.5} parent=0 // pred_region
    _
  $region5: #{attention_forward.5} parent=0 // pred_fallthru
    _
  // Predicated region
  $region6: #{attention_forward.5} parent=0 // pred_check
    _
  $region7: #{attention_forward.5} parent=0 // pred_check_branch
    %11 = sbr.rel (0) target = $region9
  $region8: #{attention_forward.5} parent=0 // pred_region
    _
  $region9: #{attention_forward.5} parent=0 // pred_fallthru
    _
  // Predicated region
  $region10: #{attention_forward.5} parent=0 // pred_check
    _
  $region11: #{attention_forward.5} parent=0 // pred_check_branch
    %13 = sbr.rel (0) target = $region13
  $region12: #{attention_forward.5} parent=0 // pred_region
    _
  $region13: #{attention_forward.5} parent=0 // pred_fallthru
    _
  %p15 = scmp.eq.s32.totalorder 0, 0
  // Predicated region
  $region14: #{attention_forward.5} parent=0 // pred_check
    %p16 = pneg %p15
  $region15: #{attention_forward.5} parent=0 // pred_check_branch
    %18 = sbr.rel (%p16) target = $region17
  $region16: #{attention_forward.5} parent=0 // pred_region
    %vm19 = vcmask 261120
    %20 = vst.msk [vmem:[#allocation2] sm:$0xff] %vm19, 0.0
    %21 = vst.msk [vmem:[#allocation2 + $0x8] sm:$0xff] %vm19, 0.0
    %22 = vst.msk [vmem:[#allocation2 + $0x10] sm:$0xff] %vm19, 0.0
    %23 = vst.msk [vmem:[#allocation2 + $0x18] sm:$0xff] %vm19, 0.0
    %24 = vst.msk [vmem:[#allocation2 + $0x20] sm:$0xff] %vm19, 0.0
    %25 = vst.msk [vmem:[#allocation2 + $0x28] sm:$0xff] %vm19, 0.0
    %26 = vst.msk [vmem:[#allocation2 + $0x30] sm:$0xff] %vm19, 0.0
    %27 = vst.msk [vmem:[#allocation2 + $0x38] sm:$0xff] %vm19, 0.0
    %28 = vst.msk [vmem:[#allocation2 + $0x40] sm:$0xff] %vm19, 0.0
    %29 = vst.msk [vmem:[#allocation2 + $0x48] sm:$0xff] %vm19, 0.0
    %30 = vst.msk [vmem:[#allocation2 + $0x50] sm:$0xff] %vm19, 0.0
    %31 = vst.msk [vmem:[#allocation2 + $0x58] sm:$0xff] %vm19, 0.0
    %32 = vst.msk [vmem:[#allocation2 + $0x60] sm:$0xff] %vm19, 0.0
    %33 = vst.msk [vmem:[#allocation2 + $0x68] sm:$0xff] %vm19, 0.0
    %34 = vst.msk [vmem:[#allocation2 + $0x70] sm:$0xff] %vm19, 0.0
    %35 = vst.msk [vmem:[#allocation2 + $0x78] sm:$0xff] %vm19, 0.0
    %36 = vst.msk [vmem:[#allocation2 + $0x80] sm:$0xff] %vm19, 0.0
    %37 = vst.msk [vmem:[#allocation2 + $0x88] sm:$0xff] %vm19, 0.0
    %38 = vst.msk [vmem:[#allocation2 + $0x90] sm:$0xff] %vm19, 0.0
    %39 = vst.msk [vmem:[#allocation2 + $0x98] sm:$0xff] %vm19, 0.0
    %40 = vst.msk [vmem:[#allocation2 + $0xa0] sm:$0xff] %vm19, 0.0
    %41 = vst.msk [vmem:[#allocation2 + $0xa8] sm:$0xff] %vm19, 0.0
    %42 = vst.msk [vmem:[#allocation2 + $0xb0] sm:$0xff] %vm19, 0.0
    %43 = vst.msk [vmem:[#allocation2 + $0xb8] sm:$0xff] %vm19, 0.0
    %44 = vst.msk [vmem:[#allocation2 + $0xc0] sm:$0xff] %vm19, 0.0
    %45 = vst.msk [vmem:[#allocation2 + $0xc8] sm:$0xff] %vm19, 0.0
    %46 = vst.msk [vmem:[#allocation2 + $0xd0] sm:$0xff] %vm19, 0.0
    %47 = vst.msk [vmem:[#allocation2 + $0xd8] sm:$0xff] %vm19, 0.0
    %48 = vst.msk [vmem:[#allocation2 + $0xe0] sm:$0xff] %vm19, 0.0
    %49 = vst.msk [vmem:[#allocation2 + $0xe8] sm:$0xff] %vm19, 0.0
    %50 = vst.msk [vmem:[#allocation2 + $0xf0] sm:$0xff] %vm19, 0.0
    %51 = vst.msk [vmem:[#allocation2 + $0xf8] sm:$0xff] %vm19, 0.0
  $region17: #{attention_forward.5} parent=0 // pred_fallthru
    _
  %v52 = vld [vmem:[#allocation2] sm:$0xff]
  %v53 = vld [vmem:[#allocation2 + $0x8] sm:$0xff]
  %v54 = vld [vmem:[#allocation2 + $0x10] sm:$0xff]
  %v55 = vld [vmem:[#allocation2 + $0x18] sm:$0xff]
  %v56 = vld [vmem:[#allocation2 + $0x20] sm:$0xff]
  %v57 = vld [vmem:[#allocation2 + $0x28] sm:$0xff]
  %v58 = vld [vmem:[#allocation2 + $0x30] sm:$0xff]
  %v59 = vld [vmem:[#allocation2 + $0x38] sm:$0xff]
  %v60 = vld [vmem:[#allocation2 + $0x40] sm:$0xff]
  %v61 = vld [vmem:[#allocation2 + $0x48] sm:$0xff]
  %v62 = vld [vmem:[#allocation2 + $0x50] sm:$0xff]
  %v63 = vld [vmem:[#allocation2 + $0x58] sm:$0xff]
  %v64 = vld [vmem:[#allocation2 + $0x60] sm:$0xff]
  %v65 = vld [vmem:[#allocation2 + $0x68] sm:$0xff]
  %v66 = vld [vmem:[#allocation2 + $0x70] sm:$0xff]
  %v67 = vld [vmem:[#allocation2 + $0x78] sm:$0xff]
  %v68 = vld [vmem:[#allocation2 + $0x80] sm:$0xff]
  %v69 = vld [vmem:[#allocation2 + $0x88] sm:$0xff]
  %v70 = vld [vmem:[#allocation2 + $0x90] sm:$0xff]
  %v71 = vld [vmem:[#allocation2 + $0x98] sm:$0xff]
  %v72 = vld [vmem:[#allocation2 + $0xa0] sm:$0xff]
  %v73 = vld [vmem:[#allocation2 + $0xa8] sm:$0xff]
  %v74 = vld [vmem:[#allocation2 + $0xb0] sm:$0xff]
  %v75 = vld [vmem:[#allocation2 + $0xb8] sm:$0xff]
  %v76 = vld [vmem:[#allocation2 + $0xc0] sm:$0xff]
  %v77 = vld [vmem:[#allocation2 + $0xc8] sm:$0xff]
  %v78 = vld [vmem:[#allocation2 + $0xd0] sm:$0xff]
  %v79 = vld [vmem:[#allocation2 + $0xd8] sm:$0xff]
  %v80 = vld [vmem:[#allocation2 + $0xe0] sm:$0xff]
  %v81 = vld [vmem:[#allocation2 + $0xe8] sm:$0xff]
  %v82 = vld [vmem:[#allocation2 + $0xf0] sm:$0xff]
  %v83 = vld [vmem:[#allocation2 + $0xf8] sm:$0xff]
  %v84 = vld [vmem:[%s0] sm:$0xf]
  %v85 = vld [vmem:[%s0 + $0x4] sm:$0xf]
  %v86 = vld [vmem:[%s0 + $0x8] sm:$0xf]
  %v87 = vld [vmem:[%s0 + $0xc] sm:$0xf]
  %v88 = vld [vmem:[%s0 + $0x10] sm:$0xf]
  %v89 = vld [vmem:[%s0 + $0x14] sm:$0xf]
  %v90 = vld [vmem:[%s0 + $0x18] sm:$0xf]
  %v91 = vld [vmem:[%s0 + $0x1c] sm:$0xf]
  %v92 = vld [vmem:[%s0 + $0x20] sm:$0xf]
  %v93 = vld [vmem:[%s0 + $0x24] sm:$0xf]
  %v94 = vld [vmem:[%s0 + $0x28] sm:$0xf]
  %v95 = vld [vmem:[%s0 + $0x2c] sm:$0xf]
  %v96 = vld [vmem:[%s0 + $0x30] sm:$0xf]
  %v97 = vld [vmem:[%s0 + $0x34] sm:$0xf]
  %v98 = vld [vmem:[%s0 + $0x38] sm:$0xf]
  %v99 = vld [vmem:[%s0 + $0x3c] sm:$0xf]
  %v100 = vld [vmem:[%s0 + $0x40] sm:$0xf]
  %v101 = vld [vmem:[%s0 + $0x44] sm:$0xf]
  %v102 = vld [vmem:[%s0 + $0x48] sm:$0xf]
  %v103 = vld [vmem:[%s0 + $0x4c] sm:$0xf]
  %v104 = vld [vmem:[%s0 + $0x50] sm:$0xf]
  %v105 = vld [vmem:[%s0 + $0x54] sm:$0xf]
  %v106 = vld [vmem:[%s0 + $0x58] sm:$0xf]
  %v107 = vld [vmem:[%s0 + $0x5c] sm:$0xf]
  %v108 = vld [vmem:[%s0 + $0x60] sm:$0xf]
  %v109 = vld [vmem:[%s0 + $0x64] sm:$0xf]
  %v110 = vld [vmem:[%s0 + $0x68] sm:$0xf]
  %v111 = vld [vmem:[%s0 + $0x6c] sm:$0xf]
  %v112 = vld [vmem:[%s0 + $0x70] sm:$0xf]
  %v113 = vld [vmem:[%s0 + $0x74] sm:$0xf]
  %v114 = vld [vmem:[%s0 + $0x78] sm:$0xf]
  %v115 = vld [vmem:[%s0 + $0x7c] sm:$0xf]
  %v116 = vld [vmem:[%s1] sm:$0xf]
  %v117 = vld [vmem:[%s1 + $0x4] sm:$0xf]
  %v118 = vld [vmem:[%s1 + $0x8] sm:$0xf]
  %v119 = vld [vmem:[%s1 + $0xc] sm:$0xf]
  %v152 = vunpack.c.l.b16 %v84
  %v153 = vunpack.c.l.b16 %v85
  %v154 = vunpack.c.l.b16 %v86
  %v155 = vunpack.c.l.b16 %v87
  %v156 = vunpack.c.l.b16 %v88
  %v157 = vunpack.c.l.b16 %v89
  %v158 = vunpack.c.l.b16 %v90
  %v159 = vunpack.c.l.b16 %v91
  %v160 = vunpack.c.l.b16 %v92
  %v161 = vunpack.c.l.b16 %v93
  %v162 = vunpack.c.l.b16 %v94
  %v163 = vunpack.c.l.b16 %v95
  %v164 = vunpack.c.l.b16 %v96
  %v165 = vunpack.c.l.b16 %v97
  %v166 = vunpack.c.l.b16 %v98
  %v167 = vunpack.c.l.b16 %v99
  %v168 = vunpack.c.l.b16 %v100
  %v169 = vunpack.c.l.b16 %v101
  %v170 = vunpack.c.l.b16 %v102
  %v171 = vunpack.c.l.b16 %v103
  %v172 = vunpack.c.l.b16 %v104
  %v173 = vunpack.c.l.b16 %v105
  %v174 = vunpack.c.l.b16 %v106
  %v175 = vunpack.c.l.b16 %v107
  %v176 = vunpack.c.l.b16 %v108
  %v177 = vunpack.c.l.b16 %v109
  %v178 = vunpack.c.l.b16 %v110
  %v179 = vunpack.c.l.b16 %v111
  %v180 = vunpack.c.l.b16 %v112
  %v181 = vunpack.c.l.b16 %v113
  %v182 = vunpack.c.l.b16 %v114
  %v183 = vunpack.c.l.b16 %v115
  %v184 = vpack.c.b16 %v153, %v152
  %v185 = vpack.c.b16 %v155, %v154
  %v186 = vpack.c.b16 %v157, %v156
  %v187 = vpack.c.b16 %v159, %v158
  %v188 = vpack.c.b16 %v161, %v160
  %v189 = vpack.c.b16 %v163, %v162
  %v190 = vpack.c.b16 %v165, %v164
  %v191 = vpack.c.b16 %v167, %v166
  %v192 = vpack.c.b16 %v169, %v168
  %v193 = vpack.c.b16 %v171, %v170
  %v194 = vpack.c.b16 %v173, %v172
  %v195 = vpack.c.b16 %v175, %v174
  %v196 = vpack.c.b16 %v177, %v176
  %v197 = vpack.c.b16 %v179, %v178
  %v198 = vpack.c.b16 %v181, %v180
  %v199 = vpack.c.b16 %v183, %v182
  %v204 = vunpack.c.l.b16 %v116
  %v205 = vunpack.c.l.b16 %v117
  %v206 = vunpack.c.l.b16 %v118
  %v207 = vunpack.c.l.b16 %v119
  %v208 = vpack.c.b16 %v205, %v204
  %v209 = vpack.c.b16 %v207, %v206
  %vm212 = vcmask 261120
  %v214 = vsel %vm212, %v184, 0
  %v217 = vsel %vm212, %v185, 0
  %v220 = vsel %vm212, %v186, 0
  %v223 = vsel %vm212, %v187, 0
  %v226 = vsel %vm212, %v188, 0
  %v229 = vsel %vm212, %v189, 0
  %v232 = vsel %vm212, %v190, 0
  %v235 = vsel %vm212, %v191, 0
  %v238 = vsel %vm212, %v192, 0
  %v241 = vsel %vm212, %v193, 0
  %v244 = vsel %vm212, %v194, 0
  %v247 = vsel %vm212, %v195, 0
  %v250 = vsel %vm212, %v196, 0
  %v253 = vsel %vm212, %v197, 0
  %v256 = vsel %vm212, %v198, 0
  %v259 = vsel %vm212, %v199, 0
  %261 = vmatprep.subr.bf16.mxu0 0
  %262 = vmatpush1.bf16.msra.mxu0 0
  %263 = vmatprep.subr.bf16.mxu0 0
  %264 = vmatpush1.bf16.msra.mxu0 0
  %265 = vmatprep.subr.bf16.mxu0 0
  %266 = vmatpush1.bf16.msra.mxu0 0
  %267 = vmatprep.subr.bf16.mxu0 0
  %268 = vmatpush1.bf16.msra.mxu0 0
  %269 = vmatprep.subr.bf16.mxu0 0
  %270 = vmatpush1.bf16.msra.mxu0 0
  %271 = vmatprep.subr.bf16.mxu0 0
  %272 = vmatpush1.bf16.msra.mxu0 0
  %273 = vmatprep.subr.bf16.mxu0 0
  %274 = vmatpush1.bf16.msra.mxu0 %v209
  %275 = vmatprep.subr.bf16.mxu0 0
  %276 = vmatpush1.bf16.msra.mxu0 %v208
  %277 = vmatprep.subr.bf16.mxu0 0
  %278 = vmatpush2.bf16.msra.mxu0 0
  %279 = vmatprep.subr.bf16.mxu0 0
  %280 = vmatpush2.bf16.msra.mxu0 0
  %281 = vmatprep.subr.bf16.mxu0 0
  %282 = vmatpush2.bf16.msra.mxu0 0
  %283 = vmatprep.subr.bf16.mxu0 0
  %284 = vmatpush2.bf16.msra.mxu0 0
  %285 = vmatprep.subr.bf16.mxu0 0
  %286 = vmatpush2.bf16.msra.mxu0 0
  %287 = vmatprep.subr.bf16.mxu0 0
  %288 = vmatpush2.bf16.msra.mxu0 0
  %289 = vmatprep.subr.bf16.mxu0 0
  %290 = vmatpush2.bf16.msra.mxu0 0
  %291 = vmatprep.subr.bf16.mxu0 0
  %292 = vmatpush2.bf16.msra.mxu0 0
  %293 = vmatprep.mubr.bf16.mxu0 0
  %294 = vmatmul.mubr.bf16.gmra.mxu0 %v214
  %v295 = vpop.f32.mrf.mxu0
  %v296 = vadd.f32 0.0, %v295
  %v297 = vpop.f32.mrf.mxu0
  %v298 = vpop.f32.mrf.mxu0
  %v299 = vadd.f32 0.0, %v298
  %v300 = vpop.f32.mrf.mxu0
  %301 = vmatprep.mubr.bf16.mxu0 0
  %302 = vmatmul.mubr.bf16.gmra.mxu0 %v217
  %v303 = vpop.f32.mrf.mxu0
  %v304 = vadd.f32 0.0, %v303
  %v305 = vpop.f32.mrf.mxu0
  %v306 = vpop.f32.mrf.mxu0
  %v307 = vadd.f32 0.0, %v306
  %v308 = vpop.f32.mrf.mxu0
  %309 = vmatprep.mubr.bf16.mxu0 0
  %310 = vmatmul.mubr.bf16.gmra.mxu0 %v220
  %v311 = vpop.f32.mrf.mxu0
  %v312 = vadd.f32 0.0, %v311
  %v313 = vpop.f32.mrf.mxu0
  %v314 = vpop.f32.mrf.mxu0
  %v315 = vadd.f32 0.0, %v314
  %v316 = vpop.f32.mrf.mxu0
  %317 = vmatprep.mubr.bf16.mxu0 0
  %318 = vmatmul.mubr.bf16.gmra.mxu0 %v223
  %v319 = vpop.f32.mrf.mxu0
  %v320 = vadd.f32 0.0, %v319
  %v321 = vpop.f32.mrf.mxu0
  %v322 = vpop.f32.mrf.mxu0
  %v323 = vadd.f32 0.0, %v322
  %v324 = vpop.f32.mrf.mxu0
  %325 = vmatprep.mubr.bf16.mxu0 0
  %326 = vmatmul.mubr.bf16.gmra.mxu0 %v226
  %v327 = vpop.f32.mrf.mxu0
  %v328 = vadd.f32 0.0, %v327
  %v329 = vpop.f32.mrf.mxu0
  %v330 = vpop.f32.mrf.mxu0
  %v331 = vadd.f32 0.0, %v330
  %v332 = vpop.f32.mrf.mxu0
  %333 = vmatprep.mubr.bf16.mxu0 0
  %334 = vmatmul.mubr.bf16.gmra.mxu0 %v229
  %v335 = vpop.f32.mrf.mxu0
  %v336 = vadd.f32 0.0, %v335
  %v337 = vpop.f32.mrf.mxu0
  %v338 = vpop.f32.mrf.mxu0
  %v339 = vadd.f32 0.0, %v338
  %v340 = vpop.f32.mrf.mxu0
  %341 = vmatprep.mubr.bf16.mxu0 0
  %342 = vmatmul.mubr.bf16.gmra.mxu0 %v232
  %v343 = vpop.f32.mrf.mxu0
  %v344 = vadd.f32 0.0, %v343
  %v345 = vpop.f32.mrf.mxu0
  %v346 = vpop.f32.mrf.mxu0
  %v347 = vadd.f32 0.0, %v346
  %v348 = vpop.f32.mrf.mxu0
  %349 = vmatprep.mubr.bf16.mxu0 0
  %350 = vmatmul.mubr.bf16.gmra.mxu0 %v235
  %v351 = vpop.f32.mrf.mxu0
  %v352 = vadd.f32 0.0, %v351
  %v353 = vpop.f32.mrf.mxu0
  %v354 = vpop.f32.mrf.mxu0
  %v355 = vadd.f32 0.0, %v354
  %v356 = vpop.f32.mrf.mxu0
  %357 = vmatprep.mubr.bf16.mxu0 0
  %358 = vmatmul.mubr.bf16.gmra.mxu0 %v238
  %v359 = vpop.f32.mrf.mxu0
  %v360 = vadd.f32 0.0, %v359
  %v361 = vpop.f32.mrf.mxu0
  %v362 = vpop.f32.mrf.mxu0
  %v363 = vadd.f32 0.0, %v362
  %v364 = vpop.f32.mrf.mxu0
  %365 = vmatprep.mubr.bf16.mxu0 0
  %366 = vmatmul.mubr.bf16.gmra.mxu0 %v241
  %v367 = vpop.f32.mrf.mxu0
  %v368 = vadd.f32 0.0, %v367
  %v369 = vpop.f32.mrf.mxu0
  %v370 = vpop.f32.mrf.mxu0
  %v371 = vadd.f32 0.0, %v370
  %v372 = vpop.f32.mrf.mxu0
  %373 = vmatprep.mubr.bf16.mxu0 0
  %374 = vmatmul.mubr.bf16.gmra.mxu0 %v244
  %v375 = vpop.f32.mrf.mxu0
  %v376 = vadd.f32 0.0, %v375
  %v377 = vpop.f32.mrf.mxu0
  %v378 = vpop.f32.mrf.mxu0
  %v379 = vadd.f32 0.0, %v378
  %v380 = vpop.f32.mrf.mxu0
  %381 = vmatprep.mubr.bf16.mxu0 0
  %382 = vmatmul.mubr.bf16.gmra.mxu0 %v247
  %v383 = vpop.f32.mrf.mxu0
  %v384 = vadd.f32 0.0, %v383
  %v385 = vpop.f32.mrf.mxu0
  %v386 = vpop.f32.mrf.mxu0
  %v387 = vadd.f32 0.0, %v386
  %v388 = vpop.f32.mrf.mxu0
  %389 = vmatprep.mubr.bf16.mxu0 0
  %390 = vmatmul.mubr.bf16.gmra.mxu0 %v250
  %v391 = vpop.f32.mrf.mxu0
  %v392 = vadd.f32 0.0, %v391
  %v393 = vpop.f32.mrf.mxu0
  %v394 = vpop.f32.mrf.mxu0
  %v395 = vadd.f32 0.0, %v394
  %v396 = vpop.f32.mrf.mxu0
  %397 = vmatprep.mubr.bf16.mxu0 0
  %398 = vmatmul.mubr.bf16.gmra.mxu0 %v253
  %v399 = vpop.f32.mrf.mxu0
  %v400 = vadd.f32 0.0, %v399
  %v401 = vpop.f32.mrf.mxu0
  %v402 = vpop.f32.mrf.mxu0
  %v403 = vadd.f32 0.0, %v402
  %v404 = vpop.f32.mrf.mxu0
  %405 = vmatprep.mubr.bf16.mxu0 0
  %406 = vmatmul.mubr.bf16.gmra.mxu0 %v256
  %v407 = vpop.f32.mrf.mxu0
  %v408 = vadd.f32 0.0, %v407
  %v409 = vpop.f32.mrf.mxu0
  %v410 = vpop.f32.mrf.mxu0
  %v411 = vadd.f32 0.0, %v410
  %v412 = vpop.f32.mrf.mxu0
  %413 = vmatprep.mubr.bf16.mxu0 0
  %414 = vmatmul.mubr.bf16.gmra.mxu0 %v259
  %v415 = vpop.f32.mrf.mxu0
  %v416 = vadd.f32 0.0, %v415
  %v417 = vpop.f32.mrf.mxu0
  %v418 = vpop.f32.mrf.mxu0
  %v419 = vadd.f32 0.0, %v418
  %v420 = vpop.f32.mrf.mxu0
  %421 = vdwg.mxu0
  %v422 = vadd.f32 %v52, %v296
  %v423 = vadd.f32 %v53, %v299
  %v424 = vadd.f32 %v54, %v304
  %v425 = vadd.f32 %v55, %v307
  %v426 = vadd.f32 %v56, %v312
  %v427 = vadd.f32 %v57, %v315
  %v428 = vadd.f32 %v58, %v320
  %v429 = vadd.f32 %v59, %v323
  %v430 = vadd.f32 %v60, %v328
  %v431 = vadd.f32 %v61, %v331
  %v432 = vadd.f32 %v62, %v336
  %v433 = vadd.f32 %v63, %v339
  %v434 = vadd.f32 %v64, %v344
  %v435 = vadd.f32 %v65, %v347
  %v436 = vadd.f32 %v66, %v352
  %v437 = vadd.f32 %v67, %v355
  %v438 = vadd.f32 %v68, %v360
  %v439 = vadd.f32 %v69, %v363
  %v440 = vadd.f32 %v70, %v368
  %v441 = vadd.f32 %v71, %v371
  %v442 = vadd.f32 %v72, %v376
  %v443 = vadd.f32 %v73, %v379
  %v444 = vadd.f32 %v74, %v384
  %v445 = vadd.f32 %v75, %v387
  %v446 = vadd.f32 %v76, %v392
  %v447 = vadd.f32 %v77, %v395
  %v448 = vadd.f32 %v78, %v400
  %v449 = vadd.f32 %v79, %v403
  %v450 = vadd.f32 %v80, %v408
  %v451 = vadd.f32 %v81, %v411
  %v452 = vadd.f32 %v82, %v416
  %v453 = vadd.f32 %v83, %v419
  %454 = vst.msk [vmem:[#allocation2] sm:$0xff] %vm212, %v422
  %455 = vst.msk [vmem:[#allocation2 + $0x8] sm:$0xff] %vm212, %v423
  %456 = vst.msk [vmem:[#allocation2 + $0x10] sm:$0xff] %vm212, %v424
  %457 = vst.msk [vmem:[#allocation2 + $0x18] sm:$0xff] %vm212, %v425
  %458 = vst.msk [vmem:[#allocation2 + $0x20] sm:$0xff] %vm212, %v426
  %459 = vst.msk [vmem:[#allocation2 + $0x28] sm:$0xff] %vm212, %v427
  %460 = vst.msk [vmem:[#allocation2 + $0x30] sm:$0xff] %vm212, %v428
  %461 = vst.msk [vmem:[#allocation2 + $0x38] sm:$0xff] %vm212, %v429
  %462 = vst.msk [vmem:[#allocation2 + $0x40] sm:$0xff] %vm212, %v430
  %463 = vst.msk [vmem:[#allocation2 + $0x48] sm:$0xff] %vm212, %v431
  %464 = vst.msk [vmem:[#allocation2 + $0x50] sm:$0xff] %vm212, %v432
  %465 = vst.msk [vmem:[#allocation2 + $0x58] sm:$0xff] %vm212, %v433
  %466 = vst.msk [vmem:[#allocation2 + $0x60] sm:$0xff] %vm212, %v434
  %467 = vst.msk [vmem:[#allocation2 + $0x68] sm:$0xff] %vm212, %v435
  %468 = vst.msk [vmem:[#allocation2 + $0x70] sm:$0xff] %vm212, %v436
  %469 = vst.msk [vmem:[#allocation2 + $0x78] sm:$0xff] %vm212, %v437
  %470 = vst.msk [vmem:[#allocation2 + $0x80] sm:$0xff] %vm212, %v438
  %471 = vst.msk [vmem:[#allocation2 + $0x88] sm:$0xff] %vm212, %v439
  %472 = vst.msk [vmem:[#allocation2 + $0x90] sm:$0xff] %vm212, %v440
  %473 = vst.msk [vmem:[#allocation2 + $0x98] sm:$0xff] %vm212, %v441
  %474 = vst.msk [vmem:[#allocation2 + $0xa0] sm:$0xff] %vm212, %v442
  %475 = vst.msk [vmem:[#allocation2 + $0xa8] sm:$0xff] %vm212, %v443
  %476 = vst.msk [vmem:[#allocation2 + $0xb0] sm:$0xff] %vm212, %v444
  %477 = vst.msk [vmem:[#allocation2 + $0xb8] sm:$0xff] %vm212, %v445
  %478 = vst.msk [vmem:[#allocation2 + $0xc0] sm:$0xff] %vm212, %v446
  %479 = vst.msk [vmem:[#allocation2 + $0xc8] sm:$0xff] %vm212, %v447
  %480 = vst.msk [vmem:[#allocation2 + $0xd0] sm:$0xff] %vm212, %v448
  %481 = vst.msk [vmem:[#allocation2 + $0xd8] sm:$0xff] %vm212, %v449
  %482 = vst.msk [vmem:[#allocation2 + $0xe0] sm:$0xff] %vm212, %v450
  %483 = vst.msk [vmem:[#allocation2 + $0xe8] sm:$0xff] %vm212, %v451
  %484 = vst.msk [vmem:[#allocation2 + $0xf0] sm:$0xff] %vm212, %v452
  %485 = vst.msk [vmem:[#allocation2 + $0xf8] sm:$0xff] %vm212, %v453
  // Predicated region
  $region18: #{attention_forward.5} parent=0 // pred_check
    %p486 = pneg %p15
  $region19: #{attention_forward.5} parent=0 // pred_check_branch
    %488 = sbr.rel (%p486) target = $region21
  $region20: #{attention_forward.5} parent=0 // pred_region
    %v489 = vld [vmem:[#allocation2] sm:$0xff]
    %v490 = vld [vmem:[#allocation2 + $0x8] sm:$0xff]
    %v491 = vld [vmem:[#allocation2 + $0x10] sm:$0xff]
    %v492 = vld [vmem:[#allocation2 + $0x18] sm:$0xff]
    %v493 = vld [vmem:[#allocation2 + $0x20] sm:$0xff]
    %v494 = vld [vmem:[#allocation2 + $0x28] sm:$0xff]
    %v495 = vld [vmem:[#allocation2 + $0x30] sm:$0xff]
    %v496 = vld [vmem:[#allocation2 + $0x38] sm:$0xff]
    %v497 = vld [vmem:[#allocation2 + $0x40] sm:$0xff]
    %v498 = vld [vmem:[#allocation2 + $0x48] sm:$0xff]
    %v499 = vld [vmem:[#allocation2 + $0x50] sm:$0xff]
    %v500 = vld [vmem:[#allocation2 + $0x58] sm:$0xff]
    %v501 = vld [vmem:[#allocation2 + $0x60] sm:$0xff]
    %v502 = vld [vmem:[#allocation2 + $0x68] sm:$0xff]
    %v503 = vld [vmem:[#allocation2 + $0x70] sm:$0xff]
    %v504 = vld [vmem:[#allocation2 + $0x78] sm:$0xff]
    %v505 = vld [vmem:[#allocation2 + $0x80] sm:$0xff]
    %v506 = vld [vmem:[#allocation2 + $0x88] sm:$0xff]
    %v507 = vld [vmem:[#allocation2 + $0x90] sm:$0xff]
    %v508 = vld [vmem:[#allocation2 + $0x98] sm:$0xff]
    %v509 = vld [vmem:[#allocation2 + $0xa0] sm:$0xff]
    %v510 = vld [vmem:[#allocation2 + $0xa8] sm:$0xff]
    %v511 = vld [vmem:[#allocation2 + $0xb0] sm:$0xff]
    %v512 = vld [vmem:[#allocation2 + $0xb8] sm:$0xff]
    %v513 = vld [vmem:[#allocation2 + $0xc0] sm:$0xff]
    %v514 = vld [vmem:[#allocation2 + $0xc8] sm:$0xff]
    %v515 = vld [vmem:[#allocation2 + $0xd0] sm:$0xff]
    %v516 = vld [vmem:[#allocation2 + $0xd8] sm:$0xff]
    %v517 = vld [vmem:[#allocation2 + $0xe0] sm:$0xff]
    %v518 = vld [vmem:[#allocation2 + $0xe8] sm:$0xff]
    %v519 = vld [vmem:[#allocation2 + $0xf0] sm:$0xff]
    %v520 = vld [vmem:[#allocation2 + $0xf8] sm:$0xff]
    %v521 = vld [vmem:[%s2] sm:$0x1]
    %v523 = vlaneseq
    %v524 = vshrl.u32 %v523, 7
    %v525 = vsub.s32 0, %v524
    %v526 = vrot.slane %v521, %v525
    %v528 = vadd.f32 %v489, %v526
    %v529 = vadd.f32 %v490, %v526
    %v530 = vadd.f32 %v491, %v526
    %v531 = vadd.f32 %v492, %v526
    %v532 = vadd.f32 %v493, %v526
    %v533 = vadd.f32 %v494, %v526
    %v534 = vadd.f32 %v495, %v526
    %v535 = vadd.f32 %v496, %v526
    %v536 = vadd.f32 %v497, %v526
    %v537 = vadd.f32 %v498, %v526
    %v538 = vadd.f32 %v499, %v526
    %v539 = vadd.f32 %v500, %v526
    %v540 = vadd.f32 %v501, %v526
    %v541 = vadd.f32 %v502, %v526
    %v542 = vadd.f32 %v503, %v526
    %v543 = vadd.f32 %v504, %v526
    %v544 = vadd.f32 %v505, %v526
    %v545 = vadd.f32 %v506, %v526
    %v546 = vadd.f32 %v507, %v526
    %v547 = vadd.f32 %v508, %v526
    %v548 = vadd.f32 %v509, %v526
    %v549 = vadd.f32 %v510, %v526
    %v550 = vadd.f32 %v511, %v526
    %v551 = vadd.f32 %v512, %v526
    %v552 = vadd.f32 %v513, %v526
    %v553 = vadd.f32 %v514, %v526
    %v554 = vadd.f32 %v515, %v526
    %v555 = vadd.f32 %v516, %v526
    %v556 = vadd.f32 %v517, %v526
    %v557 = vadd.f32 %v518, %v526
    %v558 = vadd.f32 %v519, %v526
    %v559 = vadd.f32 %v520, %v526
    %560 = vst.msk [vmem:[%s3] sm:$0xff] %vm212, %v528
    %561 = vst.msk [vmem:[%s3 + $0x8] sm:$0xff] %vm212, %v529
    %562 = vst.msk [vmem:[%s3 + $0x10] sm:$0xff] %vm212, %v530
    %563 = vst.msk [vmem:[%s3 + $0x18] sm:$0xff] %vm212, %v531
    %564 = vst.msk [vmem:[%s3 + $0x20] sm:$0xff] %vm212, %v532
    %565 = vst.msk [vmem:[%s3 + $0x28] sm:$0xff] %vm212, %v533
    %566 = vst.msk [vmem:[%s3 + $0x30] sm:$0xff] %vm212, %v534
    %567 = vst.msk [vmem:[%s3 + $0x38] sm:$0xff] %vm212, %v535
    %568 = vst.msk [vmem:[%s3 + $0x40] sm:$0xff] %vm212, %v536
    %569 = vst.msk [vmem:[%s3 + $0x48] sm:$0xff] %vm212, %v537
    %570 = vst.msk [vmem:[%s3 + $0x50] sm:$0xff] %vm212, %v538
    %571 = vst.msk [vmem:[%s3 + $0x58] sm:$0xff] %vm212, %v539
    %572 = vst.msk [vmem:[%s3 + $0x60] sm:$0xff] %vm212, %v540
    %573 = vst.msk [vmem:[%s3 + $0x68] sm:$0xff] %vm212, %v541
    %574 = vst.msk [vmem:[%s3 + $0x70] sm:$0xff] %vm212, %v542
    %575 = vst.msk [vmem:[%s3 + $0x78] sm:$0xff] %vm212, %v543
    %576 = vst.msk [vmem:[%s3 + $0x80] sm:$0xff] %vm212, %v544
    %577 = vst.msk [vmem:[%s3 + $0x88] sm:$0xff] %vm212, %v545
    %578 = vst.msk [vmem:[%s3 + $0x90] sm:$0xff] %vm212, %v546
    %579 = vst.msk [vmem:[%s3 + $0x98] sm:$0xff] %vm212, %v547
    %580 = vst.msk [vmem:[%s3 + $0xa0] sm:$0xff] %vm212, %v548
    %581 = vst.msk [vmem:[%s3 + $0xa8] sm:$0xff] %vm212, %v549
    %582 = vst.msk [vmem:[%s3 + $0xb0] sm:$0xff] %vm212, %v550
    %583 = vst.msk [vmem:[%s3 + $0xb8] sm:$0xff] %vm212, %v551
    %584 = vst.msk [vmem:[%s3 + $0xc0] sm:$0xff] %vm212, %v552
    %585 = vst.msk [vmem:[%s3 + $0xc8] sm:$0xff] %vm212, %v553
    %586 = vst.msk [vmem:[%s3 + $0xd0] sm:$0xff] %vm212, %v554
    %587 = vst.msk [vmem:[%s3 + $0xd8] sm:$0xff] %vm212, %v555
    %588 = vst.msk [vmem:[%s3 + $0xe0] sm:$0xff] %vm212, %v556
    %589 = vst.msk [vmem:[%s3 + $0xe8] sm:$0xff] %vm212, %v557
    %590 = vst.msk [vmem:[%s3 + $0xf0] sm:$0xff] %vm212, %v558
    %591 = vst.msk [vmem:[%s3 + $0xf8] sm:$0xff] %vm212, %v559
  $region21: #{attention_forward.5} parent=0 // pred_fallthru
    _
  // Predicated region
  $region22: #{attention_forward.5} parent=0 // pred_check
    _
  $region23: #{attention_forward.5} parent=0 // pred_check_branch
    %593 = sbr.rel (0) target = $region25
  $region24: #{attention_forward.5} parent=0 // pred_region
    _
  $region25: #{attention_forward.5} parent=0 // pred_fallthru
    _
  // Predicated region
  $region26: #{attention_forward.5} parent=0 // pred_check
    _
  $region27: #{attention_forward.5} parent=0 // pred_check_branch
    %595 = sbr.rel (0) target = $region29
  $region28: #{attention_forward.5} parent=0 // pred_region
    _
  $region29: #{attention_forward.5} parent=0 // pred_fallthru
    _

// kernel: attention_forward.3
$region0: #{attention_forward.3}
  #allocation0 [shape = 'u32[]', space=smem, size = 0x4, offset = 0x4, fixed_abs, tag = 'smem constant byte address 0x4 - core index']
  #allocation1 [shape = 'u32[144,128]{1,0:T(1,128)}', space=vmem, size = 0x12000, scoped, tag = 'internal scratch']
  #allocation2 [shape = 'f32[256,96]{1,0:T(8,128)}', space=vmem, size = 0x20000, scoped, tag = 'scratch operand']
  %s0 = inlined_call_operand.vmem [shape: bf16[256,32], index: 0, kind: input, shape index: {}]
  %s1 = inlined_call_operand.vmem [shape: bf16[32,96], index: 1, kind: input, shape index: {}]
  %s2 = inlined_call_operand.vmem [shape: f32[1,96], index: 2, kind: input, shape index: {}]
  %s3 = inlined_call_operand.vmem [shape: bf16[256,96], index: 3, kind: output, shape index: {}]
  %s4 = sld [smem:[#allocation0]]
  $region30: #{attention_forward.3} parent=0
    _
  %s6 = ssub.s32 1, %s4
  %s7 = scalar_select 0, %s6, %s4
  // Predicated region
  $region2: #{attention_forward.3} parent=0 // pred_check
    _
  $region3: #{attention_forward.3} parent=0 // pred_check_branch
    %9 = sbr.rel (0) target = $region5
  $region4: #{attention_forward.3} parent=0 // pred_region
    _
  $region5: #{attention_forward.3} parent=0 // pred_fallthru
    _
  // Predicated region
  $region6: #{attention_forward.3} parent=0 // pred_check
    _
  $region7: #{attention_forward.3} parent=0 // pred_check_branch
    %11 = sbr.rel (0) target = $region9
  $region8: #{attention_forward.3} parent=0 // pred_region
    _
  $region9: #{attention_forward.3} parent=0 // pred_fallthru
    _
  // Predicated region
  $region10: #{attention_forward.3} parent=0 // pred_check
    _
  $region11: #{attention_forward.3} parent=0 // pred_check_branch
    %13 = sbr.rel (0) target = $region13
  $region12: #{attention_forward.3} parent=0 // pred_region
    _
  $region13: #{attention_forward.3} parent=0 // pred_fallthru
    _
  %p15 = scmp.eq.s32.totalorder 0, 0
  // Predicated region
  $region14: #{attention_forward.3} parent=0 // pred_check
    %p16 = pneg %p15
  $region15: #{attention_forward.3} parent=0 // pred_check_branch
    %18 = sbr.rel (%p16) target = $region17
  $region16: #{attention_forward.3} parent=0 // pred_region
    %vm19 = vcmask 785408
    %20 = vst.msk [vmem:[#allocation2] sm:$0xff] %vm19, 0.0
    %21 = vst.msk [vmem:[#allocation2 + $0x8] sm:$0xff] %vm19, 0.0
    %22 = vst.msk [vmem:[#allocation2 + $0x10] sm:$0xff] %vm19, 0.0
    %23 = vst.msk [vmem:[#allocation2 + $0x18] sm:$0xff] %vm19, 0.0
    %24 = vst.msk [vmem:[#allocation2 + $0x20] sm:$0xff] %vm19, 0.0
    %25 = vst.msk [vmem:[#allocation2 + $0x28] sm:$0xff] %vm19, 0.0
    %26 = vst.msk [vmem:[#allocation2 + $0x30] sm:$0xff] %vm19, 0.0
    %27 = vst.msk [vmem:[#allocation2 + $0x38] sm:$0xff] %vm19, 0.0
    %28 = vst.msk [vmem:[#allocation2 + $0x40] sm:$0xff] %vm19, 0.0
    %29 = vst.msk [vmem:[#allocation2 + $0x48] sm:$0xff] %vm19, 0.0
    %30 = vst.msk [vmem:[#allocation2 + $0x50] sm:$0xff] %vm19, 0.0
    %31 = vst.msk [vmem:[#allocation2 + $0x58] sm:$0xff] %vm19, 0.0
    %32 = vst.msk [vmem:[#allocation2 + $0x60] sm:$0xff] %vm19, 0.0
    %33 = vst.msk [vmem:[#allocation2 + $0x68] sm:$0xff] %vm19, 0.0
    %34 = vst.msk [vmem:[#allocation2 + $0x70] sm:$0xff] %vm19, 0.0
    %35 = vst.msk [vmem:[#allocation2 + $0x78] sm:$0xff] %vm19, 0.0
    %36 = vst.msk [vmem:[#allocation2 + $0x80] sm:$0xff] %vm19, 0.0
    %37 = vst.msk [vmem:[#allocation2 + $0x88] sm:$0xff] %vm19, 0.0
    %38 = vst.msk [vmem:[#allocation2 + $0x90] sm:$0xff] %vm19, 0.0
    %39 = vst.msk [vmem:[#allocation2 + $0x98] sm:$0xff] %vm19, 0.0
    %40 = vst.msk [vmem:[#allocation2 + $0xa0] sm:$0xff] %vm19, 0.0
    %41 = vst.msk [vmem:[#allocation2 + $0xa8] sm:$0xff] %vm19, 0.0
    %42 = vst.msk [vmem:[#allocation2 + $0xb0] sm:$0xff] %vm19, 0.0
    %43 = vst.msk [vmem:[#allocation2 + $0xb8] sm:$0xff] %vm19, 0.0
    %44 = vst.msk [vmem:[#allocation2 + $0xc0] sm:$0xff] %vm19, 0.0
    %45 = vst.msk [vmem:[#allocation2 + $0xc8] sm:$0xff] %vm19, 0.0
    %46 = vst.msk [vmem:[#allocation2 + $0xd0] sm:$0xff] %vm19, 0.0
    %47 = vst.msk [vmem:[#allocation2 + $0xd8] sm:$0xff] %vm19, 0.0
    %48 = vst.msk [vmem:[#allocation2 + $0xe0] sm:$0xff] %vm19, 0.0
    %49 = vst.msk [vmem:[#allocation2 + $0xe8] sm:$0xff] %vm19, 0.0
    %50 = vst.msk [vmem:[#allocation2 + $0xf0] sm:$0xff] %vm19, 0.0
    %51 = vst.msk [vmem:[#allocation2 + $0xf8] sm:$0xff] %vm19, 0.0
  $region17: #{attention_forward.3} parent=0 // pred_fallthru
    _
  %v52 = vld [vmem:[#allocation2] sm:$0xff]
  %v53 = vld [vmem:[#allocation2 + $0x8] sm:$0xff]
  %v54 = vld [vmem:[#allocation2 + $0x10] sm:$0xff]
  %v55 = vld [vmem:[#allocation2 + $0x18] sm:$0xff]
  %v56 = vld [vmem:[#allocation2 + $0x20] sm:$0xff]
  %v57 = vld [vmem:[#allocation2 + $0x28] sm:$0xff]
  %v58 = vld [vmem:[#allocation2 + $0x30] sm:$0xff]
  %v59 = vld [vmem:[#allocation2 + $0x38] sm:$0xff]
  %v60 = vld [vmem:[#allocation2 + $0x40] sm:$0xff]
  %v61 = vld [vmem:[#allocation2 + $0x48] sm:$0xff]
  %v62 = vld [vmem:[#allocation2 + $0x50] sm:$0xff]
  %v63 = vld [vmem:[#allocation2 + $0x58] sm:$0xff]
  %v64 = vld [vmem:[#allocation2 + $0x60] sm:$0xff]
  %v65 = vld [vmem:[#allocation2 + $0x68] sm:$0xff]
  %v66 = vld [vmem:[#allocation2 + $0x70] sm:$0xff]
  %v67 = vld [vmem:[#allocation2 + $0x78] sm:$0xff]
  %v68 = vld [vmem:[#allocation2 + $0x80] sm:$0xff]
  %v69 = vld [vmem:[#allocation2 + $0x88] sm:$0xff]
  %v70 = vld [vmem:[#allocation2 + $0x90] sm:$0xff]
  %v71 = vld [vmem:[#allocation2 + $0x98] sm:$0xff]
  %v72 = vld [vmem:[#allocation2 + $0xa0] sm:$0xff]
  %v73 = vld [vmem:[#allocation2 + $0xa8] sm:$0xff]
  %v74 = vld [vmem:[#allocation2 + $0xb0] sm:$0xff]
  %v75 = vld [vmem:[#allocation2 + $0xb8] sm:$0xff]
  %v76 = vld [vmem:[#allocation2 + $0xc0] sm:$0xff]
  %v77 = vld [vmem:[#allocation2 + $0xc8] sm:$0xff]
  %v78 = vld [vmem:[#allocation2 + $0xd0] sm:$0xff]
  %v79 = vld [vmem:[#allocation2 + $0xd8] sm:$0xff]
  %v80 = vld [vmem:[#allocation2 + $0xe0] sm:$0xff]
  %v81 = vld [vmem:[#allocation2 + $0xe8] sm:$0xff]
  %v82 = vld [vmem:[#allocation2 + $0xf0] sm:$0xff]
  %v83 = vld [vmem:[#allocation2 + $0xf8] sm:$0xff]
  %v84 = vld [vmem:[%s0] sm:$0xf]
  %v85 = vld [vmem:[%s0 + $0x4] sm:$0xf]
  %v86 = vld [vmem:[%s0 + $0x8] sm:$0xf]
  %v87 = vld [vmem:[%s0 + $0xc] sm:$0xf]
  %v88 = vld [vmem:[%s0 + $0x10] sm:$0xf]
  %v89 = vld [vmem:[%s0 + $0x14] sm:$0xf]
  %v90 = vld [vmem:[%s0 + $0x18] sm:$0xf]
  %v91 = vld [vmem:[%s0 + $0x1c] sm:$0xf]
  %v92 = vld [vmem:[%s0 + $0x20] sm:$0xf]
  %v93 = vld [vmem:[%s0 + $0x24] sm:$0xf]
  %v94 = vld [vmem:[%s0 + $0x28] sm:$0xf]
  %v95 = vld [vmem:[%s0 + $0x2c] sm:$0xf]
  %v96 = vld [vmem:[%s0 + $0x30] sm:$0xf]
  %v97 = vld [vmem:[%s0 + $0x34] sm:$0xf]
  %v98 = vld [vmem:[%s0 + $0x38] sm:$0xf]
  %v99 = vld [vmem:[%s0 + $0x3c] sm:$0xf]
  %v100 = vld [vmem:[%s0 + $0x40] sm:$0xf]
  %v101 = vld [vmem:[%s0 + $0x44] sm:$0xf]
  %v102 = vld [vmem:[%s0 + $0x48] sm:$0xf]
  %v103 = vld [vmem:[%s0 + $0x4c] sm:$0xf]
  %v104 = vld [vmem:[%s0 + $0x50] sm:$0xf]
  %v105 = vld [vmem:[%s0 + $0x54] sm:$0xf]
  %v106 = vld [vmem:[%s0 + $0x58] sm:$0xf]
  %v107 = vld [vmem:[%s0 + $0x5c] sm:$0xf]
  %v108 = vld [vmem:[%s0 + $0x60] sm:$0xf]
  %v109 = vld [vmem:[%s0 + $0x64] sm:$0xf]
  %v110 = vld [vmem:[%s0 + $0x68] sm:$0xf]
  %v111 = vld [vmem:[%s0 + $0x6c] sm:$0xf]
  %v112 = vld [vmem:[%s0 + $0x70] sm:$0xf]
  %v113 = vld [vmem:[%s0 + $0x74] sm:$0xf]
  %v114 = vld [vmem:[%s0 + $0x78] sm:$0xf]
  %v115 = vld [vmem:[%s0 + $0x7c] sm:$0xf]
  %v116 = vld [vmem:[%s1] sm:$0xf]
  %v117 = vld [vmem:[%s1 + $0x4] sm:$0xf]
  %v118 = vld [vmem:[%s1 + $0x8] sm:$0xf]
  %v119 = vld [vmem:[%s1 + $0xc] sm:$0xf]
  %v152 = vunpack.c.l.b16 %v84
  %v153 = vunpack.c.l.b16 %v85
  %v154 = vunpack.c.l.b16 %v86
  %v155 = vunpack.c.l.b16 %v87
  %v156 = vunpack.c.l.b16 %v88
  %v157 = vunpack.c.l.b16 %v89
  %v158 = vunpack.c.l.b16 %v90
  %v159 = vunpack.c.l.b16 %v91
  %v160 = vunpack.c.l.b16 %v92
  %v161 = vunpack.c.l.b16 %v93
  %v162 = vunpack.c.l.b16 %v94
  %v163 = vunpack.c.l.b16 %v95
  %v164 = vunpack.c.l.b16 %v96
  %v165 = vunpack.c.l.b16 %v97
  %v166 = vunpack.c.l.b16 %v98
  %v167 = vunpack.c.l.b16 %v99
  %v168 = vunpack.c.l.b16 %v100
  %v169 = vunpack.c.l.b16 %v101
  %v170 = vunpack.c.l.b16 %v102
  %v171 = vunpack.c.l.b16 %v103
  %v172 = vunpack.c.l.b16 %v104
  %v173 = vunpack.c.l.b16 %v105
  %v174 = vunpack.c.l.b16 %v106
  %v175 = vunpack.c.l.b16 %v107
  %v176 = vunpack.c.l.b16 %v108
  %v177 = vunpack.c.l.b16 %v109
  %v178 = vunpack.c.l.b16 %v110
  %v179 = vunpack.c.l.b16 %v111
  %v180 = vunpack.c.l.b16 %v112
  %v181 = vunpack.c.l.b16 %v113
  %v182 = vunpack.c.l.b16 %v114
  %v183 = vunpack.c.l.b16 %v115
  %v184 = vpack.c.b16 %v153, %v152
  %v185 = vpack.c.b16 %v155, %v154
  %v186 = vpack.c.b16 %v157, %v156
  %v187 = vpack.c.b16 %v159, %v158
  %v188 = vpack.c.b16 %v161, %v160
  %v189 = vpack.c.b16 %v163, %v162
  %v190 = vpack.c.b16 %v165, %v164
  %v191 = vpack.c.b16 %v167, %v166
  %v192 = vpack.c.b16 %v169, %v168
  %v193 = vpack.c.b16 %v171, %v170
  %v194 = vpack.c.b16 %v173, %v172
  %v195 = vpack.c.b16 %v175, %v174
  %v196 = vpack.c.b16 %v177, %v176
  %v197 = vpack.c.b16 %v179, %v178
  %v198 = vpack.c.b16 %v181, %v180
  %v199 = vpack.c.b16 %v183, %v182
  %v204 = vunpack.c.l.b16 %v116
  %v205 = vunpack.c.l.b16 %v117
  %v206 = vunpack.c.l.b16 %v118
  %v207 = vunpack.c.l.b16 %v119
  %v208 = vpack.c.b16 %v205, %v204
  %v209 = vpack.c.b16 %v207, %v206
  %vm212 = vcmask 261120
  %v214 = vsel %vm212, %v184, 0
  %v217 = vsel %vm212, %v185, 0
  %v220 = vsel %vm212, %v186, 0
  %v223 = vsel %vm212, %v187, 0
  %v226 = vsel %vm212, %v188, 0
  %v229 = vsel %vm212, %v189, 0
  %v232 = vsel %vm212, %v190, 0
  %v235 = vsel %vm212, %v191, 0
  %v238 = vsel %vm212, %v192, 0
  %v241 = vsel %vm212, %v193, 0
  %v244 = vsel %vm212, %v194, 0
  %v247 = vsel %vm212, %v195, 0
  %v250 = vsel %vm212, %v196, 0
  %v253 = vsel %vm212, %v197, 0
  %v256 = vsel %vm212, %v198, 0
  %v259 = vsel %vm212, %v199, 0
  %261 = vmatprep.subr.bf16.mxu0 0
  %262 = vmatpush1.bf16.msra.mxu0 0
  %263 = vmatprep.subr.bf16.mxu0 0
  %264 = vmatpush1.bf16.msra.mxu0 0
  %265 = vmatprep.subr.bf16.mxu0 0
  %266 = vmatpush1.bf16.msra.mxu0 0
  %267 = vmatprep.subr.bf16.mxu0 0
  %268 = vmatpush1.bf16.msra.mxu0 0
  %269 = vmatprep.subr.bf16.mxu0 0
  %270 = vmatpush1.bf16.msra.mxu0 0
  %271 = vmatprep.subr.bf16.mxu0 0
  %272 = vmatpush1.bf16.msra.mxu0 0
  %273 = vmatprep.subr.bf16.mxu0 0
  %274 = vmatpush1.bf16.msra.mxu0 %v209
  %275 = vmatprep.subr.bf16.mxu0 0
  %276 = vmatpush1.bf16.msra.mxu0 %v208
  %277 = vmatprep.subr.bf16.mxu0 0
  %278 = vmatpush2.bf16.msra.mxu0 0
  %279 = vmatprep.subr.bf16.mxu0 0
  %280 = vmatpush2.bf16.msra.mxu0 0
  %281 = vmatprep.subr.bf16.mxu0 0
  %282 = vmatpush2.bf16.msra.mxu0 0
  %283 = vmatprep.subr.bf16.mxu0 0
  %284 = vmatpush2.bf16.msra.mxu0 0
  %285 = vmatprep.subr.bf16.mxu0 0
  %286 = vmatpush2.bf16.msra.mxu0 0
  %287 = vmatprep.subr.bf16.mxu0 0
  %288 = vmatpush2.bf16.msra.mxu0 0
  %289 = vmatprep.subr.bf16.mxu0 0
  %290 = vmatpush2.bf16.msra.mxu0 0
  %291 = vmatprep.subr.bf16.mxu0 0
  %292 = vmatpush2.bf16.msra.mxu0 0
  %293 = vmatprep.mubr.bf16.mxu0 0
  %294 = vmatmul.mubr.bf16.gmra.mxu0 %v214
  %v295 = vpop.f32.mrf.mxu0
  %v296 = vadd.f32 0.0, %v295
  %v297 = vpop.f32.mrf.mxu0
  %v298 = vpop.f32.mrf.mxu0
  %v299 = vadd.f32 0.0, %v298
  %v300 = vpop.f32.mrf.mxu0
  %301 = vmatprep.mubr.bf16.mxu0 0
  %302 = vmatmul.mubr.bf16.gmra.mxu0 %v217
  %v303 = vpop.f32.mrf.mxu0
  %v304 = vadd.f32 0.0, %v303
  %v305 = vpop.f32.mrf.mxu0
  %v306 = vpop.f32.mrf.mxu0
  %v307 = vadd.f32 0.0, %v306
  %v308 = vpop.f32.mrf.mxu0
  %309 = vmatprep.mubr.bf16.mxu0 0
  %310 = vmatmul.mubr.bf16.gmra.mxu0 %v220
  %v311 = vpop.f32.mrf.mxu0
  %v312 = vadd.f32 0.0, %v311
  %v313 = vpop.f32.mrf.mxu0
  %v314 = vpop.f32.mrf.mxu0
  %v315 = vadd.f32 0.0, %v314
  %v316 = vpop.f32.mrf.mxu0
  %317 = vmatprep.mubr.bf16.mxu0 0
  %318 = vmatmul.mubr.bf16.gmra.mxu0 %v223
  %v319 = vpop.f32.mrf.mxu0
  %v320 = vadd.f32 0.0, %v319
  %v321 = vpop.f32.mrf.mxu0
  %v322 = vpop.f32.mrf.mxu0
  %v323 = vadd.f32 0.0, %v322
  %v324 = vpop.f32.mrf.mxu0
  %325 = vmatprep.mubr.bf16.mxu0 0
  %326 = vmatmul.mubr.bf16.gmra.mxu0 %v226
  %v327 = vpop.f32.mrf.mxu0
  %v328 = vadd.f32 0.0, %v327
  %v329 = vpop.f32.mrf.mxu0
  %v330 = vpop.f32.mrf.mxu0
  %v331 = vadd.f32 0.0, %v330
  %v332 = vpop.f32.mrf.mxu0
  %333 = vmatprep.mubr.bf16.mxu0 0
  %334 = vmatmul.mubr.bf16.gmra.mxu0 %v229
  %v335 = vpop.f32.mrf.mxu0
  %v336 = vadd.f32 0.0, %v335
  %v337 = vpop.f32.mrf.mxu0
  %v338 = vpop.f32.mrf.mxu0
  %v339 = vadd.f32 0.0, %v338
  %v340 = vpop.f32.mrf.mxu0
  %341 = vmatprep.mubr.bf16.mxu0 0
  %342 = vmatmul.mubr.bf16.gmra.mxu0 %v232
  %v343 = vpop.f32.mrf.mxu0
  %v344 = vadd.f32 0.0, %v343
  %v345 = vpop.f32.mrf.mxu0
  %v346 = vpop.f32.mrf.mxu0
  %v347 = vadd.f32 0.0, %v346
  %v348 = vpop.f32.mrf.mxu0
  %349 = vmatprep.mubr.bf16.mxu0 0
  %350 = vmatmul.mubr.bf16.gmra.mxu0 %v235
  %v351 = vpop.f32.mrf.mxu0
  %v352 = vadd.f32 0.0, %v351
  %v353 = vpop.f32.mrf.mxu0
  %v354 = vpop.f32.mrf.mxu0
  %v355 = vadd.f32 0.0, %v354
  %v356 = vpop.f32.mrf.mxu0
  %357 = vmatprep.mubr.bf16.mxu0 0
  %358 = vmatmul.mubr.bf16.gmra.mxu0 %v238
  %v359 = vpop.f32.mrf.mxu0
  %v360 = vadd.f32 0.0, %v359
  %v361 = vpop.f32.mrf.mxu0
  %v362 = vpop.f32.mrf.mxu0
  %v363 = vadd.f32 0.0, %v362
  %v364 = vpop.f32.mrf.mxu0
  %365 = vmatprep.mubr.bf16.mxu0 0
  %366 = vmatmul.mubr.bf16.gmra.mxu0 %v241
  %v367 = vpop.f32.mrf.mxu0
  %v368 = vadd.f32 0.0, %v367
  %v369 = vpop.f32.mrf.mxu0
  %v370 = vpop.f32.mrf.mxu0
  %v371 = vadd.f32 0.0, %v370
  %v372 = vpop.f32.mrf.mxu0
  %373 = vmatprep.mubr.bf16.mxu0 0
  %374 = vmatmul.mubr.bf16.gmra.mxu0 %v244
  %v375 = vpop.f32.mrf.mxu0
  %v376 = vadd.f32 0.0, %v375
  %v377 = vpop.f32.mrf.mxu0
  %v378 = vpop.f32.mrf.mxu0
  %v379 = vadd.f32 0.0, %v378
  %v380 = vpop.f32.mrf.mxu0
  %381 = vmatprep.mubr.bf16.mxu0 0
  %382 = vmatmul.mubr.bf16.gmra.mxu0 %v247
  %v383 = vpop.f32.mrf.mxu0
  %v384 = vadd.f32 0.0, %v383
  %v385 = vpop.f32.mrf.mxu0
  %v386 = vpop.f32.mrf.mxu0
  %v387 = vadd.f32 0.0, %v386
  %v388 = vpop.f32.mrf.mxu0
  %389 = vmatprep.mubr.bf16.mxu0 0
  %390 = vmatmul.mubr.bf16.gmra.mxu0 %v250
  %v391 = vpop.f32.mrf.mxu0
  %v392 = vadd.f32 0.0, %v391
  %v393 = vpop.f32.mrf.mxu0
  %v394 = vpop.f32.mrf.mxu0
  %v395 = vadd.f32 0.0, %v394
  %v396 = vpop.f32.mrf.mxu0
  %397 = vmatprep.mubr.bf16.mxu0 0
  %398 = vmatmul.mubr.bf16.gmra.mxu0 %v253
  %v399 = vpop.f32.mrf.mxu0
  %v400 = vadd.f32 0.0, %v399
  %v401 = vpop.f32.mrf.mxu0
  %v402 = vpop.f32.mrf.mxu0
  %v403 = vadd.f32 0.0, %v402
  %v404 = vpop.f32.mrf.mxu0
  %405 = vmatprep.mubr.bf16.mxu0 0
  %406 = vmatmul.mubr.bf16.gmra.mxu0 %v256
  %v407 = vpop.f32.mrf.mxu0
  %v408 = vadd.f32 0.0, %v407
  %v409 = vpop.f32.mrf.mxu0
  %v410 = vpop.f32.mrf.mxu0
  %v411 = vadd.f32 0.0, %v410
  %v412 = vpop.f32.mrf.mxu0
  %413 = vmatprep.mubr.bf16.mxu0 0
  %414 = vmatmul.mubr.bf16.gmra.mxu0 %v259
  %v415 = vpop.f32.mrf.mxu0
  %v416 = vadd.f32 0.0, %v415
  %v417 = vpop.f32.mrf.mxu0
  %v418 = vpop.f32.mrf.mxu0
  %v419 = vadd.f32 0.0, %v418
  %v420 = vpop.f32.mrf.mxu0
  %421 = vdwg.mxu0
  %v422 = vadd.f32 %v52, %v296
  %v423 = vadd.f32 %v53, %v299
  %v424 = vadd.f32 %v54, %v304
  %v425 = vadd.f32 %v55, %v307
  %v426 = vadd.f32 %v56, %v312
  %v427 = vadd.f32 %v57, %v315
  %v428 = vadd.f32 %v58, %v320
  %v429 = vadd.f32 %v59, %v323
  %v430 = vadd.f32 %v60, %v328
  %v431 = vadd.f32 %v61, %v331
  %v432 = vadd.f32 %v62, %v336
  %v433 = vadd.f32 %v63, %v339
  %v434 = vadd.f32 %v64, %v344
  %v435 = vadd.f32 %v65, %v347
  %v436 = vadd.f32 %v66, %v352
  %v437 = vadd.f32 %v67, %v355
  %v438 = vadd.f32 %v68, %v360
  %v439 = vadd.f32 %v69, %v363
  %v440 = vadd.f32 %v70, %v368
  %v441 = vadd.f32 %v71, %v371
  %v442 = vadd.f32 %v72, %v376
  %v443 = vadd.f32 %v73, %v379
  %v444 = vadd.f32 %v74, %v384
  %v445 = vadd.f32 %v75, %v387
  %v446 = vadd.f32 %v76, %v392
  %v447 = vadd.f32 %v77, %v395
  %v448 = vadd.f32 %v78, %v400
  %v449 = vadd.f32 %v79, %v403
  %v450 = vadd.f32 %v80, %v408
  %v451 = vadd.f32 %v81, %v411
  %v452 = vadd.f32 %v82, %v416
  %v453 = vadd.f32 %v83, %v419
  %vm454 = vcmask 785408
  %455 = vst.msk [vmem:[#allocation2] sm:$0xff] %vm454, %v422
  %456 = vst.msk [vmem:[#allocation2 + $0x8] sm:$0xff] %vm454, %v423
  %457 = vst.msk [vmem:[#allocation2 + $0x10] sm:$0xff] %vm454, %v424
  %458 = vst.msk [vmem:[#allocation2 + $0x18] sm:$0xff] %vm454, %v425
  %459 = vst.msk [vmem:[#allocation2 + $0x20] sm:$0xff] %vm454, %v426
  %460 = vst.msk [vmem:[#allocation2 + $0x28] sm:$0xff] %vm454, %v427
  %461 = vst.msk [vmem:[#allocation2 + $0x30] sm:$0xff] %vm454, %v428
  %462 = vst.msk [vmem:[#allocation2 + $0x38] sm:$0xff] %vm454, %v429
  %463 = vst.msk [vmem:[#allocation2 + $0x40] sm:$0xff] %vm454, %v430
  %464 = vst.msk [vmem:[#allocation2 + $0x48] sm:$0xff] %vm454, %v431
  %465 = vst.msk [vmem:[#allocation2 + $0x50] sm:$0xff] %vm454, %v432
  %466 = vst.msk [vmem:[#allocation2 + $0x58] sm:$0xff] %vm454, %v433
  %467 = vst.msk [vmem:[#allocation2 + $0x60] sm:$0xff] %vm454, %v434
  %468 = vst.msk [vmem:[#allocation2 + $0x68] sm:$0xff] %vm454, %v435
  %469 = vst.msk [vmem:[#allocation2 + $0x70] sm:$0xff] %vm454, %v436
  %470 = vst.msk [vmem:[#allocation2 + $0x78] sm:$0xff] %vm454, %v437
  %471 = vst.msk [vmem:[#allocation2 + $0x80] sm:$0xff] %vm454, %v438
  %472 = vst.msk [vmem:[#allocation2 + $0x88] sm:$0xff] %vm454, %v439
  %473 = vst.msk [vmem:[#allocation2 + $0x90] sm:$0xff] %vm454, %v440
  %474 = vst.msk [vmem:[#allocation2 + $0x98] sm:$0xff] %vm454, %v441
  %475 = vst.msk [vmem:[#allocation2 + $0xa0] sm:$0xff] %vm454, %v442
  %476 = vst.msk [vmem:[#allocation2 + $0xa8] sm:$0xff] %vm454, %v443
  %477 = vst.msk [vmem:[#allocation2 + $0xb0] sm:$0xff] %vm454, %v444
  %478 = vst.msk [vmem:[#allocation2 + $0xb8] sm:$0xff] %vm454, %v445
  %479 = vst.msk [vmem:[#allocation2 + $0xc0] sm:$0xff] %vm454, %v446
  %480 = vst.msk [vmem:[#allocation2 + $0xc8] sm:$0xff] %vm454, %v447
  %481 = vst.msk [vmem:[#allocation2 + $0xd0] sm:$0xff] %vm454, %v448
  %482 = vst.msk [vmem:[#allocation2 + $0xd8] sm:$0xff] %vm454, %v449
  %483 = vst.msk [vmem:[#allocation2 + $0xe0] sm:$0xff] %vm454, %v450
  %484 = vst.msk [vmem:[#allocation2 + $0xe8] sm:$0xff] %vm454, %v451
  %485 = vst.msk [vmem:[#allocation2 + $0xf0] sm:$0xff] %vm454, %v452
  %486 = vst.msk [vmem:[#allocation2 + $0xf8] sm:$0xff] %vm454, %v453
  // Predicated region
  $region18: #{attention_forward.3} parent=0 // pred_check
    %p487 = pneg %p15
  $region19: #{attention_forward.3} parent=0 // pred_check_branch
    %489 = sbr.rel (%p487) target = $region21
  $region20: #{attention_forward.3} parent=0 // pred_region
    %v490 = vld [vmem:[#allocation2] sm:$0xff]
    %v491 = vld [vmem:[#allocation2 + $0x8] sm:$0xff]
    %v492 = vld [vmem:[#allocation2 + $0x10] sm:$0xff]
    %v493 = vld [vmem:[#allocation2 + $0x18] sm:$0xff]
    %v494 = vld [vmem:[#allocation2 + $0x20] sm:$0xff]
    %v495 = vld [vmem:[#allocation2 + $0x28] sm:$0xff]
    %v496 = vld [vmem:[#allocation2 + $0x30] sm:$0xff]
    %v497 = vld [vmem:[#allocation2 + $0x38] sm:$0xff]
    %v498 = vld [vmem:[#allocation2 + $0x40] sm:$0xff]
    %v499 = vld [vmem:[#allocation2 + $0x48] sm:$0xff]
    %v500 = vld [vmem:[#allocation2 + $0x50] sm:$0xff]
    %v501 = vld [vmem:[#allocation2 + $0x58] sm:$0xff]
    %v502 = vld [vmem:[#allocation2 + $0x60] sm:$0xff]
    %v503 = vld [vmem:[#allocation2 + $0x68] sm:$0xff]
    %v504 = vld [vmem:[#allocation2 + $0x70] sm:$0xff]
    %v505 = vld [vmem:[#allocation2 + $0x78] sm:$0xff]
    %v506 = vld [vmem:[#allocation2 + $0x80] sm:$0xff]
    %v507 = vld [vmem:[#allocation2 + $0x88] sm:$0xff]
    %v508 = vld [vmem:[#allocation2 + $0x90] sm:$0xff]
    %v509 = vld [vmem:[#allocation2 + $0x98] sm:$0xff]
    %v510 = vld [vmem:[#allocation2 + $0xa0] sm:$0xff]
    %v511 = vld [vmem:[#allocation2 + $0xa8] sm:$0xff]
    %v512 = vld [vmem:[#allocation2 + $0xb0] sm:$0xff]
    %v513 = vld [vmem:[#allocation2 + $0xb8] sm:$0xff]
    %v514 = vld [vmem:[#allocation2 + $0xc0] sm:$0xff]
    %v515 = vld [vmem:[#allocation2 + $0xc8] sm:$0xff]
    %v516 = vld [vmem:[#allocation2 + $0xd0] sm:$0xff]
    %v517 = vld [vmem:[#allocation2 + $0xd8] sm:$0xff]
    %v518 = vld [vmem:[#allocation2 + $0xe0] sm:$0xff]
    %v519 = vld [vmem:[#allocation2 + $0xe8] sm:$0xff]
    %v520 = vld [vmem:[#allocation2 + $0xf0] sm:$0xff]
    %v521 = vld [vmem:[#allocation2 + $0xf8] sm:$0xff]
    %v522 = vld [vmem:[%s2] sm:$0x1]
    %v524 = vlaneseq
    %v525 = vshrl.u32 %v524, 7
    %v526 = vsub.s32 0, %v525
    %v527 = vrot.slane %v522, %v526
    %v529 = vadd.f32 %v490, %v527
    %v530 = vadd.f32 %v491, %v527
    %v531 = vadd.f32 %v492, %v527
    %v532 = vadd.f32 %v493, %v527
    %v533 = vadd.f32 %v494, %v527
    %v534 = vadd.f32 %v495, %v527
    %v535 = vadd.f32 %v496, %v527
    %v536 = vadd.f32 %v497, %v527
    %v537 = vadd.f32 %v498, %v527
    %v538 = vadd.f32 %v499, %v527
    %v539 = vadd.f32 %v500, %v527
    %v540 = vadd.f32 %v501, %v527
    %v541 = vadd.f32 %v502, %v527
    %v542 = vadd.f32 %v503, %v527
    %v543 = vadd.f32 %v504, %v527
    %v544 = vadd.f32 %v505, %v527
    %v545 = vadd.f32 %v506, %v527
    %v546 = vadd.f32 %v507, %v527
    %v547 = vadd.f32 %v508, %v527
    %v548 = vadd.f32 %v509, %v527
    %v549 = vadd.f32 %v510, %v527
    %v550 = vadd.f32 %v511, %v527
    %v551 = vadd.f32 %v512, %v527
    %v552 = vadd.f32 %v513, %v527
    %v553 = vadd.f32 %v514, %v527
    %v554 = vadd.f32 %v515, %v527
    %v555 = vadd.f32 %v516, %v527
    %v556 = vadd.f32 %v517, %v527
    %v557 = vadd.f32 %v518, %v527
    %v558 = vadd.f32 %v519, %v527
    %v559 = vadd.f32 %v520, %v527
    %v560 = vadd.f32 %v521, %v527
    %v561 = vpack.c.bf16 %v530, %v529
    %v562 = vpack.c.bf16 %v532, %v531
    %v563 = vpack.c.bf16 %v534, %v533
    %v564 = vpack.c.bf16 %v536, %v535
    %v565 = vpack.c.bf16 %v538, %v537
    %v566 = vpack.c.bf16 %v540, %v539
    %v567 = vpack.c.bf16 %v542, %v541
    %v568 = vpack.c.bf16 %v544, %v543
    %v569 = vpack.c.bf16 %v546, %v545
    %v570 = vpack.c.bf16 %v548, %v547
    %v571 = vpack.c.bf16 %v550, %v549
    %v572 = vpack.c.bf16 %v552, %v551
    %v573 = vpack.c.bf16 %v554, %v553
    %v574 = vpack.c.bf16 %v556, %v555
    %v575 = vpack.c.bf16 %v558, %v557
    %v576 = vpack.c.bf16 %v560, %v559
    %v593 = vunpack.c.l.b16 %v561
    %v594 = vunpack.c.h.b16 %v561
    %v595 = vunpack.c.l.b16 %v562
    %v596 = vunpack.c.h.b16 %v562
    %v597 = vunpack.c.l.b16 %v563
    %v598 = vunpack.c.h.b16 %v563
    %v599 = vunpack.c.l.b16 %v564
    %v600 = vunpack.c.h.b16 %v564
    %v601 = vunpack.c.l.b16 %v565
    %v602 = vunpack.c.h.b16 %v565
    %v603 = vunpack.c.l.b16 %v566
    %v604 = vunpack.c.h.b16 %v566
    %v605 = vunpack.c.l.b16 %v567
    %v606 = vunpack.c.h.b16 %v567
    %v607 = vunpack.c.l.b16 %v568
    %v608 = vunpack.c.h.b16 %v568
    %v609 = vunpack.c.l.b16 %v569
    %v610 = vunpack.c.h.b16 %v569
    %v611 = vunpack.c.l.b16 %v570
    %v612 = vunpack.c.h.b16 %v570
    %v613 = vunpack.c.l.b16 %v571
    %v614 = vunpack.c.h.b16 %v571
    %v615 = vunpack.c.l.b16 %v572
    %v616 = vunpack.c.h.b16 %v572
    %v617 = vunpack.c.l.b16 %v573
    %v618 = vunpack.c.h.b16 %v573
    %v619 = vunpack.c.l.b16 %v574
    %v620 = vunpack.c.h.b16 %v574
    %v621 = vunpack.c.l.b16 %v575
    %v622 = vunpack.c.h.b16 %v575
    %v623 = vunpack.c.l.b16 %v576
    %v624 = vunpack.c.h.b16 %v576
    %v625 = vpack.c.b16 %v593, %v593
    %v626 = vpack.c.b16 %v594, %v594
    %v627 = vpack.c.b16 %v595, %v595
    %v628 = vpack.c.b16 %v596, %v596
    %v629 = vpack.c.b16 %v597, %v597
    %v630 = vpack.c.b16 %v598, %v598
    %v631 = vpack.c.b16 %v599, %v599
    %v632 = vpack.c.b16 %v600, %v600
    %v633 = vpack.c.b16 %v601, %v601
    %v634 = vpack.c.b16 %v602, %v602
    %v635 = vpack.c.b16 %v603, %v603
    %v636 = vpack.c.b16 %v604, %v604
    %v637 = vpack.c.b16 %v605, %v605
    %v638 = vpack.c.b16 %v606, %v606
    %v639 = vpack.c.b16 %v607, %v607
    %v640 = vpack.c.b16 %v608, %v608
    %v641 = vpack.c.b16 %v609, %v609
    %v642 = vpack.c.b16 %v610, %v610
    %v643 = vpack.c.b16 %v611, %v611
    %v644 = vpack.c.b16 %v612, %v612
    %v645 = vpack.c.b16 %v613, %v613
    %v646 = vpack.c.b16 %v614, %v614
    %v647 = vpack.c.b16 %v615, %v615
    %v648 = vpack.c.b16 %v616, %v616
    %v649 = vpack.c.b16 %v617, %v617
    %v650 = vpack.c.b16 %v618, %v618
    %v651 = vpack.c.b16 %v619, %v619
    %v652 = vpack.c.b16 %v620, %v620
    %v653 = vpack.c.b16 %v621, %v621
    %v654 = vpack.c.b16 %v622, %v622
    %v655 = vpack.c.b16 %v623, %v623
    %v656 = vpack.c.b16 %v624, %v624
    %vm689 = vcmask 781312
    %690 = vst.msk [vmem:[%s3] sm:$0xf] %vm689, %v625
    %691 = vst.msk [vmem:[%s3 + $0x4] sm:$0xf] %vm689, %v626
    %692 = vst.msk [vmem:[%s3 + $0x8] sm:$0xf] %vm689, %v627
    %693 = vst.msk [vmem:[%s3 + $0xc] sm:$0xf] %vm689, %v628
    %694 = vst.msk [vmem:[%s3 + $0x10] sm:$0xf] %vm689, %v629
    %695 = vst.msk [vmem:[%s3 + $0x14] sm:$0xf] %vm689, %v630
    %696 = vst.msk [vmem:[%s3 + $0x18] sm:$0xf] %vm689, %v631
    %697 = vst.msk [vmem:[%s3 + $0x1c] sm:$0xf] %vm689, %v632
    %698 = vst.msk [vmem:[%s3 + $0x20] sm:$0xf] %vm689, %v633
    %699 = vst.msk [vmem:[%s3 + $0x24] sm:$0xf] %vm689, %v634
    %700 = vst.msk [vmem:[%s3 + $0x28] sm:$0xf] %vm689, %v635
    %701 = vst.msk [vmem:[%s3 + $0x2c] sm:$0xf] %vm689, %v636
    %702 = vst.msk [vmem:[%s3 + $0x30] sm:$0xf] %vm689, %v637
    %703 = vst.msk [vmem:[%s3 + $0x34] sm:$0xf] %vm689, %v638
    %704 = vst.msk [vmem:[%s3 + $0x38] sm:$0xf] %vm689, %v639
    %705 = vst.msk [vmem:[%s3 + $0x3c] sm:$0xf] %vm689, %v640
    %706 = vst.msk [vmem:[%s3 + $0x40] sm:$0xf] %vm689, %v641
    %707 = vst.msk [vmem:[%s3 + $0x44] sm:$0xf] %vm689, %v642
    %708 = vst.msk [vmem:[%s3 + $0x48] sm:$0xf] %vm689, %v643
    %709 = vst.msk [vmem:[%s3 + $0x4c] sm:$0xf] %vm689, %v644
    %710 = vst.msk [vmem:[%s3 + $0x50] sm:$0xf] %vm689, %v645
    %711 = vst.msk [vmem:[%s3 + $0x54] sm:$0xf] %vm689, %v646
    %712 = vst.msk [vmem:[%s3 + $0x58] sm:$0xf] %vm689, %v647
    %713 = vst.msk [vmem:[%s3 + $0x5c] sm:$0xf] %vm689, %v648
    %714 = vst.msk [vmem:[%s3 + $0x60] sm:$0xf] %vm689, %v649
    %715 = vst.msk [vmem:[%s3 + $0x64] sm:$0xf] %vm689, %v650
    %716 = vst.msk [vmem:[%s3 + $0x68] sm:$0xf] %vm689, %v651
    %717 = vst.msk [vmem:[%s3 + $0x6c] sm:$0xf] %vm689, %v652
    %718 = vst.msk [vmem:[%s3 + $0x70] sm:$0xf] %vm689, %v653
    %719 = vst.msk [vmem:[%s3 + $0x74] sm:$0xf] %vm689, %v654
    %720 = vst.msk [vmem:[%s3 + $0x78] sm:$0xf] %vm689, %v655
    %721 = vst.msk [vmem:[%s3 + $0x7c] sm:$0xf] %vm689, %v656
  $region21: #{attention_forward.3} parent=0 // pred_fallthru
    _
  // Predicated region
  $region22: #{attention_forward.3} parent=0 // pred_check
    _
  $region23: #{attention_forward.3} parent=0 // pred_check_branch
    %723 = sbr.rel (0) target = $region25
  $region24: #{attention_forward.3} parent=0 // pred_region
    _
  $region25: #{attention_forward.3} parent=0 // pred_fallthru
    _
  // Predicated region
  $region26: #{attention_forward.3} parent=0 // pred_check
    _
  $region27: #{attention_forward.3} parent=0 // pred_check_branch
    %725 = sbr.rel (0) target = $region29
  $region28: #{attention_forward.3} parent=0 // pred_region
    _
  $region29: #{attention_forward.3} parent=0 // pred_fallthru
    _

// kernel: attention_forward.4
$region0: #{attention_forward.4}
  #allocation0 [shape = 'u32[]', space=smem, size = 0x4, offset = 0x4, fixed_abs, tag = 'smem constant byte address 0x4 - core index']
  #allocation1 [shape = 'u32[144,128]{1,0:T(1,128)}', space=vmem, size = 0x12000, scoped, tag = 'internal scratch']
  #allocation2 [shape = 'f32[128,32]{1,0:T(8,128)}', space=vmem, size = 0x10000, scoped, tag = 'scratch operand']
  %s0 = inlined_call_operand.vmem [shape: bf16[2,128,32], index: 0, kind: input, shape index: {}]
  %s1 = inlined_call_operand.vmem [shape: bf16[2,128,32], index: 1, kind: input, shape index: {}]
  %s2 = inlined_call_operand.vmem [shape: bf16[2,128,32], index: 2, kind: input, shape index: {}]
  %s3 = inlined_call_operand.vmem [shape: bf16[2,128,32], index: 3, kind: output, shape index: {}]
  %s4 = sld [smem:[#allocation0]]
  $region45: #{attention_forward.4} parent=0
    _
  %s6 = ssub.s32 1, %s4
  %s7 = scalar_select 0, %s6, %s4
  loop: start=0, step=1, limit=4
  $region2: #{attention_forward.4} parent=0 // loop_pre_header
    _
  $region3: #{attention_forward.4} parent=0 // loop_header
    %s9 = sphi 0, %s13
    %p10 = scmp.ge.s32.totalorder %s9, 4
    %s16 = sphi 0, %s28
    %s17 = sphi 0, %s24
    %s18 = sphi 0, %s16
    %s19 = sphi 0, %s17
    %s20 = sphi 0, %s18
    %s21 = sphi 0, %s19
    %s33 = sphi 0, %s35
    %s36 = sphi 0, %s33
    %s37 = sphi 0, %s36
    %s53 = sphi 0, %s37
    %s59 = sphi 0, %s61
    %s62 = sphi 0, %s59
    %s63 = sphi 0, %s62
    %s79 = sphi 0, %s63
    %s85 = sphi 0, %s87
    %s88 = sphi 0, %s85
    %s89 = sphi 0, %s88
    %s105 = sphi 0, %s89
    %s113 = sphi 0, %s115
    %s116 = sphi 0, %s113
    %s117 = sphi 0, %s116
    %s133 = sphi 0, %s117
  $region4: #{attention_forward.4} parent=0 // loop_header_branch
    %12 = sbr.rel (%p10) target = $region8
  $region5: #{attention_forward.4} parent=0 // loop_body
    %s14 = ssub.s32 %s9, 1
    %s15 = ssub.s32 %s9, 2
    %s22 = sadd.s32 1, %s17
    %p23 = scmp.ge.s32.totalorder %s22, 1
    %s24 = scalar_select %p23, 0, %s22
    %s25 = sadd.s32 1, %s16
    %s26 = scalar_select %p23, %s25, %s16
    %p27 = scmp.ge.s32.totalorder %s26, 2
    %s28 = scalar_select %p27, 0, %s26
    %s29 = ssub.s32 %s16, %s28
    %s30 = ssub.s32 %s17, %s24
    %s31 = sor.u32 %s29, %s30
    %p32 = scmp.eq.s32.totalorder %s31, 0
    %s34 = sadd.s32 %s33, 1
    %s35 = scalar_select %p32, %s33, %s34
    %p38 = pneg %p32
    %p39 = scmp.eq.s32.totalorder %s9, 1
    %p40 = por %p38, %p39
    %p41 = scmp.ne.s32.totalorder %s33, %s36
    %p42 = scmp.eq.s32.totalorder %s9, 0
    %p43 = por %p41, %p42
    %p44 = scmp.ne.s32.totalorder %s33, %s36
    %p45 = scmp.eq.s32.totalorder %s14, 1
    %p46 = por %p44, %p45
    %p47 = scmp.ne.s32.totalorder %s36, %s37
    %p48 = scmp.eq.s32.totalorder %s14, 0
    %p49 = por %p47, %p48
    %p50 = scmp.ne.s32.totalorder %s36, %s37
    %p51 = scmp.eq.s32.totalorder %s15, 1
    %p52 = por %p50, %p51
    %p54 = scmp.ne.s32.totalorder %s37, %s53
    %p55 = scmp.eq.s32.totalorder %s15, 0
    %p56 = por %p54, %p55
    %s57 = ssub.s32 %s16, %s28
    %p58 = scmp.eq.s32.totalorder %s57, 0
    %s60 = sadd.s32 %s59, 1
    %s61 = scalar_select %p58, %s59, %s60
    %p64 = pneg %p58
    %p65 = scmp.eq.s32.totalorder %s9, 1
    %p66 = por %p64, %p65
    %p67 = scmp.ne.s32.totalorder %s59, %s62
    %p68 = scmp.eq.s32.totalorder %s9, 0
    %p69 = por %p67, %p68
    %p70 = scmp.ne.s32.totalorder %s59, %s62
    %p71 = scmp.eq.s32.totalorder %s14, 1
    %p72 = por %p70, %p71
    %p73 = scmp.ne.s32.totalorder %s62, %s63
    %p74 = scmp.eq.s32.totalorder %s14, 0
    %p75 = por %p73, %p74
    %p76 = scmp.ne.s32.totalorder %s62, %s63
    %p77 = scmp.eq.s32.totalorder %s15, 1
    %p78 = por %p76, %p77
    %p80 = scmp.ne.s32.totalorder %s63, %s79
    %p81 = scmp.eq.s32.totalorder %s15, 0
    %p82 = por %p80, %p81
    %s83 = ssub.s32 %s16, %s28
    %p84 = scmp.eq.s32.totalorder %s83, 0
    %s86 = sadd.s32 %s85, 1
    %s87 = scalar_select %p84, %s85, %s86
    %p90 = pneg %p84
    %p91 = scmp.eq.s32.totalorder %s9, 1
    %p92 = por %p90, %p91
    %p93 = scmp.ne.s32.totalorder %s85, %s88
    %p94 = scmp.eq.s32.totalorder %s9, 0
    %p95 = por %p93, %p94
    %p96 = scmp.ne.s32.totalorder %s85, %s88
    %p97 = scmp.eq.s32.totalorder %s14, 1
    %p98 = por %p96, %p97
    %p99 = scmp.ne.s32.totalorder %s88, %s89
    %p100 = scmp.eq.s32.totalorder %s14, 0
    %p101 = por %p99, %p100
    %p102 = scmp.ne.s32.totalorder %s88, %s89
    %p103 = scmp.eq.s32.totalorder %s15, 1
    %p104 = por %p102, %p103
    %p106 = scmp.ne.s32.totalorder %s89, %s105
    %p107 = scmp.eq.s32.totalorder %s15, 0
    %p108 = por %p106, %p107
    %s109 = ssub.s32 %s16, %s28
    %s110 = ssub.s32 %s17, %s24
    %s111 = sor.u32 %s109, %s110
    %p112 = scmp.eq.s32.totalorder %s111, 0
    %s114 = sadd.s32 %s113, 1
    %s115 = scalar_select %p112, %s113, %s114
    %p118 = pneg %p112
    %p119 = scmp.eq.s32.totalorder %s9, 1
    %p120 = por %p118, %p119
    %p121 = scmp.ne.s32.totalorder %s113, %s116
    %p122 = scmp.eq.s32.totalorder %s9, 0
    %p123 = por %p121, %p122
    %p124 = scmp.ne.s32.totalorder %s113, %s116
    %p125 = scmp.eq.s32.totalorder %s14, 1
    %p126 = por %p124, %p125
    %p127 = scmp.ne.s32.totalorder %s116, %s117
    %p128 = scmp.eq.s32.totalorder %s14, 0
    %p129 = por %p127, %p128
    %p130 = scmp.ne.s32.totalorder %s116, %s117
    %p131 = scmp.eq.s32.totalorder %s15, 1
    %p132 = por %p130, %p131
    %p134 = scmp.ne.s32.totalorder %s117, %s133
    %p135 = scmp.eq.s32.totalorder %s15, 0
    %p136 = por %p134, %p135
    %p137 = scmp.le.s32.totalorder 1, %s9
    %p138 = scmp.lt.s32.totalorder %s9, 3
    %p139 = pnand %p137, %p138
    %p140 = pneg %p139
    // Predicated region
    $region9: #{attention_forward.4} parent=5 // pred_check
      _
    $region10: #{attention_forward.4} parent=5 // pred_check_branch
      %142 = sbr.rel (%p139) target = $region12
    $region11: #{attention_forward.4} parent=5 // pred_region
      %s143 = ssub.s32 %s9, 1
    $region12: #{attention_forward.4} parent=5 // pred_fallthru
      _
    %p144 = scmp.lt.s32.totalorder %s9, 2
    // Predicated region
    $region13: #{attention_forward.4} parent=5 // pred_check
      %p145 = pneg %p144
    $region14: #{attention_forward.4} parent=5 // pred_check_branch
      %147 = sbr.rel (%p145) target = $region16
    $region15: #{attention_forward.4} parent=5 // pred_region
      // Predicated region
      $region17: #{attention_forward.4} parent=15 // pred_check
        %p148 = pneg %p43
      $region18: #{attention_forward.4} parent=15 // pred_check_branch
        %150 = sbr.rel (%p148) target = $region20
      $region19: #{attention_forward.4} parent=15 // pred_region
        %s151 = smul.u32 16, %s17
        %p152 = scmp.lt.s32.totalorder %s16, 1
        %s153 = scalar_select %p152, %s16, 1
        %p154 = scmp.lt.s32.totalorder %s151, 15
        %s155 = scalar_select %p154, %s151, 15
        %s156 = smul.addr %s153, 16
        %s157 = sadd.s32 %s155, %s156
        %s158 = smul.addr %s157, 4
        %s159 = scalar_lea.vmem %s0, %s158
        %s160 = smul.u32 16, %s17
      $region20: #{attention_forward.4} parent=15 // pred_fallthru
        _
      // Predicated region
      $region21: #{attention_forward.4} parent=15 // pred_check
        %p161 = pneg %p69
      $region22: #{attention_forward.4} parent=15 // pred_check_branch
        %163 = sbr.rel (%p161) target = $region24
      $region23: #{attention_forward.4} parent=15 // pred_region
        %p164 = scmp.lt.s32.totalorder %s16, 1
        %s165 = scalar_select %p164, %s16, 1
        %s166 = smul.addr %s165, 16
        %s167 = smul.addr %s166, 4
        %s168 = scalar_lea.vmem %s1, %s167
      $region24: #{attention_forward.4} parent=15 // pred_fallthru
        _
      // Predicated region
      $region25: #{attention_forward.4} parent=15 // pred_check
        %p169 = pneg %p95
      $region26: #{attention_forward.4} parent=15 // pred_check_branch
        %171 = sbr.rel (%p169) target = $region28
      $region27: #{attention_forward.4} parent=15 // pred_region
        %p172 = scmp.lt.s32.totalorder %s16, 1
        %s173 = scalar_select %p172, %s16, 1
        %s174 = smul.addr %s173, 16
        %s175 = smul.addr %s174, 4
        %s176 = scalar_lea.vmem %s2, %s175
      $region28: #{attention_forward.4} parent=15 // pred_fallthru
        _
    $region16: #{attention_forward.4} parent=5 // pred_fallthru
      _
    %p177 = scmp.le.s32.totalorder 1, %s9
    %p178 = scmp.lt.s32.totalorder %s9, 3
    %p179 = pnand %p177, %p178
    %p180 = pneg %p179
    // Predicated region
    $region29: #{attention_forward.4} parent=5 // pred_check
      _
    $region30: #{attention_forward.4} parent=5 // pred_check_branch
      %182 = sbr.rel (%p179) target = $region32
    $region31: #{attention_forward.4} parent=5 // pred_region
      %s183 = ssub.s32 %s9, 1
      %s184 = smul.u32 16, %s19
      %p185 = scmp.lt.s32.totalorder %s18, 1
      %s186 = scalar_select %p185, %s18, 1
      %p187 = scmp.lt.s32.totalorder %s184, 15
      %s188 = scalar_select %p187, %s184, 15
      %s189 = smul.addr %s186, 16
      %s190 = sadd.s32 %s188, %s189
      %s191 = smul.addr %s190, 4
      %s192 = scalar_lea.vmem %s0, %s191
      %p193 = pneg %p49
      %p194 = pneg %p46
      %p195 = scmp.lt.s32.totalorder %s18, 1
      %s196 = scalar_select %p195, %s18, 1
      %s197 = smul.addr %s196, 16
      %s198 = smul.addr %s197, 4
      %s199 = scalar_lea.vmem %s1, %s198
      %p200 = pneg %p75
      %p201 = pneg %p72
      %p202 = scmp.lt.s32.totalorder %s18, 1
      %s203 = scalar_select %p202, %s18, 1
      %s204 = smul.addr %s203, 16
      %s205 = smul.addr %s204, 4
      %s206 = scalar_lea.vmem %s2, %s205
      %p207 = pneg %p101
      %p208 = pneg %p98
      %p209 = pneg %p129
      %p210 = pneg %p126
      %s211 = smul.u32 16, %s19
      %p212 = scmp.lt.s32.totalorder %s18, 1
      %s213 = scalar_select %p212, %s18, 1
      %p214 = scmp.lt.s32.totalorder %s211, 15
      %s215 = scalar_select %p214, %s211, 15
      %s216 = smul.addr %s213, 16
      %s217 = sadd.s32 %s215, %s216
      %s218 = smul.addr %s217, 4
      %s219 = scalar_lea.vmem %s3, %s218
      %s220 = smul.u32 16, %s19
      %p221 = scmp.lt.s32.totalorder %s18, 1
      %s222 = scalar_select %p221, %s18, 1
      %p223 = scmp.lt.s32.totalorder %s220, 15
      %s224 = scalar_select %p223, %s220, 15
      %s225 = smul.addr %s222, 16
      %s226 = sadd.s32 %s224, %s225
      %s227 = smul.addr %s226, 4
      %s228 = scalar_lea.vmem %s0, %s227
      %s229 = smul.u32 16, %s19
      %p230 = scmp.lt.s32.totalorder %s18, 1
      %s231 = scalar_select %p230, %s18, 1
      %s232 = smul.addr %s231, 16
      %s233 = smul.addr %s232, 4
      %s234 = scalar_lea.vmem %s1, %s233
      %p235 = scmp.lt.s32.totalorder %s18, 1
      %s236 = scalar_select %p235, %s18, 1
      %s237 = smul.addr %s236, 16
      %s238 = smul.addr %s237, 4
      %s239 = scalar_lea.vmem %s2, %s238
      %s240 = smul.u32 16, %s19
      %p241 = scmp.lt.s32.totalorder %s18, 1
      %s242 = scalar_select %p241, %s18, 1
      %p243 = scmp.lt.s32.totalorder %s240, 15
      %s244 = scalar_select %p243, %s240, 15
      %s245 = smul.addr %s242, 16
      %s246 = sadd.s32 %s244, %s245
      %s247 = smul.addr %s246, 4
      %s248 = scalar_lea.vmem %s3, %s247
      %s249 = smul.u32 16, %s19
      %v251 = vld [vmem:[%s228] sm:$0xf]
      %v252 = vld [vmem:[%s228 + $0x4] sm:$0xf]
      %v253 = vld [vmem:[%s228 + $0x8] sm:$0xf]
      %v254 = vld [vmem:[%s228 + $0xc] sm:$0xf]
      %v255 = vld [vmem:[%s228 + $0x10] sm:$0xf]
      %v256 = vld [vmem:[%s228 + $0x14] sm:$0xf]
      %v257 = vld [vmem:[%s228 + $0x18] sm:$0xf]
      %v258 = vld [vmem:[%s228 + $0x1c] sm:$0xf]
      %v259 = vld [vmem:[%s228 + $0x20] sm:$0xf]
      %v260 = vld [vmem:[%s228 + $0x24] sm:$0xf]
      %v261 = vld [vmem:[%s228 + $0x28] sm:$0xf]
      %v262 = vld [vmem:[%s228 + $0x2c] sm:$0xf]
      %v263 = vld [vmem:[%s228 + $0x30] sm:$0xf]
      %v264 = vld [vmem:[%s228 + $0x34] sm:$0xf]
      %v265 = vld [vmem:[%s228 + $0x38] sm:$0xf]
      %v266 = vld [vmem:[%s228 + $0x3c] sm:$0xf]
      %v267 = vld [vmem:[%s234] sm:$0xf]
      %v268 = vld [vmem:[%s234 + $0x4] sm:$0xf]
      %v269 = vld [vmem:[%s234 + $0x8] sm:$0xf]
      %v270 = vld [vmem:[%s234 + $0xc] sm:$0xf]
      %v271 = vld [vmem:[%s234 + $0x10] sm:$0xf]
      %v272 = vld [vmem:[%s234 + $0x14] sm:$0xf]
      %v273 = vld [vmem:[%s234 + $0x18] sm:$0xf]
      %v274 = vld [vmem:[%s234 + $0x1c] sm:$0xf]
      %v275 = vld [vmem:[%s234 + $0x20] sm:$0xf]
      %v276 = vld [vmem:[%s234 + $0x24] sm:$0xf]
      %v277 = vld [vmem:[%s234 + $0x28] sm:$0xf]
      %v278 = vld [vmem:[%s234 + $0x2c] sm:$0xf]
      %v279 = vld [vmem:[%s234 + $0x30] sm:$0xf]
      %v280 = vld [vmem:[%s234 + $0x34] sm:$0xf]
      %v281 = vld [vmem:[%s234 + $0x38] sm:$0xf]
      %v282 = vld [vmem:[%s234 + $0x3c] sm:$0xf]
      %v283 = vld [vmem:[%s239] sm:$0xf]
      %v284 = vld [vmem:[%s239 + $0x4] sm:$0xf]
      %v285 = vld [vmem:[%s239 + $0x8] sm:$0xf]
      %v286 = vld [vmem:[%s239 + $0xc] sm:$0xf]
      %v287 = vld [vmem:[%s239 + $0x10] sm:$0xf]
      %v288 = vld [vmem:[%s239 + $0x14] sm:$0xf]
      %v289 = vld [vmem:[%s239 + $0x18] sm:$0xf]
      %v290 = vld [vmem:[%s239 + $0x1c] sm:$0xf]
      %v291 = vld [vmem:[%s239 + $0x20] sm:$0xf]
      %v292 = vld [vmem:[%s239 + $0x24] sm:$0xf]
      %v293 = vld [vmem:[%s239 + $0x28] sm:$0xf]
      %v294 = vld [vmem:[%s239 + $0x2c] sm:$0xf]
      %v295 = vld [vmem:[%s239 + $0x30] sm:$0xf]
      %v296 = vld [vmem:[%s239 + $0x34] sm:$0xf]
      %v297 = vld [vmem:[%s239 + $0x38] sm:$0xf]
      %v298 = vld [vmem:[%s239 + $0x3c] sm:$0xf]
      %v299 = vlaneseq
      %v300 = vand.u32 %v299, 127
      %vm301 = vcmp.lt.s32.totalorder %v300, 16
      %v318 = vunpack.c.l.b16 %v251
      %v319 = vunpack.c.l.b16 %v252
      %v320 = vunpack.c.l.b16 %v253
      %v321 = vunpack.c.l.b16 %v254
      %v322 = vunpack.c.l.b16 %v255
      %v323 = vunpack.c.l.b16 %v256
      %v324 = vunpack.c.l.b16 %v257
      %v325 = vunpack.c.l.b16 %v258
      %v326 = vunpack.c.l.b16 %v259
      %v327 = vunpack.c.l.b16 %v260
      %v328 = vunpack.c.l.b16 %v261
      %v329 = vunpack.c.l.b16 %v262
      %v330 = vunpack.c.l.b16 %v263
      %v331 = vunpack.c.l.b16 %v264
      %v332 = vunpack.c.l.b16 %v265
      %v333 = vunpack.c.l.b16 %v266
      %v334 = vpack.c.b16 %v319, %v318
      %v335 = vpack.c.b16 %v321, %v320
      %v336 = vpack.c.b16 %v323, %v322
      %v337 = vpack.c.b16 %v325, %v324
      %v338 = vpack.c.b16 %v327, %v326
      %v339 = vpack.c.b16 %v329, %v328
      %v340 = vpack.c.b16 %v331, %v330
      %v341 = vpack.c.b16 %v333, %v332
      %v358 = vunpack.c.l.b16 %v267
      %v359 = vunpack.c.l.b16 %v268
      %v360 = vunpack.c.l.b16 %v269
      %v361 = vunpack.c.l.b16 %v270
      %v362 = vunpack.c.l.b16 %v271
      %v363 = vunpack.c.l.b16 %v272
      %v364 = vunpack.c.l.b16 %v273
      %v365 = vunpack.c.l.b16 %v274
      %v366 = vunpack.c.l.b16 %v275
      %v367 = vunpack.c.l.b16 %v276
      %v368 = vunpack.c.l.b16 %v277
      %v369 = vunpack.c.l.b16 %v278
      %v370 = vunpack.c.l.b16 %v279
      %v371 = vunpack.c.l.b16 %v280
      %v372 = vunpack.c.l.b16 %v281
      %v373 = vunpack.c.l.b16 %v282
      %v374 = vpack.c.b16 %v359, %v358
      %v375 = vpack.c.b16 %v361, %v360
      %v376 = vpack.c.b16 %v363, %v362
      %v377 = vpack.c.b16 %v365, %v364
      %v378 = vpack.c.b16 %v367, %v366
      %v379 = vpack.c.b16 %v369, %v368
      %v380 = vpack.c.b16 %v371, %v370
      %v381 = vpack.c.b16 %v373, %v372
      %vm382 = vcmask 64512
      %v384 = vsel %vm382, %v334, 0
      %v387 = vsel %vm382, %v335, 0
      %v390 = vsel %vm382, %v336, 0
      %v393 = vsel %vm382, %v337, 0
      %v396 = vsel %vm382, %v338, 0
      %v399 = vsel %vm382, %v339, 0
      %v402 = vsel %vm382, %v340, 0
      %v405 = vsel %vm382, %v341, 0
      %v408 = vsel %vm382, %v374, 0
      %v411 = vsel %vm382, %v375, 0
      %v414 = vsel %vm382, %v376, 0
      %v417 = vsel %vm382, %v377, 0
      %v420 = vsel %vm382, %v378, 0
      %v423 = vsel %vm382, %v379, 0
      %v426 = vsel %vm382, %v380, 0
      %v429 = vsel %vm382, %v381, 0
      %431 = vmatprep.subr.bf16.mxu0 0
      %432 = vmatpush1.bf16.xpose.msra.mxu0 %v429
      %433 = vmatprep.subr.bf16.mxu0 0
      %434 = vmatpush1.bf16.xpose.msra.mxu0 %v426
      %435 = vmatprep.subr.bf16.mxu0 0
      %436 = vmatpush1.bf16.xpose.msra.mxu0 %v423
      %437 = vmatprep.subr.bf16.mxu0 0
      %438 = vmatpush1.bf16.xpose.msra.mxu0 %v420
      %439 = vmatprep.subr.bf16.mxu0 0
      %440 = vmatpush1.bf16.xpose.msra.mxu0 %v417
      %441 = vmatprep.subr.bf16.mxu0 0
      %442 = vmatpush1.bf16.xpose.msra.mxu0 %v414
      %443 = vmatprep.subr.bf16.mxu0 0
      %444 = vmatpush1.bf16.xpose.msra.mxu0 %v411
      %445 = vmatprep.subr.bf16.mxu0 0
      %446 = vmatpush1.bf16.xpose.msra.mxu0 %v408
      %447 = vmatprep.subr.bf16.mxu0 0
      %448 = vmatpush2.bf16.xpose.msra.mxu0 0
      %449 = vmatprep.subr.bf16.mxu0 0
      %450 = vmatpush2.bf16.xpose.msra.mxu0 0
      %451 = vmatprep.subr.bf16.mxu0 0
      %452 = vmatpush2.bf16.xpose.msra.mxu0 0
      %453 = vmatprep.subr.bf16.mxu0 0
      %454 = vmatpush2.bf16.xpose.msra.mxu0 0
      %455 = vmatprep.subr.bf16.mxu0 0
      %456 = vmatpush2.bf16.xpose.msra.mxu0 0
      %457 = vmatprep.subr.bf16.mxu0 0
      %458 = vmatpush2.bf16.xpose.msra.mxu0 0
      %459 = vmatprep.subr.bf16.mxu0 0
      %460 = vmatpush2.bf16.xpose.msra.mxu0 0
      %461 = vmatprep.subr.bf16.mxu0 0
      %462 = vmatpush2.bf16.xpose.msra.mxu0 0
      %463 = vmatprep.mubr.bf16.mxu0 0
      %464 = vmatmul.mubr.bf16.gmra.mxu0 %v384
      %v465 = vpop.f32.mrf.mxu0
      %v466 = vadd.f32 0.0, %v465
      %v467 = vpop.f32.mrf.mxu0
      %v468 = vpop.f32.mrf.mxu0
      %v469 = vadd.f32 0.0, %v468
      %v470 = vpop.f32.mrf.mxu0
      %471 = vmatprep.mubr.bf16.mxu0 0
      %472 = vmatmul.mubr.bf16.gmra.mxu0 %v387
      %v473 = vpop.f32.mrf.mxu0
      %v474 = vadd.f32 0.0, %v473
      %v475 = vpop.f32.mrf.mxu0
      %v476 = vpop.f32.mrf.mxu0
      %v477 = vadd.f32 0.0, %v476
      %v478 = vpop.f32.mrf.mxu0
      %479 = vmatprep.mubr.bf16.mxu0 0
      %480 = vmatmul.mubr.bf16.gmra.mxu0 %v390
      %v481 = vpop.f32.mrf.mxu0
      %v482 = vadd.f32 0.0, %v481
      %v483 = vpop.f32.mrf.mxu0
      %v484 = vpop.f32.mrf.mxu0
      %v485 = vadd.f32 0.0, %v484
      %v486 = vpop.f32.mrf.mxu0
      %487 = vmatprep.mubr.bf16.mxu0 0
      %488 = vmatmul.mubr.bf16.gmra.mxu0 %v393
      %v489 = vpop.f32.mrf.mxu0
      %v490 = vadd.f32 0.0, %v489
      %v491 = vpop.f32.mrf.mxu0
      %v492 = vpop.f32.mrf.mxu0
      %v493 = vadd.f32 0.0, %v492
      %v494 = vpop.f32.mrf.mxu0
      %495 = vmatprep.mubr.bf16.mxu0 0
      %496 = vmatmul.mubr.bf16.gmra.mxu0 %v396
      %v497 = vpop.f32.mrf.mxu0
      %v498 = vadd.f32 0.0, %v497
      %v499 = vpop.f32.mrf.mxu0
      %v500 = vpop.f32.mrf.mxu0
      %v501 = vadd.f32 0.0, %v500
      %v502 = vpop.f32.mrf.mxu0
      %503 = vmatprep.mubr.bf16.mxu0 0
      %504 = vmatmul.mubr.bf16.gmra.mxu0 %v399
      %v505 = vpop.f32.mrf.mxu0
      %v506 = vadd.f32 0.0, %v505
      %v507 = vpop.f32.mrf.mxu0
      %v508 = vpop.f32.mrf.mxu0
      %v509 = vadd.f32 0.0, %v508
      %v510 = vpop.f32.mrf.mxu0
      %511 = vmatprep.mubr.bf16.mxu0 0
      %512 = vmatmul.mubr.bf16.gmra.mxu0 %v402
      %v513 = vpop.f32.mrf.mxu0
      %v514 = vadd.f32 0.0, %v513
      %v515 = vpop.f32.mrf.mxu0
      %v516 = vpop.f32.mrf.mxu0
      %v517 = vadd.f32 0.0, %v516
      %v518 = vpop.f32.mrf.mxu0
      %519 = vmatprep.mubr.bf16.mxu0 0
      %520 = vmatmul.mubr.bf16.gmra.mxu0 %v405
      %v521 = vpop.f32.mrf.mxu0
      %v522 = vadd.f32 0.0, %v521
      %v523 = vpop.f32.mrf.mxu0
      %v524 = vpop.f32.mrf.mxu0
      %v525 = vadd.f32 0.0, %v524
      %v526 = vpop.f32.mrf.mxu0
      %527 = vdwg.mxu0
      %v528 = vsel %vm301, 1, 0
      %vm529 = vcmp.eq.s32.totalorder %v528, 1
      %v530 = vsel %vm529, %v466, -1e+30
      %v531 = vsel %vm529, %v469, -1e+30
      %v532 = vsel %vm529, %v474, -1e+30
      %v533 = vsel %vm529, %v477, -1e+30
      %v534 = vsel %vm529, %v482, -1e+30
      %v535 = vsel %vm529, %v485, -1e+30
      %v536 = vsel %vm529, %v490, -1e+30
      %v537 = vsel %vm529, %v493, -1e+30
      %v538 = vsel %vm529, %v498, -1e+30
      %v539 = vsel %vm529, %v501, -1e+30
      %v540 = vsel %vm529, %v506, -1e+30
      %v541 = vsel %vm529, %v509, -1e+30
      %v542 = vsel %vm529, %v514, -1e+30
      %v543 = vsel %vm529, %v517, -1e+30
      %v544 = vsel %vm529, %v522, -1e+30
      %v545 = vsel %vm529, %v525, -1e+30
      %546 = vmax.xlane.f32.xlu0 %v530
      %v547 = vpop.xlane.xlu0 %546
      %548 = vmax.xlane.f32.xlu0 %v531
      %v549 = vpop.xlane.xlu0 %548
      %550 = vmax.xlane.f32.xlu0 %v532
      %v551 = vpop.xlane.xlu0 %550
      %552 = vmax.xlane.f32.xlu0 %v533
      %v553 = vpop.xlane.xlu0 %552
      %554 = vmax.xlane.f32.xlu0 %v534
      %v555 = vpop.xlane.xlu0 %554
      %556 = vmax.xlane.f32.xlu0 %v535
      %v557 = vpop.xlane.xlu0 %556
      %558 = vmax.xlane.f32.xlu0 %v536
      %v559 = vpop.xlane.xlu0 %558
      %560 = vmax.xlane.f32.xlu0 %v537
      %v561 = vpop.xlane.xlu0 %560
      %562 = vmax.xlane.f32.xlu0 %v538
      %v563 = vpop.xlane.xlu0 %562
      %564 = vmax.xlane.f32.xlu0 %v539
      %v565 = vpop.xlane.xlu0 %564
      %566 = vmax.xlane.f32.xlu0 %v540
      %v567 = vpop.xlane.xlu0 %566
      %568 = vmax.xlane.f32.xlu0 %v541
      %v569 = vpop.xlane.xlu0 %568
      %570 = vmax.xlane.f32.xlu0 %v542
      %v571 = vpop.xlane.xlu0 %570
      %572 = vmax.xlane.f32.xlu0 %v543
      %v573 = vpop.xlane.xlu0 %572
      %574 = vmax.xlane.f32.xlu0 %v544
      %v575 = vpop.xlane.xlu0 %574
      %576 = vmax.xlane.f32.xlu0 %v545
      %v577 = vpop.xlane.xlu0 %576
      %v578 = vsub.f32 %v530, %v547
      %v579 = vsub.f32 %v531, %v549
      %v580 = vsub.f32 %v532, %v551
      %v581 = vsub.f32 %v533, %v553
      %v582 = vsub.f32 %v534, %v555
      %v583 = vsub.f32 %v535, %v557
      %v584 = vsub.f32 %v536, %v559
      %v585 = vsub.f32 %v537, %v561
      %v586 = vsub.f32 %v538, %v563
      %v587 = vsub.f32 %v539, %v565
      %v588 = vsub.f32 %v540, %v567
      %v589 = vsub.f32 %v541, %v569
      %v590 = vsub.f32 %v542, %v571
      %v591 = vsub.f32 %v543, %v573
      %v592 = vsub.f32 %v544, %v575
      %v593 = vsub.f32 %v545, %v577
      %v594 = vmul.f32 %v578, 1.442695
      %v595 = vpow.pop %v594
      %v596 = vmul.f32 %v579, 1.442695
      %v597 = vpow.pop %v596
      %v598 = vmul.f32 %v580, 1.442695
      %v599 = vpow.pop %v598
      %v600 = vmul.f32 %v581, 1.442695
      %v601 = vpow.pop %v600
      %v602 = vmul.f32 %v582, 1.442695
      %v603 = vpow.pop %v602
      %v604 = vmul.f32 %v583, 1.442695
      %v605 = vpow.pop %v604
      %v606 = vmul.f32 %v584, 1.442695
      %v607 = vpow.pop %v606
      %v608 = vmul.f32 %v585, 1.442695
      %v609 = vpow.pop %v608
      %v610 = vmul.f32 %v586, 1.442695
      %v611 = vpow.pop %v610
      %v612 = vmul.f32 %v587, 1.442695
      %v613 = vpow.pop %v612
      %v614 = vmul.f32 %v588, 1.442695
      %v615 = vpow.pop %v614
      %v616 = vmul.f32 %v589, 1.442695
      %v617 = vpow.pop %v616
      %v618 = vmul.f32 %v590, 1.442695
      %v619 = vpow.pop %v618
      %v620 = vmul.f32 %v591, 1.442695
      %v621 = vpow.pop %v620
      %v622 = vmul.f32 %v592, 1.442695
      %v623 = vpow.pop %v622
      %v624 = vmul.f32 %v593, 1.442695
      %v625 = vpow.pop %v624
      %626 = vadd.xlane.f32.xlu0 %v595
      %v627 = vpop.xlane.xlu0 %626
      %628 = vadd.xlane.f32.xlu0 %v597
      %v629 = vpop.xlane.xlu0 %628
      %630 = vadd.xlane.f32.xlu0 %v599
      %v631 = vpop.xlane.xlu0 %630
      %632 = vadd.xlane.f32.xlu0 %v601
      %v633 = vpop.xlane.xlu0 %632
      %634 = vadd.xlane.f32.xlu0 %v603
      %v635 = vpop.xlane.xlu0 %634
      %636 = vadd.xlane.f32.xlu0 %v605
      %v637 = vpop.xlane.xlu0 %636
      %638 = vadd.xlane.f32.xlu0 %v607
      %v639 = vpop.xlane.xlu0 %638
      %640 = vadd.xlane.f32.xlu0 %v609
      %v641 = vpop.xlane.xlu0 %640
      %642 = vadd.xlane.f32.xlu0 %v611
      %v643 = vpop.xlane.xlu0 %642
      %644 = vadd.xlane.f32.xlu0 %v613
      %v645 = vpop.xlane.xlu0 %644
      %646 = vadd.xlane.f32.xlu0 %v615
      %v647 = vpop.xlane.xlu0 %646
      %648 = vadd.xlane.f32.xlu0 %v617
      %v649 = vpop.xlane.xlu0 %648
      %650 = vadd.xlane.f32.xlu0 %v619
      %v651 = vpop.xlane.xlu0 %650
      %652 = vadd.xlane.f32.xlu0 %v621
      %v653 = vpop.xlane.xlu0 %652
      %654 = vadd.xlane.f32.xlu0 %v623
      %v655 = vpop.xlane.xlu0 %654
      %656 = vadd.xlane.f32.xlu0 %v625
      %v657 = vpop.xlane.xlu0 %656
      %v658 = vpack.c.bf16 %v597, %v595
      %v659 = vpack.c.bf16 %v601, %v599
      %v660 = vpack.c.bf16 %v605, %v603
      %v661 = vpack.c.bf16 %v609, %v607
      %v662 = vpack.c.bf16 %v613, %v611
      %v663 = vpack.c.bf16 %v617, %v615
      %v664 = vpack.c.bf16 %v621, %v619
      %v665 = vpack.c.bf16 %v625, %v623
      %v682 = vunpack.c.l.b16 %v283
      %v683 = vunpack.c.l.b16 %v284
      %v684 = vunpack.c.l.b16 %v285
      %v685 = vunpack.c.l.b16 %v286
      %v686 = vunpack.c.l.b16 %v287
      %v687 = vunpack.c.l.b16 %v288
      %v688 = vunpack.c.l.b16 %v289
      %v689 = vunpack.c.l.b16 %v290
      %v690 = vunpack.c.l.b16 %v291
      %v691 = vunpack.c.l.b16 %v292
      %v692 = vunpack.c.l.b16 %v293
      %v693 = vunpack.c.l.b16 %v294
      %v694 = vunpack.c.l.b16 %v295
      %v695 = vunpack.c.l.b16 %v296
      %v696 = vunpack.c.l.b16 %v297
      %v697 = vunpack.c.l.b16 %v298
      %v698 = vpack.c.b16 %v683, %v682
      %v699 = vpack.c.b16 %v685, %v684
      %v700 = vpack.c.b16 %v687, %v686
      %v701 = vpack.c.b16 %v689, %v688
      %v702 = vpack.c.b16 %v691, %v690
      %v703 = vpack.c.b16 %v693, %v692
      %v704 = vpack.c.b16 %v695, %v694
      %v705 = vpack.c.b16 %v697, %v696
      %714 = vmatprep.subr.bf16.mxu0 0
      %715 = vmatpush1.bf16.msra.mxu0 %v705
      %716 = vmatprep.subr.bf16.mxu0 0
      %717 = vmatpush1.bf16.msra.mxu0 %v704
      %718 = vmatprep.subr.bf16.mxu0 0
      %719 = vmatpush1.bf16.msra.mxu0 %v703
      %720 = vmatprep.subr.bf16.mxu0 0
      %721 = vmatpush1.bf16.msra.mxu0 %v702
      %722 = vmatprep.subr.bf16.mxu0 0
      %723 = vmatpush1.bf16.msra.mxu0 %v701
      %724 = vmatprep.subr.bf16.mxu0 0
      %725 = vmatpush1.bf16.msra.mxu0 %v700
      %726 = vmatprep.subr.bf16.mxu0 0
      %727 = vmatpush1.bf16.msra.mxu0 %v699
      %728 = vmatprep.subr.bf16.mxu0 0
      %729 = vmatpush1.bf16.msra.mxu0 %v698
      %730 = vmatprep.subr.bf16.mxu0 0
      %731 = vmatpush2.bf16.msra.mxu0 0
      %732 = vmatprep.subr.bf16.mxu0 0
      %733 = vmatpush2.bf16.msra.mxu0 0
      %734 = vmatprep.subr.bf16.mxu0 0
      %735 = vmatpush2.bf16.msra.mxu0 0
      %736 = vmatprep.subr.bf16.mxu0 0
      %737 = vmatpush2.bf16.msra.mxu0 0
      %738 = vmatprep.subr.bf16.mxu0 0
      %739 = vmatpush2.bf16.msra.mxu0 0
      %740 = vmatprep.subr.bf16.mxu0 0
      %741 = vmatpush2.bf16.msra.mxu0 0
      %742 = vmatprep.subr.bf16.mxu0 0
      %743 = vmatpush2.bf16.msra.mxu0 0
      %744 = vmatprep.subr.bf16.mxu0 0
      %745 = vmatpush2.bf16.msra.mxu0 0
      %746 = vmatprep.mubr.bf16.mxu0 0
      %747 = vmatmul.mubr.bf16.gmra.mxu0 %v658
      %v748 = vpop.f32.mrf.mxu0
      %v749 = vadd.f32 0.0, %v748
      %v750 = vpop.f32.mrf.mxu0
      %v751 = vpop.f32.mrf.mxu0
      %v752 = vadd.f32 0.0, %v751
      %v753 = vpop.f32.mrf.mxu0
      %754 = vmatprep.mubr.bf16.mxu0 0
      %755 = vmatmul.mubr.bf16.gmra.mxu0 %v659
      %v756 = vpop.f32.mrf.mxu0
      %v757 = vadd.f32 0.0, %v756
      %v758 = vpop.f32.mrf.mxu0
      %v759 = vpop.f32.mrf.mxu0
      %v760 = vadd.f32 0.0, %v759
      %v761 = vpop.f32.mrf.mxu0
      %762 = vmatprep.mubr.bf16.mxu0 0
      %763 = vmatmul.mubr.bf16.gmra.mxu0 %v660
      %v764 = vpop.f32.mrf.mxu0
      %v765 = vadd.f32 0.0, %v764
      %v766 = vpop.f32.mrf.mxu0
      %v767 = vpop.f32.mrf.mxu0
      %v768 = vadd.f32 0.0, %v767
      %v769 = vpop.f32.mrf.mxu0
      %770 = vmatprep.mubr.bf16.mxu0 0
      %771 = vmatmul.mubr.bf16.gmra.mxu0 %v661
      %v772 = vpop.f32.mrf.mxu0
      %v773 = vadd.f32 0.0, %v772
      %v774 = vpop.f32.mrf.mxu0
      %v775 = vpop.f32.mrf.mxu0
      %v776 = vadd.f32 0.0, %v775
      %v777 = vpop.f32.mrf.mxu0
      %778 = vmatprep.mubr.bf16.mxu0 0
      %779 = vmatmul.mubr.bf16.gmra.mxu0 %v662
      %v780 = vpop.f32.mrf.mxu0
      %v781 = vadd.f32 0.0, %v780
      %v782 = vpop.f32.mrf.mxu0
      %v783 = vpop.f32.mrf.mxu0
      %v784 = vadd.f32 0.0, %v783
      %v785 = vpop.f32.mrf.mxu0
      %786 = vmatprep.mubr.bf16.mxu0 0
      %787 = vmatmul.mubr.bf16.gmra.mxu0 %v663
      %v788 = vpop.f32.mrf.mxu0
      %v789 = vadd.f32 0.0, %v788
      %v790 = vpop.f32.mrf.mxu0
      %v791 = vpop.f32.mrf.mxu0
      %v792 = vadd.f32 0.0, %v791
      %v793 = vpop.f32.mrf.mxu0
      %794 = vmatprep.mubr.bf16.mxu0 0
      %795 = vmatmul.mubr.bf16.gmra.mxu0 %v664
      %v796 = vpop.f32.mrf.mxu0
      %v797 = vadd.f32 0.0, %v796
      %v798 = vpop.f32.mrf.mxu0
      %v799 = vpop.f32.mrf.mxu0
      %v800 = vadd.f32 0.0, %v799
      %v801 = vpop.f32.mrf.mxu0
      %802 = vmatprep.mubr.bf16.mxu0 0
      %803 = vmatmul.mubr.bf16.gmra.mxu0 %v665
      %v804 = vpop.f32.mrf.mxu0
      %v805 = vadd.f32 0.0, %v804
      %v806 = vpop.f32.mrf.mxu0
      %v807 = vpop.f32.mrf.mxu0
      %v808 = vadd.f32 0.0, %v807
      %v809 = vpop.f32.mrf.mxu0
      %810 = vdwg.mxu0
      %v811 = vrcp.pop %v627
      %v812 = vrcp.pop %v629
      %v813 = vrcp.pop %v631
      %v814 = vrcp.pop %v633
      %v815 = vrcp.pop %v635
      %v816 = vrcp.pop %v637
      %v817 = vrcp.pop %v639
      %v818 = vrcp.pop %v641
      %v819 = vrcp.pop %v643
      %v820 = vrcp.pop %v645
      %v821 = vrcp.pop %v647
      %v822 = vrcp.pop %v649
      %v823 = vrcp.pop %v651
      %v824 = vrcp.pop %v653
      %v825 = vrcp.pop %v655
      %v826 = vrcp.pop %v657
      %v827 = vmul.f32 %v749, %v811
      %v828 = vmul.f32 %v752, %v812
      %v829 = vmul.f32 %v757, %v813
      %v830 = vmul.f32 %v760, %v814
      %v831 = vmul.f32 %v765, %v815
      %v832 = vmul.f32 %v768, %v816
      %v833 = vmul.f32 %v773, %v817
      %v834 = vmul.f32 %v776, %v818
      %v835 = vmul.f32 %v781, %v819
      %v836 = vmul.f32 %v784, %v820
      %v837 = vmul.f32 %v789, %v821
      %v838 = vmul.f32 %v792, %v822
      %v839 = vmul.f32 %v797, %v823
      %v840 = vmul.f32 %v800, %v824
      %v841 = vmul.f32 %v805, %v825
      %v842 = vmul.f32 %v808, %v826
      %843 = vst.msk [vmem:[#allocation2] sm:$0xff] %vm382, %v827
      %844 = vst.msk [vmem:[#allocation2 + $0x8] sm:$0xff] %vm382, %v828
      %845 = vst.msk [vmem:[#allocation2 + $0x10] sm:$0xff] %vm382, %v829
      %846 = vst.msk [vmem:[#allocation2 + $0x18] sm:$0xff] %vm382, %v830
      %847 = vst.msk [vmem:[#allocation2 + $0x20] sm:$0xff] %vm382, %v831
      %848 = vst.msk [vmem:[#allocation2 + $0x28] sm:$0xff] %vm382, %v832
      %849 = vst.msk [vmem:[#allocation2 + $0x30] sm:$0xff] %vm382, %v833
      %850 = vst.msk [vmem:[#allocation2 + $0x38] sm:$0xff] %vm382, %v834
      %851 = vst.msk [vmem:[#allocation2 + $0x40] sm:$0xff] %vm382, %v835
      %852 = vst.msk [vmem:[#allocation2 + $0x48] sm:$0xff] %vm382, %v836
      %853 = vst.msk [vmem:[#allocation2 + $0x50] sm:$0xff] %vm382, %v837
      %854 = vst.msk [vmem:[#allocation2 + $0x58] sm:$0xff] %vm382, %v838
      %855 = vst.msk [vmem:[#allocation2 + $0x60] sm:$0xff] %vm382, %v839
      %856 = vst.msk [vmem:[#allocation2 + $0x68] sm:$0xff] %vm382, %v840
      %857 = vst.msk [vmem:[#allocation2 + $0x70] sm:$0xff] %vm382, %v841
      %858 = vst.msk [vmem:[#allocation2 + $0x78] sm:$0xff] %vm382, %v842
      %859 = vrot.lane.b32.xlu0 %v334, 120
      %v860 = vpop.permute.xlu0 %859
      %861 = vrot.lane.b32.xlu0 %v335, 120
      %v862 = vpop.permute.xlu0 %861
      %863 = vrot.lane.b32.xlu0 %v336, 120
      %v864 = vpop.permute.xlu0 %863
      %865 = vrot.lane.b32.xlu0 %v337, 120
      %v866 = vpop.permute.xlu0 %865
      %867 = vrot.lane.b32.xlu0 %v338, 120
      %v868 = vpop.permute.xlu0 %867
      %869 = vrot.lane.b32.xlu0 %v339, 120
      %v870 = vpop.permute.xlu0 %869
      %871 = vrot.lane.b32.xlu0 %v340, 120
      %v872 = vpop.permute.xlu0 %871
      %873 = vrot.lane.b32.xlu0 %v341, 120
      %v874 = vpop.permute.xlu0 %873
      %875 = vrot.lane.b32.xlu0 %v374, 120
      %v876 = vpop.permute.xlu0 %875
      %877 = vrot.lane.b32.xlu0 %v375, 120
      %v878 = vpop.permute.xlu0 %877
      %879 = vrot.lane.b32.xlu0 %v376, 120
      %v880 = vpop.permute.xlu0 %879
      %881 = vrot.lane.b32.xlu0 %v377, 120
      %v882 = vpop.permute.xlu0 %881
      %883 = vrot.lane.b32.xlu0 %v378, 120
      %v884 = vpop.permute.xlu0 %883
      %885 = vrot.lane.b32.xlu0 %v379, 120
      %v886 = vpop.permute.xlu0 %885
      %887 = vrot.lane.b32.xlu0 %v380, 120
      %v888 = vpop.permute.xlu0 %887
      %889 = vrot.lane.b32.xlu0 %v381, 120
      %v890 = vpop.permute.xlu0 %889
      %v892 = vsel %vm382, %v860, 0
      %v895 = vsel %vm382, %v862, 0
      %v898 = vsel %vm382, %v864, 0
      %v901 = vsel %vm382, %v866, 0
      %v904 = vsel %vm382, %v868, 0
      %v907 = vsel %vm382, %v870, 0
      %v910 = vsel %vm382, %v872, 0
      %v913 = vsel %vm382, %v874, 0
      %v916 = vsel %vm382, %v876, 0
      %v919 = vsel %vm382, %v878, 0
      %v922 = vsel %vm382, %v880, 0
      %v925 = vsel %vm382, %v882, 0
      %v928 = vsel %vm382, %v884, 0
      %v931 = vsel %vm382, %v886, 0
      %v934 = vsel %vm382, %v888, 0
      %v937 = vsel %vm382, %v890, 0
      %939 = vmatprep.subr.bf16.mxu0 0
      %940 = vmatpush1.bf16.xpose.msra.mxu0 %v937
      %941 = vmatprep.subr.bf16.mxu0 0
      %942 = vmatpush1.bf16.xpose.msra.mxu0 %v934
      %943 = vmatprep.subr.bf16.mxu0 0
      %944 = vmatpush1.bf16.xpose.msra.mxu0 %v931
      %945 = vmatprep.subr.bf16.mxu0 0
      %946 = vmatpush1.bf16.xpose.msra.mxu0 %v928
      %947 = vmatprep.subr.bf16.mxu0 0
      %948 = vmatpush1.bf16.xpose.msra.mxu0 %v925
      %949 = vmatprep.subr.bf16.mxu0 0
      %950 = vmatpush1.bf16.xpose.msra.mxu0 %v922
      %951 = vmatprep.subr.bf16.mxu0 0
      %952 = vmatpush1.bf16.xpose.msra.mxu0 %v919
      %953 = vmatprep.subr.bf16.mxu0 0
      %954 = vmatpush1.bf16.xpose.msra.mxu0 %v916
      %955 = vmatprep.subr.bf16.mxu0 0
      %956 = vmatpush2.bf16.xpose.msra.mxu0 0
      %957 = vmatprep.subr.bf16.mxu0 0
      %958 = vmatpush2.bf16.xpose.msra.mxu0 0
      %959 = vmatprep.subr.bf16.mxu0 0
      %960 = vmatpush2.bf16.xpose.msra.mxu0 0
      %961 = vmatprep.subr.bf16.mxu0 0
      %962 = vmatpush2.bf16.xpose.msra.mxu0 0
      %963 = vmatprep.subr.bf16.mxu0 0
      %964 = vmatpush2.bf16.xpose.msra.mxu0 0
      %965 = vmatprep.subr.bf16.mxu0 0
      %966 = vmatpush2.bf16.xpose.msra.mxu0 0
      %967 = vmatprep.subr.bf16.mxu0 0
      %968 = vmatpush2.bf16.xpose.msra.mxu0 0
      %969 = vmatprep.subr.bf16.mxu0 0
      %970 = vmatpush2.bf16.xpose.msra.mxu0 0
      %971 = vmatprep.mubr.bf16.mxu0 0
      %972 = vmatmul.mubr.bf16.gmra.mxu0 %v892
      %v973 = vpop.f32.mrf.mxu0
      %v974 = vadd.f32 0.0, %v973
      %v975 = vpop.f32.mrf.mxu0
      %v976 = vpop.f32.mrf.mxu0
      %v977 = vadd.f32 0.0, %v976
      %v978 = vpop.f32.mrf.mxu0
      %979 = vmatprep.mubr.bf16.mxu0 0
      %980 = vmatmul.mubr.bf16.gmra.mxu0 %v895
      %v981 = vpop.f32.mrf.mxu0
      %v982 = vadd.f32 0.0, %v981
      %v983 = vpop.f32.mrf.mxu0
      %v984 = vpop.f32.mrf.mxu0
      %v985 = vadd.f32 0.0, %v984
      %v986 = vpop.f32.mrf.mxu0
      %987 = vmatprep.mubr.bf16.mxu0 0
      %988 = vmatmul.mubr.bf16.gmra.mxu0 %v898
      %v989 = vpop.f32.mrf.mxu0
      %v990 = vadd.f32 0.0, %v989
      %v991 = vpop.f32.mrf.mxu0
      %v992 = vpop.f32.mrf.mxu0
      %v993 = vadd.f32 0.0, %v992
      %v994 = vpop.f32.mrf.mxu0
      %995 = vmatprep.mubr.bf16.mxu0 0
      %996 = vmatmul.mubr.bf16.gmra.mxu0 %v901
      %v997 = vpop.f32.mrf.mxu0
      %v998 = vadd.f32 0.0, %v997
      %v999 = vpop.f32.mrf.mxu0
      %v1000 = vpop.f32.mrf.mxu0
      %v1001 = vadd.f32 0.0, %v1000
      %v1002 = vpop.f32.mrf.mxu0
      %1003 = vmatprep.mubr.bf16.mxu0 0
      %1004 = vmatmul.mubr.bf16.gmra.mxu0 %v904
      %v1005 = vpop.f32.mrf.mxu0
      %v1006 = vadd.f32 0.0, %v1005
      %v1007 = vpop.f32.mrf.mxu0
      %v1008 = vpop.f32.mrf.mxu0
      %v1009 = vadd.f32 0.0, %v1008
      %v1010 = vpop.f32.mrf.mxu0
      %1011 = vmatprep.mubr.bf16.mxu0 0
      %1012 = vmatmul.mubr.bf16.gmra.mxu0 %v907
      %v1013 = vpop.f32.mrf.mxu0
      %v1014 = vadd.f32 0.0, %v1013
      %v1015 = vpop.f32.mrf.mxu0
      %v1016 = vpop.f32.mrf.mxu0
      %v1017 = vadd.f32 0.0, %v1016
      %v1018 = vpop.f32.mrf.mxu0
      %1019 = vmatprep.mubr.bf16.mxu0 0
      %1020 = vmatmul.mubr.bf16.gmra.mxu0 %v910
      %v1021 = vpop.f32.mrf.mxu0
      %v1022 = vadd.f32 0.0, %v1021
      %v1023 = vpop.f32.mrf.mxu0
      %v1024 = vpop.f32.mrf.mxu0
      %v1025 = vadd.f32 0.0, %v1024
      %v1026 = vpop.f32.mrf.mxu0
      %1027 = vmatprep.mubr.bf16.mxu0 0
      %1028 = vmatmul.mubr.bf16.gmra.mxu0 %v913
      %v1029 = vpop.f32.mrf.mxu0
      %v1030 = vadd.f32 0.0, %v1029
      %v1031 = vpop.f32.mrf.mxu0
      %v1032 = vpop.f32.mrf.mxu0
      %v1033 = vadd.f32 0.0, %v1032
      %v1034 = vpop.f32.mrf.mxu0
      %1035 = vdwg.mxu0
      %v1036 = vsel %vm529, %v974, -1e+30
      %v1037 = vsel %vm529, %v977, -1e+30
      %v1038 = vsel %vm529, %v982, -1e+30
      %v1039 = vsel %vm529, %v985, -1e+30
      %v1040 = vsel %vm529, %v990, -1e+30
      %v1041 = vsel %vm529, %v993, -1e+30
      %v1042 = vsel %vm529, %v998, -1e+30
      %v1043 = vsel %vm529, %v1001, -1e+30
      %v1044 = vsel %vm529, %v1006, -1e+30
      %v1045 = vsel %vm529, %v1009, -1e+30
      %v1046 = vsel %vm529, %v1014, -1e+30
      %v1047 = vsel %vm529, %v1017, -1e+30
      %v1048 = vsel %vm529, %v1022, -1e+30
      %v1049 = vsel %vm529, %v1025, -1e+30
      %v1050 = vsel %vm529, %v1030, -1e+30
      %v1051 = vsel %vm529, %v1033, -1e+30
      %1052 = vmax.xlane.f32.xlu0 %v1036
      %v1053 = vpop.xlane.xlu0 %1052
      %1054 = vmax.xlane.f32.xlu0 %v1037
      %v1055 = vpop.xlane.xlu0 %1054
      %1056 = vmax.xlane.f32.xlu0 %v1038
      %v1057 = vpop.xlane.xlu0 %1056
      %1058 = vmax.xlane.f32.xlu0 %v1039
      %v1059 = vpop.xlane.xlu0 %1058
      %1060 = vmax.xlane.f32.xlu0 %v1040
      %v1061 = vpop.xlane.xlu0 %1060
      %1062 = vmax.xlane.f32.xlu0 %v1041
      %v1063 = vpop.xlane.xlu0 %1062
      %1064 = vmax.xlane.f32.xlu0 %v1042
      %v1065 = vpop.xlane.xlu0 %1064
      %1066 = vmax.xlane.f32.xlu0 %v1043
      %v1067 = vpop.xlane.xlu0 %1066
      %1068 = vmax.xlane.f32.xlu0 %v1044
      %v1069 = vpop.xlane.xlu0 %1068
      %1070 = vmax.xlane.f32.xlu0 %v1045
      %v1071 = vpop.xlane.xlu0 %1070
      %1072 = vmax.xlane.f32.xlu0 %v1046
      %v1073 = vpop.xlane.xlu0 %1072
      %1074 = vmax.xlane.f32.xlu0 %v1047
      %v1075 = vpop.xlane.xlu0 %1074
      %1076 = vmax.xlane.f32.xlu0 %v1048
      %v1077 = vpop.xlane.xlu0 %1076
      %1078 = vmax.xlane.f32.xlu0 %v1049
      %v1079 = vpop.xlane.xlu0 %1078
      %1080 = vmax.xlane.f32.xlu0 %v1050
      %v1081 = vpop.xlane.xlu0 %1080
      %1082 = vmax.xlane.f32.xlu0 %v1051
      %v1083 = vpop.xlane.xlu0 %1082
      %v1084 = vsub.f32 %v1036, %v1053
      %v1085 = vsub.f32 %v1037, %v1055
      %v1086 = vsub.f32 %v1038, %v1057
      %v1087 = vsub.f32 %v1039, %v1059
      %v1088 = vsub.f32 %v1040, %v1061
      %v1089 = vsub.f32 %v1041, %v1063
      %v1090 = vsub.f32 %v1042, %v1065
      %v1091 = vsub.f32 %v1043, %v1067
      %v1092 = vsub.f32 %v1044, %v1069
      %v1093 = vsub.f32 %v1045, %v1071
      %v1094 = vsub.f32 %v1046, %v1073
      %v1095 = vsub.f32 %v1047, %v1075
      %v1096 = vsub.f32 %v1048, %v1077
      %v1097 = vsub.f32 %v1049, %v1079
      %v1098 = vsub.f32 %v1050, %v1081
      %v1099 = vsub.f32 %v1051, %v1083
      %v1100 = vmul.f32 %v1084, 1.442695
      %v1101 = vpow.pop %v1100
      %v1102 = vmul.f32 %v1085, 1.442695
      %v1103 = vpow.pop %v1102
      %v1104 = vmul.f32 %v1086, 1.442695
      %v1105 = vpow.pop %v1104
      %v1106 = vmul.f32 %v1087, 1.442695
      %v1107 = vpow.pop %v1106
      %v1108 = vmul.f32 %v1088, 1.442695
      %v1109 = vpow.pop %v1108
      %v1110 = vmul.f32 %v1089, 1.442695
      %v1111 = vpow.pop %v1110
      %v1112 = vmul.f32 %v1090, 1.442695
      %v1113 = vpow.pop %v1112
      %v1114 = vmul.f32 %v1091, 1.442695
      %v1115 = vpow.pop %v1114
      %v1116 = vmul.f32 %v1092, 1.442695
      %v1117 = vpow.pop %v1116
      %v1118 = vmul.f32 %v1093, 1.442695
      %v1119 = vpow.pop %v1118
      %v1120 = vmul.f32 %v1094, 1.442695
      %v1121 = vpow.pop %v1120
      %v1122 = vmul.f32 %v1095, 1.442695
      %v1123 = vpow.pop %v1122
      %v1124 = vmul.f32 %v1096, 1.442695
      %v1125 = vpow.pop %v1124
      %v1126 = vmul.f32 %v1097, 1.442695
      %v1127 = vpow.pop %v1126
      %v1128 = vmul.f32 %v1098, 1.442695
      %v1129 = vpow.pop %v1128
      %v1130 = vmul.f32 %v1099, 1.442695
      %v1131 = vpow.pop %v1130
      %1132 = vadd.xlane.f32.xlu0 %v1101
      %v1133 = vpop.xlane.xlu0 %1132
      %1134 = vadd.xlane.f32.xlu0 %v1103
      %v1135 = vpop.xlane.xlu0 %1134
      %1136 = vadd.xlane.f32.xlu0 %v1105
      %v1137 = vpop.xlane.xlu0 %1136
      %1138 = vadd.xlane.f32.xlu0 %v1107
      %v1139 = vpop.xlane.xlu0 %1138
      %1140 = vadd.xlane.f32.xlu0 %v1109
      %v1141 = vpop.xlane.xlu0 %1140
      %1142 = vadd.xlane.f32.xlu0 %v1111
      %v1143 = vpop.xlane.xlu0 %1142
      %1144 = vadd.xlane.f32.xlu0 %v1113
      %v1145 = vpop.xlane.xlu0 %1144
      %1146 = vadd.xlane.f32.xlu0 %v1115
      %v1147 = vpop.xlane.xlu0 %1146
      %1148 = vadd.xlane.f32.xlu0 %v1117
      %v1149 = vpop.xlane.xlu0 %1148
      %1150 = vadd.xlane.f32.xlu0 %v1119
      %v1151 = vpop.xlane.xlu0 %1150
      %1152 = vadd.xlane.f32.xlu0 %v1121
      %v1153 = vpop.xlane.xlu0 %1152
      %1154 = vadd.xlane.f32.xlu0 %v1123
      %v1155 = vpop.xlane.xlu0 %1154
      %1156 = vadd.xlane.f32.xlu0 %v1125
      %v1157 = vpop.xlane.xlu0 %1156
      %1158 = vadd.xlane.f32.xlu0 %v1127
      %v1159 = vpop.xlane.xlu0 %1158
      %1160 = vadd.xlane.f32.xlu0 %v1129
      %v1161 = vpop.xlane.xlu0 %1160
      %1162 = vadd.xlane.f32.xlu0 %v1131
      %v1163 = vpop.xlane.xlu0 %1162
      %v1164 = vpack.c.bf16 %v1103, %v1101
      %v1165 = vpack.c.bf16 %v1107, %v1105
      %v1166 = vpack.c.bf16 %v1111, %v1109
      %v1167 = vpack.c.bf16 %v1115, %v1113
      %v1168 = vpack.c.bf16 %v1119, %v1117
      %v1169 = vpack.c.bf16 %v1123, %v1121
      %v1170 = vpack.c.bf16 %v1127, %v1125
      %v1171 = vpack.c.bf16 %v1131, %v1129
      %1172 = vrot.lane.b32.xlu0 %v698, 120
      %v1173 = vpop.permute.xlu0 %1172
      %1174 = vrot.lane.b32.xlu0 %v699, 120
      %v1175 = vpop.permute.xlu0 %1174
      %1176 = vrot.lane.b32.xlu0 %v700, 120
      %v1177 = vpop.permute.xlu0 %1176
      %1178 = vrot.lane.b32.xlu0 %v701, 120
      %v1179 = vpop.permute.xlu0 %1178
      %1180 = vrot.lane.b32.xlu0 %v702, 120
      %v1181 = vpop.permute.xlu0 %1180
      %1182 = vrot.lane.b32.xlu0 %v703, 120
      %v1183 = vpop.permute.xlu0 %1182
      %1184 = vrot.lane.b32.xlu0 %v704, 120
      %v1185 = vpop.permute.xlu0 %1184
      %1186 = vrot.lane.b32.xlu0 %v705, 120
      %v1187 = vpop.permute.xlu0 %1186
      %1196 = vmatprep.subr.bf16.mxu0 0
      %1197 = vmatpush1.bf16.msra.mxu0 %v1187
      %1198 = vmatprep.subr.bf16.mxu0 0
      %1199 = vmatpush1.bf16.msra.mxu0 %v1185
      %1200 = vmatprep.subr.bf16.mxu0 0
      %1201 = vmatpush1.bf16.msra.mxu0 %v1183
      %1202 = vmatprep.subr.bf16.mxu0 0
      %1203 = vmatpush1.bf16.msra.mxu0 %v1181
      %1204 = vmatprep.subr.bf16.mxu0 0
      %1205 = vmatpush1.bf16.msra.mxu0 %v1179
      %1206 = vmatprep.subr.bf16.mxu0 0
      %1207 = vmatpush1.bf16.msra.mxu0 %v1177
      %1208 = vmatprep.subr.bf16.mxu0 0
      %1209 = vmatpush1.bf16.msra.mxu0 %v1175
      %1210 = vmatprep.subr.bf16.mxu0 0
      %1211 = vmatpush1.bf16.msra.mxu0 %v1173
      %1212 = vmatprep.subr.bf16.mxu0 0
      %1213 = vmatpush2.bf16.msra.mxu0 0
      %1214 = vmatprep.subr.bf16.mxu0 0
      %1215 = vmatpush2.bf16.msra.mxu0 0
      %1216 = vmatprep.subr.bf16.mxu0 0
      %1217 = vmatpush2.bf16.msra.mxu0 0
      %1218 = vmatprep.subr.bf16.mxu0 0
      %1219 = vmatpush2.bf16.msra.mxu0 0
      %1220 = vmatprep.subr.bf16.mxu0 0
      %1221 = vmatpush2.bf16.msra.mxu0 0
      %1222 = vmatprep.subr.bf16.mxu0 0
      %1223 = vmatpush2.bf16.msra.mxu0 0
      %1224 = vmatprep.subr.bf16.mxu0 0
      %1225 = vmatpush2.bf16.msra.mxu0 0
      %1226 = vmatprep.subr.bf16.mxu0 0
      %1227 = vmatpush2.bf16.msra.mxu0 0
      %1228 = vmatprep.mubr.bf16.mxu0 0
      %1229 = vmatmul.mubr.bf16.gmra.mxu0 %v1164
      %v1230 = vpop.f32.mrf.mxu0
      %v1231 = vadd.f32 0.0, %v1230
      %v1232 = vpop.f32.mrf.mxu0
      %v1233 = vpop.f32.mrf.mxu0
      %v1234 = vadd.f32 0.0, %v1233
      %v1235 = vpop.f32.mrf.mxu0
      %1236 = vmatprep.mubr.bf16.mxu0 0
      %1237 = vmatmul.mubr.bf16.gmra.mxu0 %v1165
      %v1238 = vpop.f32.mrf.mxu0
      %v1239 = vadd.f32 0.0, %v1238
      %v1240 = vpop.f32.mrf.mxu0
      %v1241 = vpop.f32.mrf.mxu0
      %v1242 = vadd.f32 0.0, %v1241
      %v1243 = vpop.f32.mrf.mxu0
      %1244 = vmatprep.mubr.bf16.mxu0 0
      %1245 = vmatmul.mubr.bf16.gmra.mxu0 %v1166
      %v1246 = vpop.f32.mrf.mxu0
      %v1247 = vadd.f32 0.0, %v1246
      %v1248 = vpop.f32.mrf.mxu0
      %v1249 = vpop.f32.mrf.mxu0
      %v1250 = vadd.f32 0.0, %v1249
      %v1251 = vpop.f32.mrf.mxu0
      %1252 = vmatprep.mubr.bf16.mxu0 0
      %1253 = vmatmul.mubr.bf16.gmra.mxu0 %v1167
      %v1254 = vpop.f32.mrf.mxu0
      %v1255 = vadd.f32 0.0, %v1254
      %v1256 = vpop.f32.mrf.mxu0
      %v1257 = vpop.f32.mrf.mxu0
      %v1258 = vadd.f32 0.0, %v1257
      %v1259 = vpop.f32.mrf.mxu0
      %1260 = vmatprep.mubr.bf16.mxu0 0
      %1261 = vmatmul.mubr.bf16.gmra.mxu0 %v1168
      %v1262 = vpop.f32.mrf.mxu0
      %v1263 = vadd.f32 0.0, %v1262
      %v1264 = vpop.f32.mrf.mxu0
      %v1265 = vpop.f32.mrf.mxu0
      %v1266 = vadd.f32 0.0, %v1265
      %v1267 = vpop.f32.mrf.mxu0
      %1268 = vmatprep.mubr.bf16.mxu0 0
      %1269 = vmatmul.mubr.bf16.gmra.mxu0 %v1169
      %v1270 = vpop.f32.mrf.mxu0
      %v1271 = vadd.f32 0.0, %v1270
      %v1272 = vpop.f32.mrf.mxu0
      %v1273 = vpop.f32.mrf.mxu0
      %v1274 = vadd.f32 0.0, %v1273
      %v1275 = vpop.f32.mrf.mxu0
      %1276 = vmatprep.mubr.bf16.mxu0 0
      %1277 = vmatmul.mubr.bf16.gmra.mxu0 %v1170
      %v1278 = vpop.f32.mrf.mxu0
      %v1279 = vadd.f32 0.0, %v1278
      %v1280 = vpop.f32.mrf.mxu0
      %v1281 = vpop.f32.mrf.mxu0
      %v1282 = vadd.f32 0.0, %v1281
      %v1283 = vpop.f32.mrf.mxu0
      %1284 = vmatprep.mubr.bf16.mxu0 0
      %1285 = vmatmul.mubr.bf16.gmra.mxu0 %v1171
      %v1286 = vpop.f32.mrf.mxu0
      %v1287 = vadd.f32 0.0, %v1286
      %v1288 = vpop.f32.mrf.mxu0
      %v1289 = vpop.f32.mrf.mxu0
      %v1290 = vadd.f32 0.0, %v1289
      %v1291 = vpop.f32.mrf.mxu0
      %1292 = vdwg.mxu0
      %v1293 = vrcp.pop %v1133
      %v1294 = vrcp.pop %v1135
      %v1295 = vrcp.pop %v1137
      %v1296 = vrcp.pop %v1139
      %v1297 = vrcp.pop %v1141
      %v1298 = vrcp.pop %v1143
      %v1299 = vrcp.pop %v1145
      %v1300 = vrcp.pop %v1147
      %v1301 = vrcp.pop %v1149
      %v1302 = vrcp.pop %v1151
      %v1303 = vrcp.pop %v1153
      %v1304 = vrcp.pop %v1155
      %v1305 = vrcp.pop %v1157
      %v1306 = vrcp.pop %v1159
      %v1307 = vrcp.pop %v1161
      %v1308 = vrcp.pop %v1163
      %v1309 = vmul.f32 %v1231, %v1293
      %v1310 = vmul.f32 %v1234, %v1294
      %v1311 = vmul.f32 %v1239, %v1295
      %v1312 = vmul.f32 %v1242, %v1296
      %v1313 = vmul.f32 %v1247, %v1297
      %v1314 = vmul.f32 %v1250, %v1298
      %v1315 = vmul.f32 %v1255, %v1299
      %v1316 = vmul.f32 %v1258, %v1300
      %v1317 = vmul.f32 %v1263, %v1301
      %v1318 = vmul.f32 %v1266, %v1302
      %v1319 = vmul.f32 %v1271, %v1303
      %v1320 = vmul.f32 %v1274, %v1304
      %v1321 = vmul.f32 %v1279, %v1305
      %v1322 = vmul.f32 %v1282, %v1306
      %v1323 = vmul.f32 %v1287, %v1307
      %v1324 = vmul.f32 %v1290, %v1308
      %1341 = vrot.lane.b32.xlu0 %v1309, 8
      %v1342 = vpop.permute.xlu0 %1341
      %1343 = vrot.lane.b32.xlu0 %v1310, 8
      %v1344 = vpop.permute.xlu0 %1343
      %1345 = vrot.lane.b32.xlu0 %v1311, 8
      %v1346 = vpop.permute.xlu0 %1345
      %1347 = vrot.lane.b32.xlu0 %v1312, 8
      %v1348 = vpop.permute.xlu0 %1347
      %1349 = vrot.lane.b32.xlu0 %v1313, 8
      %v1350 = vpop.permute.xlu0 %1349
      %1351 = vrot.lane.b32.xlu0 %v1314, 8
      %v1352 = vpop.permute.xlu0 %1351
      %1353 = vrot.lane.b32.xlu0 %v1315, 8
      %v1354 = vpop.permute.xlu0 %1353
      %1355 = vrot.lane.b32.xlu0 %v1316, 8
      %v1356 = vpop.permute.xlu0 %1355
      %1357 = vrot.lane.b32.xlu0 %v1317, 8
      %v1358 = vpop.permute.xlu0 %1357
      %1359 = vrot.lane.b32.xlu0 %v1318, 8
      %v1360 = vpop.permute.xlu0 %1359
      %1361 = vrot.lane.b32.xlu0 %v1319, 8
      %v1362 = vpop.permute.xlu0 %1361
      %1363 = vrot.lane.b32.xlu0 %v1320, 8
      %v1364 = vpop.permute.xlu0 %1363
      %1365 = vrot.lane.b32.xlu0 %v1321, 8
      %v1366 = vpop.permute.xlu0 %1365
      %1367 = vrot.lane.b32.xlu0 %v1322, 8
      %v1368 = vpop.permute.xlu0 %1367
      %1369 = vrot.lane.b32.xlu0 %v1323, 8
      %v1370 = vpop.permute.xlu0 %1369
      %1371 = vrot.lane.b32.xlu0 %v1324, 8
      %v1372 = vpop.permute.xlu0 %1371
      %vm1389 = vcmask 130112
      %1390 = vst.msk [vmem:[#allocation2] sm:$0xff] %vm1389, %v1342
      %1391 = vst.msk [vmem:[#allocation2 + $0x8] sm:$0xff] %vm1389, %v1344
      %1392 = vst.msk [vmem:[#allocation2 + $0x10] sm:$0xff] %vm1389, %v1346
      %1393 = vst.msk [vmem:[#allocation2 + $0x18] sm:$0xff] %vm1389, %v1348
      %1394 = vst.msk [vmem:[#allocation2 + $0x20] sm:$0xff] %vm1389, %v1350
      %1395 = vst.msk [vmem:[#allocation2 + $0x28] sm:$0xff] %vm1389, %v1352
      %1396 = vst.msk [vmem:[#allocation2 + $0x30] sm:$0xff] %vm1389, %v1354
      %1397 = vst.msk [vmem:[#allocation2 + $0x38] sm:$0xff] %vm1389, %v1356
      %1398 = vst.msk [vmem:[#allocation2 + $0x40] sm:$0xff] %vm1389, %v1358
      %1399 = vst.msk [vmem:[#allocation2 + $0x48] sm:$0xff] %vm1389, %v1360
      %1400 = vst.msk [vmem:[#allocation2 + $0x50] sm:$0xff] %vm1389, %v1362
      %1401 = vst.msk [vmem:[#allocation2 + $0x58] sm:$0xff] %vm1389, %v1364
      %1402 = vst.msk [vmem:[#allocation2 + $0x60] sm:$0xff] %vm1389, %v1366
      %1403 = vst.msk [vmem:[#allocation2 + $0x68] sm:$0xff] %vm1389, %v1368
      %1404 = vst.msk [vmem:[#allocation2 + $0x70] sm:$0xff] %vm1389, %v1370
      %1405 = vst.msk [vmem:[#allocation2 + $0x78] sm:$0xff] %vm1389, %v1372
      %1406 = vrot.lane.b32.xlu0 %v334, 112
      %v1407 = vpop.permute.xlu0 %1406
      %1408 = vrot.lane.b32.xlu0 %v335, 112
      %v1409 = vpop.permute.xlu0 %1408
      %1410 = vrot.lane.b32.xlu0 %v336, 112
      %v1411 = vpop.permute.xlu0 %1410
      %1412 = vrot.lane.b32.xlu0 %v337, 112
      %v1413 = vpop.permute.xlu0 %1412
      %1414 = vrot.lane.b32.xlu0 %v338, 112
      %v1415 = vpop.permute.xlu0 %1414
      %1416 = vrot.lane.b32.xlu0 %v339, 112
      %v1417 = vpop.permute.xlu0 %1416
      %1418 = vrot.lane.b32.xlu0 %v340, 112
      %v1419 = vpop.permute.xlu0 %1418
      %1420 = vrot.lane.b32.xlu0 %v341, 112
      %v1421 = vpop.permute.xlu0 %1420
      %1422 = vrot.lane.b32.xlu0 %v374, 112
      %v1423 = vpop.permute.xlu0 %1422
      %1424 = vrot.lane.b32.xlu0 %v375, 112
      %v1425 = vpop.permute.xlu0 %1424
      %1426 = vrot.lane.b32.xlu0 %v376, 112
      %v1427 = vpop.permute.xlu0 %1426
      %1428 = vrot.lane.b32.xlu0 %v377, 112
      %v1429 = vpop.permute.xlu0 %1428
      %1430 = vrot.lane.b32.xlu0 %v378, 112
      %v1431 = vpop.permute.xlu0 %1430
      %1432 = vrot.lane.b32.xlu0 %v379, 112
      %v1433 = vpop.permute.xlu0 %1432
      %1434 = vrot.lane.b32.xlu0 %v380, 112
      %v1435 = vpop.permute.xlu0 %1434
      %1436 = vrot.lane.b32.xlu0 %v381, 112
      %v1437 = vpop.permute.xlu0 %1436
      %v1439 = vsel %vm382, %v1407, 0
      %v1442 = vsel %vm382, %v1409, 0
      %v1445 = vsel %vm382, %v1411, 0
      %v1448 = vsel %vm382, %v1413, 0
      %v1451 = vsel %vm382, %v1415, 0
      %v1454 = vsel %vm382, %v1417, 0
      %v1457 = vsel %vm382, %v1419, 0
      %v1460 = vsel %vm382, %v1421, 0
      %v1463 = vsel %vm382, %v1423, 0
      %v1466 = vsel %vm382, %v1425, 0
      %v1469 = vsel %vm382, %v1427, 0
      %v1472 = vsel %vm382, %v1429, 0
      %v1475 = vsel %vm382, %v1431, 0
      %v1478 = vsel %vm382, %v1433, 0
      %v1481 = vsel %vm382, %v1435, 0
      %v1484 = vsel %vm382, %v1437, 0
      %1486 = vmatprep.subr.bf16.mxu0 0
      %1487 = vmatpush1.bf16.xpose.msra.mxu0 %v1484
      %1488 = vmatprep.subr.bf16.mxu0 0
      %1489 = vmatpush1.bf16.xpose.msra.mxu0 %v1481
      %1490 = vmatprep.subr.bf16.mxu0 0
      %1491 = vmatpush1.bf16.xpose.msra.mxu0 %v1478
      %1492 = vmatprep.subr.bf16.mxu0 0
      %1493 = vmatpush1.bf16.xpose.msra.mxu0 %v1475
      %1494 = vmatprep.subr.bf16.mxu0 0
      %1495 = vmatpush1.bf16.xpose.msra.mxu0 %v1472
      %1496 = vmatprep.subr.bf16.mxu0 0
      %1497 = vmatpush1.bf16.xpose.msra.mxu0 %v1469
      %1498 = vmatprep.subr.bf16.mxu0 0
      %1499 = vmatpush1.bf16.xpose.msra.mxu0 %v1466
      %1500 = vmatprep.subr.bf16.mxu0 0
      %1501 = vmatpush1.bf16.xpose.msra.mxu0 %v1463
      %1502 = vmatprep.subr.bf16.mxu0 0
      %1503 = vmatpush2.bf16.xpose.msra.mxu0 0
      %1504 = vmatprep.subr.bf16.mxu0 0
      %1505 = vmatpush2.bf16.xpose.msra.mxu0 0
      %1506 = vmatprep.subr.bf16.mxu0 0
      %1507 = vmatpush2.bf16.xpose.msra.mxu0 0
      %1508 = vmatprep.subr.bf16.mxu0 0
      %1509 = vmatpush2.bf16.xpose.msra.mxu0 0
      %1510 = vmatprep.subr.bf16.mxu0 0
      %1511 = vmatpush2.bf16.xpose.msra.mxu0 0
      %1512 = vmatprep.subr.bf16.mxu0 0
      %1513 = vmatpush2.bf16.xpose.msra.mxu0 0
      %1514 = vmatprep.subr.bf16.mxu0 0
      %1515 = vmatpush2.bf16.xpose.msra.mxu0 0
      %1516 = vmatprep.subr.bf16.mxu0 0
      %1517 = vmatpush2.bf16.xpose.msra.mxu0 0
      %1518 = vmatprep.mubr.bf16.mxu0 0
      %1519 = vmatmul.mubr.bf16.gmra.mxu0 %v1439
      %v1520 = vpop.f32.mrf.mxu0
      %v1521 = vadd.f32 0.0, %v1520
      %v1522 = vpop.f32.mrf.mxu0
      %v1523 = vpop.f32.mrf.mxu0
      %v1524 = vadd.f32 0.0, %v1523
      %v1525 = vpop.f32.mrf.mxu0
      %1526 = vmatprep.mubr.bf16.mxu0 0
      %1527 = vmatmul.mubr.bf16.gmra.mxu0 %v1442
      %v1528 = vpop.f32.mrf.mxu0
      %v1529 = vadd.f32 0.0, %v1528
      %v1530 = vpop.f32.mrf.mxu0
      %v1531 = vpop.f32.mrf.mxu0
      %v1532 = vadd.f32 0.0, %v1531
      %v1533 = vpop.f32.mrf.mxu0
      %1534 = vmatprep.mubr.bf16.mxu0 0
      %1535 = vmatmul.mubr.bf16.gmra.mxu0 %v1445
      %v1536 = vpop.f32.mrf.mxu0
      %v1537 = vadd.f32 0.0, %v1536
      %v1538 = vpop.f32.mrf.mxu0
      %v1539 = vpop.f32.mrf.mxu0
      %v1540 = vadd.f32 0.0, %v1539
      %v1541 = vpop.f32.mrf.mxu0
      %1542 = vmatprep.mubr.bf16.mxu0 0
      %1543 = vmatmul.mubr.bf16.gmra.mxu0 %v1448
      %v1544 = vpop.f32.mrf.mxu0
      %v1545 = vadd.f32 0.0, %v1544
      %v1546 = vpop.f32.mrf.mxu0
      %v1547 = vpop.f32.mrf.mxu0
      %v1548 = vadd.f32 0.0, %v1547
      %v1549 = vpop.f32.mrf.mxu0
      %1550 = vmatprep.mubr.bf16.mxu0 0
      %1551 = vmatmul.mubr.bf16.gmra.mxu0 %v1451
      %v1552 = vpop.f32.mrf.mxu0
      %v1553 = vadd.f32 0.0, %v1552
      %v1554 = vpop.f32.mrf.mxu0
      %v1555 = vpop.f32.mrf.mxu0
      %v1556 = vadd.f32 0.0, %v1555
      %v1557 = vpop.f32.mrf.mxu0
      %1558 = vmatprep.mubr.bf16.mxu0 0
      %1559 = vmatmul.mubr.bf16.gmra.mxu0 %v1454
      %v1560 = vpop.f32.mrf.mxu0
      %v1561 = vadd.f32 0.0, %v1560
      %v1562 = vpop.f32.mrf.mxu0
      %v1563 = vpop.f32.mrf.mxu0
      %v1564 = vadd.f32 0.0, %v1563
      %v1565 = vpop.f32.mrf.mxu0
      %1566 = vmatprep.mubr.bf16.mxu0 0
      %1567 = vmatmul.mubr.bf16.gmra.mxu0 %v1457
      %v1568 = vpop.f32.mrf.mxu0
      %v1569 = vadd.f32 0.0, %v1568
      %v1570 = vpop.f32.mrf.mxu0
      %v1571 = vpop.f32.mrf.mxu0
      %v1572 = vadd.f32 0.0, %v1571
      %v1573 = vpop.f32.mrf.mxu0
      %1574 = vmatprep.mubr.bf16.mxu0 0
      %1575 = vmatmul.mubr.bf16.gmra.mxu0 %v1460
      %v1576 = vpop.f32.mrf.mxu0
      %v1577 = vadd.f32 0.0, %v1576
      %v1578 = vpop.f32.mrf.mxu0
      %v1579 = vpop.f32.mrf.mxu0
      %v1580 = vadd.f32 0.0, %v1579
      %v1581 = vpop.f32.mrf.mxu0
      %1582 = vdwg.mxu0
      %v1583 = vsel %vm529, %v1521, -1e+30
      %v1584 = vsel %vm529, %v1524, -1e+30
      %v1585 = vsel %vm529, %v1529, -1e+30
      %v1586 = vsel %vm529, %v1532, -1e+30
      %v1587 = vsel %vm529, %v1537, -1e+30
      %v1588 = vsel %vm529, %v1540, -1e+30
      %v1589 = vsel %vm529, %v1545, -1e+30
      %v1590 = vsel %vm529, %v1548, -1e+30
      %v1591 = vsel %vm529, %v1553, -1e+30
      %v1592 = vsel %vm529, %v1556, -1e+30
      %v1593 = vsel %vm529, %v1561, -1e+30
      %v1594 = vsel %vm529, %v1564, -1e+30
      %v1595 = vsel %vm529, %v1569, -1e+30
      %v1596 = vsel %vm529, %v1572, -1e+30
      %v1597 = vsel %vm529, %v1577, -1e+30
      %v1598 = vsel %vm529, %v1580, -1e+30
      %1599 = vmax.xlane.f32.xlu0 %v1583
      %v1600 = vpop.xlane.xlu0 %1599
      %1601 = vmax.xlane.f32.xlu0 %v1584
      %v1602 = vpop.xlane.xlu0 %1601
      %1603 = vmax.xlane.f32.xlu0 %v1585
      %v1604 = vpop.xlane.xlu0 %1603
      %1605 = vmax.xlane.f32.xlu0 %v1586
      %v1606 = vpop.xlane.xlu0 %1605
      %1607 = vmax.xlane.f32.xlu0 %v1587
      %v1608 = vpop.xlane.xlu0 %1607
      %1609 = vmax.xlane.f32.xlu0 %v1588
      %v1610 = vpop.xlane.xlu0 %1609
      %1611 = vmax.xlane.f32.xlu0 %v1589
      %v1612 = vpop.xlane.xlu0 %1611
      %1613 = vmax.xlane.f32.xlu0 %v1590
      %v1614 = vpop.xlane.xlu0 %1613
      %1615 = vmax.xlane.f32.xlu0 %v1591
      %v1616 = vpop.xlane.xlu0 %1615
      %1617 = vmax.xlane.f32.xlu0 %v1592
      %v1618 = vpop.xlane.xlu0 %1617
      %1619 = vmax.xlane.f32.xlu0 %v1593
      %v1620 = vpop.xlane.xlu0 %1619
      %1621 = vmax.xlane.f32.xlu0 %v1594
      %v1622 = vpop.xlane.xlu0 %1621
      %1623 = vmax.xlane.f32.xlu0 %v1595
      %v1624 = vpop.xlane.xlu0 %1623
      %1625 = vmax.xlane.f32.xlu0 %v1596
      %v1626 = vpop.xlane.xlu0 %1625
      %1627 = vmax.xlane.f32.xlu0 %v1597
      %v1628 = vpop.xlane.xlu0 %1627
      %1629 = vmax.xlane.f32.xlu0 %v1598
      %v1630 = vpop.xlane.xlu0 %1629
      %v1631 = vsub.f32 %v1583, %v1600
      %v1632 = vsub.f32 %v1584, %v1602
      %v1633 = vsub.f32 %v1585, %v1604
      %v1634 = vsub.f32 %v1586, %v1606
      %v1635 = vsub.f32 %v1587, %v1608
      %v1636 = vsub.f32 %v1588, %v1610
      %v1637 = vsub.f32 %v1589, %v1612
      %v1638 = vsub.f32 %v1590, %v1614
      %v1639 = vsub.f32 %v1591, %v1616
      %v1640 = vsub.f32 %v1592, %v1618
      %v1641 = vsub.f32 %v1593, %v1620
      %v1642 = vsub.f32 %v1594, %v1622
      %v1643 = vsub.f32 %v1595, %v1624
      %v1644 = vsub.f32 %v1596, %v1626
      %v1645 = vsub.f32 %v1597, %v1628
      %v1646 = vsub.f32 %v1598, %v1630
      %v1647 = vmul.f32 %v1631, 1.442695
      %v1648 = vpow.pop %v1647
      %v1649 = vmul.f32 %v1632, 1.442695
      %v1650 = vpow.pop %v1649
      %v1651 = vmul.f32 %v1633, 1.442695
      %v1652 = vpow.pop %v1651
      %v1653 = vmul.f32 %v1634, 1.442695
      %v1654 = vpow.pop %v1653
      %v1655 = vmul.f32 %v1635, 1.442695
      %v1656 = vpow.pop %v1655
      %v1657 = vmul.f32 %v1636, 1.442695
      %v1658 = vpow.pop %v1657
      %v1659 = vmul.f32 %v1637, 1.442695
      %v1660 = vpow.pop %v1659
      %v1661 = vmul.f32 %v1638, 1.442695
      %v1662 = vpow.pop %v1661
      %v1663 = vmul.f32 %v1639, 1.442695
      %v1664 = vpow.pop %v1663
      %v1665 = vmul.f32 %v1640, 1.442695
      %v1666 = vpow.pop %v1665
      %v1667 = vmul.f32 %v1641, 1.442695
      %v1668 = vpow.pop %v1667
      %v1669 = vmul.f32 %v1642, 1.442695
      %v1670 = vpow.pop %v1669
      %v1671 = vmul.f32 %v1643, 1.442695
      %v1672 = vpow.pop %v1671
      %v1673 = vmul.f32 %v1644, 1.442695
      %v1674 = vpow.pop %v1673
      %v1675 = vmul.f32 %v1645, 1.442695
      %v1676 = vpow.pop %v1675
      %v1677 = vmul.f32 %v1646, 1.442695
      %v1678 = vpow.pop %v1677
      %1679 = vadd.xlane.f32.xlu0 %v1648
      %v1680 = vpop.xlane.xlu0 %1679
      %1681 = vadd.xlane.f32.xlu0 %v1650
      %v1682 = vpop.xlane.xlu0 %1681
      %1683 = vadd.xlane.f32.xlu0 %v1652
      %v1684 = vpop.xlane.xlu0 %1683
      %1685 = vadd.xlane.f32.xlu0 %v1654
      %v1686 = vpop.xlane.xlu0 %1685
      %1687 = vadd.xlane.f32.xlu0 %v1656
      %v1688 = vpop.xlane.xlu0 %1687
      %1689 = vadd.xlane.f32.xlu0 %v1658
      %v1690 = vpop.xlane.xlu0 %1689
      %1691 = vadd.xlane.f32.xlu0 %v1660
      %v1692 = vpop.xlane.xlu0 %1691
      %1693 = vadd.xlane.f32.xlu0 %v1662
      %v1694 = vpop.xlane.xlu0 %1693
      %1695 = vadd.xlane.f32.xlu0 %v1664
      %v1696 = vpop.xlane.xlu0 %1695
      %1697 = vadd.xlane.f32.xlu0 %v1666
      %v1698 = vpop.xlane.xlu0 %1697
      %1699 = vadd.xlane.f32.xlu0 %v1668
      %v1700 = vpop.xlane.xlu0 %1699
      %1701 = vadd.xlane.f32.xlu0 %v1670
      %v1702 = vpop.xlane.xlu0 %1701
      %1703 = vadd.xlane.f32.xlu0 %v1672
      %v1704 = vpop.xlane.xlu0 %1703
      %1705 = vadd.xlane.f32.xlu0 %v1674
      %v1706 = vpop.xlane.xlu0 %1705
      %1707 = vadd.xlane.f32.xlu0 %v1676
      %v1708 = vpop.xlane.xlu0 %1707
      %1709 = vadd.xlane.f32.xlu0 %v1678
      %v1710 = vpop.xlane.xlu0 %1709
      %v1711 = vpack.c.bf16 %v1650, %v1648
      %v1712 = vpack.c.bf16 %v1654, %v1652
      %v1713 = vpack.c.bf16 %v1658, %v1656
      %v1714 = vpack.c.bf16 %v1662, %v1660
      %v1715 = vpack.c.bf16 %v1666, %v1664
      %v1716 = vpack.c.bf16 %v1670, %v1668
      %v1717 = vpack.c.bf16 %v1674, %v1672
      %v1718 = vpack.c.bf16 %v1678, %v1676
      %1719 = vrot.lane.b32.xlu0 %v698, 112
      %v1720 = vpop.permute.xlu0 %1719
      %1721 = vrot.lane.b32.xlu0 %v699, 112
      %v1722 = vpop.permute.xlu0 %1721
      %1723 = vrot.lane.b32.xlu0 %v700, 112
      %v1724 = vpop.permute.xlu0 %1723
      %1725 = vrot.lane.b32.xlu0 %v701, 112
      %v1726 = vpop.permute.xlu0 %1725
      %1727 = vrot.lane.b32.xlu0 %v702, 112
      %v1728 = vpop.permute.xlu0 %1727
      %1729 = vrot.lane.b32.xlu0 %v703, 112
      %v1730 = vpop.permute.xlu0 %1729
      %1731 = vrot.lane.b32.xlu0 %v704, 112
      %v1732 = vpop.permute.xlu0 %1731
      %1733 = vrot.lane.b32.xlu0 %v705, 112
      %v1734 = vpop.permute.xlu0 %1733
      %1743 = vmatprep.subr.bf16.mxu0 0
      %1744 = vmatpush1.bf16.msra.mxu0 %v1734
      %1745 = vmatprep.subr.bf16.mxu0 0
      %1746 = vmatpush1.bf16.msra.mxu0 %v1732
      %1747 = vmatprep.subr.bf16.mxu0 0
      %1748 = vmatpush1.bf16.msra.mxu0 %v1730
      %1749 = vmatprep.subr.bf16.mxu0 0
      %1750 = vmatpush1.bf16.msra.mxu0 %v1728
      %1751 = vmatprep.subr.bf16.mxu0 0
      %1752 = vmatpush1.bf16.msra.mxu0 %v1726
      %1753 = vmatprep.subr.bf16.mxu0 0
      %1754 = vmatpush1.bf16.msra.mxu0 %v1724
      %1755 = vmatprep.subr.bf16.mxu0 0
      %1756 = vmatpush1.bf16.msra.mxu0 %v1722
      %1757 = vmatprep.subr.bf16.mxu0 0
      %1758 = vmatpush1.bf16.msra.mxu0 %v1720
      %1759 = vmatprep.subr.bf16.mxu0 0
      %1760 = vmatpush2.bf16.msra.mxu0 0
      %1761 = vmatprep.subr.bf16.mxu0 0
      %1762 = vmatpush2.bf16.msra.mxu0 0
      %1763 = vmatprep.subr.bf16.mxu0 0
      %1764 = vmatpush2.bf16.msra.mxu0 0
      %1765 = vmatprep.subr.bf16.mxu0 0
      %1766 = vmatpush2.bf16.msra.mxu0 0
      %1767 = vmatprep.subr.bf16.mxu0 0
      %1768 = vmatpush2.bf16.msra.mxu0 0
      %1769 = vmatprep.subr.bf16.mxu0 0
      %1770 = vmatpush2.bf16.msra.mxu0 0
      %1771 = vmatprep.subr.bf16.mxu0 0
      %1772 = vmatpush2.bf16.msra.mxu0 0
      %1773 = vmatprep.subr.bf16.mxu0 0
      %1774 = vmatpush2.bf16.msra.mxu0 0
      %1775 = vmatprep.mubr.bf16.mxu0 0
      %1776 = vmatmul.mubr.bf16.gmra.mxu0 %v1711
      %v1777 = vpop.f32.mrf.mxu0
      %v1778 = vadd.f32 0.0, %v1777
      %v1779 = vpop.f32.mrf.mxu0
      %v1780 = vpop.f32.mrf.mxu0
      %v1781 = vadd.f32 0.0, %v1780
      %v1782 = vpop.f32.mrf.mxu0
      %1783 = vmatprep.mubr.bf16.mxu0 0
      %1784 = vmatmul.mubr.bf16.gmra.mxu0 %v1712
      %v1785 = vpop.f32.mrf.mxu0
      %v1786 = vadd.f32 0.0, %v1785
      %v1787 = vpop.f32.mrf.mxu0
      %v1788 = vpop.f32.mrf.mxu0
      %v1789 = vadd.f32 0.0, %v1788
      %v1790 = vpop.f32.mrf.mxu0
      %1791 = vmatprep.mubr.bf16.mxu0 0
      %1792 = vmatmul.mubr.bf16.gmra.mxu0 %v1713
      %v1793 = vpop.f32.mrf.mxu0
      %v1794 = vadd.f32 0.0, %v1793
      %v1795 = vpop.f32.mrf.mxu0
      %v1796 = vpop.f32.mrf.mxu0
      %v1797 = vadd.f32 0.0, %v1796
      %v1798 = vpop.f32.mrf.mxu0
      %1799 = vmatprep.mubr.bf16.mxu0 0
      %1800 = vmatmul.mubr.bf16.gmra.mxu0 %v1714
      %v1801 = vpop.f32.mrf.mxu0
      %v1802 = vadd.f32 0.0, %v1801
      %v1803 = vpop.f32.mrf.mxu0
      %v1804 = vpop.f32.mrf.mxu0
      %v1805 = vadd.f32 0.0, %v1804
      %v1806 = vpop.f32.mrf.mxu0
      %1807 = vmatprep.mubr.bf16.mxu0 0
      %1808 = vmatmul.mubr.bf16.gmra.mxu0 %v1715
      %v1809 = vpop.f32.mrf.mxu0
      %v1810 = vadd.f32 0.0, %v1809
      %v1811 = vpop.f32.mrf.mxu0
      %v1812 = vpop.f32.mrf.mxu0
      %v1813 = vadd.f32 0.0, %v1812
      %v1814 = vpop.f32.mrf.mxu0
      %1815 = vmatprep.mubr.bf16.mxu0 0
      %1816 = vmatmul.mubr.bf16.gmra.mxu0 %v1716
      %v1817 = vpop.f32.mrf.mxu0
      %v1818 = vadd.f32 0.0, %v1817
      %v1819 = vpop.f32.mrf.mxu0
      %v1820 = vpop.f32.mrf.mxu0
      %v1821 = vadd.f32 0.0, %v1820
      %v1822 = vpop.f32.mrf.mxu0
      %1823 = vmatprep.mubr.bf16.mxu0 0
      %1824 = vmatmul.mubr.bf16.gmra.mxu0 %v1717
      %v1825 = vpop.f32.mrf.mxu0
      %v1826 = vadd.f32 0.0, %v1825
      %v1827 = vpop.f32.mrf.mxu0
      %v1828 = vpop.f32.mrf.mxu0
      %v1829 = vadd.f32 0.0, %v1828
      %v1830 = vpop.f32.mrf.mxu0
      %1831 = vmatprep.mubr.bf16.mxu0 0
      %1832 = vmatmul.mubr.bf16.gmra.mxu0 %v1718
      %v1833 = vpop.f32.mrf.mxu0
      %v1834 = vadd.f32 0.0, %v1833
      %v1835 = vpop.f32.mrf.mxu0
      %v1836 = vpop.f32.mrf.mxu0
      %v1837 = vadd.f32 0.0, %v1836
      %v1838 = vpop.f32.mrf.mxu0
      %1839 = vdwg.mxu0
      %v1840 = vrcp.pop %v1680
      %v1841 = vrcp.pop %v1682
      %v1842 = vrcp.pop %v1684
      %v1843 = vrcp.pop %v1686
      %v1844 = vrcp.pop %v1688
      %v1845 = vrcp.pop %v1690
      %v1846 = vrcp.pop %v1692
      %v1847 = vrcp.pop %v1694
      %v1848 = vrcp.pop %v1696
      %v1849 = vrcp.pop %v1698
      %v1850 = vrcp.pop %v1700
      %v1851 = vrcp.pop %v1702
      %v1852 = vrcp.pop %v1704
      %v1853 = vrcp.pop %v1706
      %v1854 = vrcp.pop %v1708
      %v1855 = vrcp.pop %v1710
      %v1856 = vmul.f32 %v1778, %v1840
      %v1857 = vmul.f32 %v1781, %v1841
      %v1858 = vmul.f32 %v1786, %v1842
      %v1859 = vmul.f32 %v1789, %v1843
      %v1860 = vmul.f32 %v1794, %v1844
      %v1861 = vmul.f32 %v1797, %v1845
      %v1862 = vmul.f32 %v1802, %v1846
      %v1863 = vmul.f32 %v1805, %v1847
      %v1864 = vmul.f32 %v1810, %v1848
      %v1865 = vmul.f32 %v1813, %v1849
      %v1866 = vmul.f32 %v1818, %v1850
      %v1867 = vmul.f32 %v1821, %v1851
      %v1868 = vmul.f32 %v1826, %v1852
      %v1869 = vmul.f32 %v1829, %v1853
      %v1870 = vmul.f32 %v1834, %v1854
      %v1871 = vmul.f32 %v1837, %v1855
      %1888 = vrot.lane.b32.xlu0 %v1856, 16
      %v1889 = vpop.permute.xlu0 %1888
      %1890 = vrot.lane.b32.xlu0 %v1857, 16
      %v1891 = vpop.permute.xlu0 %1890
      %1892 = vrot.lane.b32.xlu0 %v1858, 16
      %v1893 = vpop.permute.xlu0 %1892
      %1894 = vrot.lane.b32.xlu0 %v1859, 16
      %v1895 = vpop.permute.xlu0 %1894
      %1896 = vrot.lane.b32.xlu0 %v1860, 16
      %v1897 = vpop.permute.xlu0 %1896
      %1898 = vrot.lane.b32.xlu0 %v1861, 16
      %v1899 = vpop.permute.xlu0 %1898
      %1900 = vrot.lane.b32.xlu0 %v1862, 16
      %v1901 = vpop.permute.xlu0 %1900
      %1902 = vrot.lane.b32.xlu0 %v1863, 16
      %v1903 = vpop.permute.xlu0 %1902
      %1904 = vrot.lane.b32.xlu0 %v1864, 16
      %v1905 = vpop.permute.xlu0 %1904
      %1906 = vrot.lane.b32.xlu0 %v1865, 16
      %v1907 = vpop.permute.xlu0 %1906
      %1908 = vrot.lane.b32.xlu0 %v1866, 16
      %v1909 = vpop.permute.xlu0 %1908
      %1910 = vrot.lane.b32.xlu0 %v1867, 16
      %v1911 = vpop.permute.xlu0 %1910
      %1912 = vrot.lane.b32.xlu0 %v1868, 16
      %v1913 = vpop.permute.xlu0 %1912
      %1914 = vrot.lane.b32.xlu0 %v1869, 16
      %v1915 = vpop.permute.xlu0 %1914
      %1916 = vrot.lane.b32.xlu0 %v1870, 16
      %v1917 = vpop.permute.xlu0 %1916
      %1918 = vrot.lane.b32.xlu0 %v1871, 16
      %v1919 = vpop.permute.xlu0 %1918
      %vm1936 = vcmask 195712
      %1937 = vst.msk [vmem:[#allocation2] sm:$0xff] %vm1936, %v1889
      %1938 = vst.msk [vmem:[#allocation2 + $0x8] sm:$0xff] %vm1936, %v1891
      %1939 = vst.msk [vmem:[#allocation2 + $0x10] sm:$0xff] %vm1936, %v1893
      %1940 = vst.msk [vmem:[#allocation2 + $0x18] sm:$0xff] %vm1936, %v1895
      %1941 = vst.msk [vmem:[#allocation2 + $0x20] sm:$0xff] %vm1936, %v1897
      %1942 = vst.msk [vmem:[#allocation2 + $0x28] sm:$0xff] %vm1936, %v1899
      %1943 = vst.msk [vmem:[#allocation2 + $0x30] sm:$0xff] %vm1936, %v1901
      %1944 = vst.msk [vmem:[#allocation2 + $0x38] sm:$0xff] %vm1936, %v1903
      %1945 = vst.msk [vmem:[#allocation2 + $0x40] sm:$0xff] %vm1936, %v1905
      %1946 = vst.msk [vmem:[#allocation2 + $0x48] sm:$0xff] %vm1936, %v1907
      %1947 = vst.msk [vmem:[#allocation2 + $0x50] sm:$0xff] %vm1936, %v1909
      %1948 = vst.msk [vmem:[#allocation2 + $0x58] sm:$0xff] %vm1936, %v1911
      %1949 = vst.msk [vmem:[#allocation2 + $0x60] sm:$0xff] %vm1936, %v1913
      %1950 = vst.msk [vmem:[#allocation2 + $0x68] sm:$0xff] %vm1936, %v1915
      %1951 = vst.msk [vmem:[#allocation2 + $0x70] sm:$0xff] %vm1936, %v1917
      %1952 = vst.msk [vmem:[#allocation2 + $0x78] sm:$0xff] %vm1936, %v1919
      %1953 = vrot.lane.b32.xlu0 %v334, 104
      %v1954 = vpop.permute.xlu0 %1953
      %1955 = vrot.lane.b32.xlu0 %v335, 104
      %v1956 = vpop.permute.xlu0 %1955
      %1957 = vrot.lane.b32.xlu0 %v336, 104
      %v1958 = vpop.permute.xlu0 %1957
      %1959 = vrot.lane.b32.xlu0 %v337, 104
      %v1960 = vpop.permute.xlu0 %1959
      %1961 = vrot.lane.b32.xlu0 %v338, 104
      %v1962 = vpop.permute.xlu0 %1961
      %1963 = vrot.lane.b32.xlu0 %v339, 104
      %v1964 = vpop.permute.xlu0 %1963
      %1965 = vrot.lane.b32.xlu0 %v340, 104
      %v1966 = vpop.permute.xlu0 %1965
      %1967 = vrot.lane.b32.xlu0 %v341, 104
      %v1968 = vpop.permute.xlu0 %1967
      %1969 = vrot.lane.b32.xlu0 %v374, 104
      %v1970 = vpop.permute.xlu0 %1969
      %1971 = vrot.lane.b32.xlu0 %v375, 104
      %v1972 = vpop.permute.xlu0 %1971
      %1973 = vrot.lane.b32.xlu0 %v376, 104
      %v1974 = vpop.permute.xlu0 %1973
      %1975 = vrot.lane.b32.xlu0 %v377, 104
      %v1976 = vpop.permute.xlu0 %1975
      %1977 = vrot.lane.b32.xlu0 %v378, 104
      %v1978 = vpop.permute.xlu0 %1977
      %1979 = vrot.lane.b32.xlu0 %v379, 104
      %v1980 = vpop.permute.xlu0 %1979
      %1981 = vrot.lane.b32.xlu0 %v380, 104
      %v1982 = vpop.permute.xlu0 %1981
      %1983 = vrot.lane.b32.xlu0 %v381, 104
      %v1984 = vpop.permute.xlu0 %1983
      %v1986 = vsel %vm382, %v1954, 0
      %v1989 = vsel %vm382, %v1956, 0
      %v1992 = vsel %vm382, %v1958, 0
      %v1995 = vsel %vm382, %v1960, 0
      %v1998 = vsel %vm382, %v1962, 0
      %v2001 = vsel %vm382, %v1964, 0
      %v2004 = vsel %vm382, %v1966, 0
      %v2007 = vsel %vm382, %v1968, 0
      %v2010 = vsel %vm382, %v1970, 0
      %v2013 = vsel %vm382, %v1972, 0
      %v2016 = vsel %vm382, %v1974, 0
      %v2019 = vsel %vm382, %v1976, 0
      %v2022 = vsel %vm382, %v1978, 0
      %v2025 = vsel %vm382, %v1980, 0
      %v2028 = vsel %vm382, %v1982, 0
      %v2031 = vsel %vm382, %v1984, 0
      %2033 = vmatprep.subr.bf16.mxu0 0
      %2034 = vmatpush1.bf16.xpose.msra.mxu0 %v2031
      %2035 = vmatprep.subr.bf16.mxu0 0
      %2036 = vmatpush1.bf16.xpose.msra.mxu0 %v2028
      %2037 = vmatprep.subr.bf16.mxu0 0
      %2038 = vmatpush1.bf16.xpose.msra.mxu0 %v2025
      %2039 = vmatprep.subr.bf16.mxu0 0
      %2040 = vmatpush1.bf16.xpose.msra.mxu0 %v2022
      %2041 = vmatprep.subr.bf16.mxu0 0
      %2042 = vmatpush1.bf16.xpose.msra.mxu0 %v2019
      %2043 = vmatprep.subr.bf16.mxu0 0
      %2044 = vmatpush1.bf16.xpose.msra.mxu0 %v2016
      %2045 = vmatprep.subr.bf16.mxu0 0
      %2046 = vmatpush1.bf16.xpose.msra.mxu0 %v2013
      %2047 = vmatprep.subr.bf16.mxu0 0
      %2048 = vmatpush1.bf16.xpose.msra.mxu0 %v2010
      %2049 = vmatprep.subr.bf16.mxu0 0
      %2050 = vmatpush2.bf16.xpose.msra.mxu0 0
      %2051 = vmatprep.subr.bf16.mxu0 0
      %2052 = vmatpush2.bf16.xpose.msra.mxu0 0
      %2053 = vmatprep.subr.bf16.mxu0 0
      %2054 = vmatpush2.bf16.xpose.msra.mxu0 0
      %2055 = vmatprep.subr.bf16.mxu0 0
      %2056 = vmatpush2.bf16.xpose.msra.mxu0 0
      %2057 = vmatprep.subr.bf16.mxu0 0
      %2058 = vmatpush2.bf16.xpose.msra.mxu0 0
      %2059 = vmatprep.subr.bf16.mxu0 0
      %2060 = vmatpush2.bf16.xpose.msra.mxu0 0
      %2061 = vmatprep.subr.bf16.mxu0 0
      %2062 = vmatpush2.bf16.xpose.msra.mxu0 0
      %2063 = vmatprep.subr.bf16.mxu0 0
      %2064 = vmatpush2.bf16.xpose.msra.mxu0 0
      %2065 = vmatprep.mubr.bf16.mxu0 0
      %2066 = vmatmul.mubr.bf16.gmra.mxu0 %v1986
      %v2067 = vpop.f32.mrf.mxu0
      %v2068 = vadd.f32 0.0, %v2067
      %v2069 = vpop.f32.mrf.mxu0
      %v2070 = vpop.f32.mrf.mxu0
      %v2071 = vadd.f32 0.0, %v2070
      %v2072 = vpop.f32.mrf.mxu0
      %2073 = vmatprep.mubr.bf16.mxu0 0
      %2074 = vmatmul.mubr.bf16.gmra.mxu0 %v1989
      %v2075 = vpop.f32.mrf.mxu0
      %v2076 = vadd.f32 0.0, %v2075
      %v2077 = vpop.f32.mrf.mxu0
      %v2078 = vpop.f32.mrf.mxu0
      %v2079 = vadd.f32 0.0, %v2078
      %v2080 = vpop.f32.mrf.mxu0
      %2081 = vmatprep.mubr.bf16.mxu0 0
      %2082 = vmatmul.mubr.bf16.gmra.mxu0 %v1992
      %v2083 = vpop.f32.mrf.mxu0
      %v2084 = vadd.f32 0.0, %v2083
      %v2085 = vpop.f32.mrf.mxu0
      %v2086 = vpop.f32.mrf.mxu0
      %v2087 = vadd.f32 0.0, %v2086
      %v2088 = vpop.f32.mrf.mxu0
      %2089 = vmatprep.mubr.bf16.mxu0 0
      %2090 = vmatmul.mubr.bf16.gmra.mxu0 %v1995
      %v2091 = vpop.f32.mrf.mxu0
      %v2092 = vadd.f32 0.0, %v2091
      %v2093 = vpop.f32.mrf.mxu0
      %v2094 = vpop.f32.mrf.mxu0
      %v2095 = vadd.f32 0.0, %v2094
      %v2096 = vpop.f32.mrf.mxu0
      %2097 = vmatprep.mubr.bf16.mxu0 0
      %2098 = vmatmul.mubr.bf16.gmra.mxu0 %v1998
      %v2099 = vpop.f32.mrf.mxu0
      %v2100 = vadd.f32 0.0, %v2099
      %v2101 = vpop.f32.mrf.mxu0
      %v2102 = vpop.f32.mrf.mxu0
      %v2103 = vadd.f32 0.0, %v2102
      %v2104 = vpop.f32.mrf.mxu0
      %2105 = vmatprep.mubr.bf16.mxu0 0
      %2106 = vmatmul.mubr.bf16.gmra.mxu0 %v2001
      %v2107 = vpop.f32.mrf.mxu0
      %v2108 = vadd.f32 0.0, %v2107
      %v2109 = vpop.f32.mrf.mxu0
      %v2110 = vpop.f32.mrf.mxu0
      %v2111 = vadd.f32 0.0, %v2110
      %v2112 = vpop.f32.mrf.mxu0
      %2113 = vmatprep.mubr.bf16.mxu0 0
      %2114 = vmatmul.mubr.bf16.gmra.mxu0 %v2004
      %v2115 = vpop.f32.mrf.mxu0
      %v2116 = vadd.f32 0.0, %v2115
      %v2117 = vpop.f32.mrf.mxu0
      %v2118 = vpop.f32.mrf.mxu0
      %v2119 = vadd.f32 0.0, %v2118
      %v2120 = vpop.f32.mrf.mxu0
      %2121 = vmatprep.mubr.bf16.mxu0 0
      %2122 = vmatmul.mubr.bf16.gmra.mxu0 %v2007
      %v2123 = vpop.f32.mrf.mxu0
      %v2124 = vadd.f32 0.0, %v2123
      %v2125 = vpop.f32.mrf.mxu0
      %v2126 = vpop.f32.mrf.mxu0
      %v2127 = vadd.f32 0.0, %v2126
      %v2128 = vpop.f32.mrf.mxu0
      %2129 = vdwg.mxu0
      %v2130 = vsel %vm529, %v2068, -1e+30
      %v2131 = vsel %vm529, %v2071, -1e+30
      %v2132 = vsel %vm529, %v2076, -1e+30
      %v2133 = vsel %vm529, %v2079, -1e+30
      %v2134 = vsel %vm529, %v2084, -1e+30
      %v2135 = vsel %vm529, %v2087, -1e+30
      %v2136 = vsel %vm529, %v2092, -1e+30
      %v2137 = vsel %vm529, %v2095, -1e+30
      %v2138 = vsel %vm529, %v2100, -1e+30
      %v2139 = vsel %vm529, %v2103, -1e+30
      %v2140 = vsel %vm529, %v2108, -1e+30
      %v2141 = vsel %vm529, %v2111, -1e+30
      %v2142 = vsel %vm529, %v2116, -1e+30
      %v2143 = vsel %vm529, %v2119, -1e+30
      %v2144 = vsel %vm529, %v2124, -1e+30
      %v2145 = vsel %vm529, %v2127, -1e+30
      %2146 = vmax.xlane.f32.xlu0 %v2130
      %v2147 = vpop.xlane.xlu0 %2146
      %2148 = vmax.xlane.f32.xlu0 %v2131
      %v2149 = vpop.xlane.xlu0 %2148
      %2150 = vmax.xlane.f32.xlu0 %v2132
      %v2151 = vpop.xlane.xlu0 %2150
      %2152 = vmax.xlane.f32.xlu0 %v2133
      %v2153 = vpop.xlane.xlu0 %2152
      %2154 = vmax.xlane.f32.xlu0 %v2134
      %v2155 = vpop.xlane.xlu0 %2154
      %2156 = vmax.xlane.f32.xlu0 %v2135
      %v2157 = vpop.xlane.xlu0 %2156
      %2158 = vmax.xlane.f32.xlu0 %v2136
      %v2159 = vpop.xlane.xlu0 %2158
      %2160 = vmax.xlane.f32.xlu0 %v2137
      %v2161 = vpop.xlane.xlu0 %2160
      %2162 = vmax.xlane.f32.xlu0 %v2138
      %v2163 = vpop.xlane.xlu0 %2162
      %2164 = vmax.xlane.f32.xlu0 %v2139
      %v2165 = vpop.xlane.xlu0 %2164
      %2166 = vmax.xlane.f32.xlu0 %v2140
      %v2167 = vpop.xlane.xlu0 %2166
      %2168 = vmax.xlane.f32.xlu0 %v2141
      %v2169 = vpop.xlane.xlu0 %2168
      %2170 = vmax.xlane.f32.xlu0 %v2142
      %v2171 = vpop.xlane.xlu0 %2170
      %2172 = vmax.xlane.f32.xlu0 %v2143
      %v2173 = vpop.xlane.xlu0 %2172
      %2174 = vmax.xlane.f32.xlu0 %v2144
      %v2175 = vpop.xlane.xlu0 %2174
      %2176 = vmax.xlane.f32.xlu0 %v2145
      %v2177 = vpop.xlane.xlu0 %2176
      %v2178 = vsub.f32 %v2130, %v2147
      %v2179 = vsub.f32 %v2131, %v2149
      %v2180 = vsub.f32 %v2132, %v2151
      %v2181 = vsub.f32 %v2133, %v2153
      %v2182 = vsub.f32 %v2134, %v2155
      %v2183 = vsub.f32 %v2135, %v2157
      %v2184 = vsub.f32 %v2136, %v2159
      %v2185 = vsub.f32 %v2137, %v2161
      %v2186 = vsub.f32 %v2138, %v2163
      %v2187 = vsub.f32 %v2139, %v2165
      %v2188 = vsub.f32 %v2140, %v2167
      %v2189 = vsub.f32 %v2141, %v2169
      %v2190 = vsub.f32 %v2142, %v2171
      %v2191 = vsub.f32 %v2143, %v2173
      %v2192 = vsub.f32 %v2144, %v2175
      %v2193 = vsub.f32 %v2145, %v2177
      %v2194 = vmul.f32 %v2178, 1.442695
      %v2195 = vpow.pop %v2194
      %v2196 = vmul.f32 %v2179, 1.442695
      %v2197 = vpow.pop %v2196
      %v2198 = vmul.f32 %v2180, 1.442695
      %v2199 = vpow.pop %v2198
      %v2200 = vmul.f32 %v2181, 1.442695
      %v2201 = vpow.pop %v2200
      %v2202 = vmul.f32 %v2182, 1.442695
      %v2203 = vpow.pop %v2202
      %v2204 = vmul.f32 %v2183, 1.442695
      %v2205 = vpow.pop %v2204
      %v2206 = vmul.f32 %v2184, 1.442695
      %v2207 = vpow.pop %v2206
      %v2208 = vmul.f32 %v2185, 1.442695
      %v2209 = vpow.pop %v2208
      %v2210 = vmul.f32 %v2186, 1.442695
      %v2211 = vpow.pop %v2210
      %v2212 = vmul.f32 %v2187, 1.442695
      %v2213 = vpow.pop %v2212
      %v2214 = vmul.f32 %v2188, 1.442695
      %v2215 = vpow.pop %v2214
      %v2216 = vmul.f32 %v2189, 1.442695
      %v2217 = vpow.pop %v2216
      %v2218 = vmul.f32 %v2190, 1.442695
      %v2219 = vpow.pop %v2218
      %v2220 = vmul.f32 %v2191, 1.442695
      %v2221 = vpow.pop %v2220
      %v2222 = vmul.f32 %v2192, 1.442695
      %v2223 = vpow.pop %v2222
      %v2224 = vmul.f32 %v2193, 1.442695
      %v2225 = vpow.pop %v2224
      %2226 = vadd.xlane.f32.xlu0 %v2195
      %v2227 = vpop.xlane.xlu0 %2226
      %2228 = vadd.xlane.f32.xlu0 %v2197
      %v2229 = vpop.xlane.xlu0 %2228
      %2230 = vadd.xlane.f32.xlu0 %v2199
      %v2231 = vpop.xlane.xlu0 %2230
      %2232 = vadd.xlane.f32.xlu0 %v2201
      %v2233 = vpop.xlane.xlu0 %2232
      %2234 = vadd.xlane.f32.xlu0 %v2203
      %v2235 = vpop.xlane.xlu0 %2234
      %2236 = vadd.xlane.f32.xlu0 %v2205
      %v2237 = vpop.xlane.xlu0 %2236
      %2238 = vadd.xlane.f32.xlu0 %v2207
      %v2239 = vpop.xlane.xlu0 %2238
      %2240 = vadd.xlane.f32.xlu0 %v2209
      %v2241 = vpop.xlane.xlu0 %2240
      %2242 = vadd.xlane.f32.xlu0 %v2211
      %v2243 = vpop.xlane.xlu0 %2242
      %2244 = vadd.xlane.f32.xlu0 %v2213
      %v2245 = vpop.xlane.xlu0 %2244
      %2246 = vadd.xlane.f32.xlu0 %v2215
      %v2247 = vpop.xlane.xlu0 %2246
      %2248 = vadd.xlane.f32.xlu0 %v2217
      %v2249 = vpop.xlane.xlu0 %2248
      %2250 = vadd.xlane.f32.xlu0 %v2219
      %v2251 = vpop.xlane.xlu0 %2250
      %2252 = vadd.xlane.f32.xlu0 %v2221
      %v2253 = vpop.xlane.xlu0 %2252
      %2254 = vadd.xlane.f32.xlu0 %v2223
      %v2255 = vpop.xlane.xlu0 %2254
      %2256 = vadd.xlane.f32.xlu0 %v2225
      %v2257 = vpop.xlane.xlu0 %2256
      %v2258 = vpack.c.bf16 %v2197, %v2195
      %v2259 = vpack.c.bf16 %v2201, %v2199
      %v2260 = vpack.c.bf16 %v2205, %v2203
      %v2261 = vpack.c.bf16 %v2209, %v2207
      %v2262 = vpack.c.bf16 %v2213, %v2211
      %v2263 = vpack.c.bf16 %v2217, %v2215
      %v2264 = vpack.c.bf16 %v2221, %v2219
      %v2265 = vpack.c.bf16 %v2225, %v2223
      %2266 = vrot.lane.b32.xlu0 %v698, 104
      %v2267 = vpop.permute.xlu0 %2266
      %2268 = vrot.lane.b32.xlu0 %v699, 104
      %v2269 = vpop.permute.xlu0 %2268
      %2270 = vrot.lane.b32.xlu0 %v700, 104
      %v2271 = vpop.permute.xlu0 %2270
      %2272 = vrot.lane.b32.xlu0 %v701, 104
      %v2273 = vpop.permute.xlu0 %2272
      %2274 = vrot.lane.b32.xlu0 %v702, 104
      %v2275 = vpop.permute.xlu0 %2274
      %2276 = vrot.lane.b32.xlu0 %v703, 104
      %v2277 = vpop.permute.xlu0 %2276
      %2278 = vrot.lane.b32.xlu0 %v704, 104
      %v2279 = vpop.permute.xlu0 %2278
      %2280 = vrot.lane.b32.xlu0 %v705, 104
      %v2281 = vpop.permute.xlu0 %2280
      %2290 = vmatprep.subr.bf16.mxu0 0
      %2291 = vmatpush1.bf16.msra.mxu0 %v2281
      %2292 = vmatprep.subr.bf16.mxu0 0
      %2293 = vmatpush1.bf16.msra.mxu0 %v2279
      %2294 = vmatprep.subr.bf16.mxu0 0
      %2295 = vmatpush1.bf16.msra.mxu0 %v2277
      %2296 = vmatprep.subr.bf16.mxu0 0
      %2297 = vmatpush1.bf16.msra.mxu0 %v2275
      %2298 = vmatprep.subr.bf16.mxu0 0
      %2299 = vmatpush1.bf16.msra.mxu0 %v2273
      %2300 = vmatprep.subr.bf16.mxu0 0
      %2301 = vmatpush1.bf16.msra.mxu0 %v2271
      %2302 = vmatprep.subr.bf16.mxu0 0
      %2303 = vmatpush1.bf16.msra.mxu0 %v2269
      %2304 = vmatprep.subr.bf16.mxu0 0
      %2305 = vmatpush1.bf16.msra.mxu0 %v2267
      %2306 = vmatprep.subr.bf16.mxu0 0
      %2307 = vmatpush2.bf16.msra.mxu0 0
      %2308 = vmatprep.subr.bf16.mxu0 0
      %2309 = vmatpush2.bf16.msra.mxu0 0
      %2310 = vmatprep.subr.bf16.mxu0 0
      %2311 = vmatpush2.bf16.msra.mxu0 0
      %2312 = vmatprep.subr.bf16.mxu0 0
      %2313 = vmatpush2.bf16.msra.mxu0 0
      %2314 = vmatprep.subr.bf16.mxu0 0
      %2315 = vmatpush2.bf16.msra.mxu0 0
      %2316 = vmatprep.subr.bf16.mxu0 0
      %2317 = vmatpush2.bf16.msra.mxu0 0
      %2318 = vmatprep.subr.bf16.mxu0 0
      %2319 = vmatpush2.bf16.msra.mxu0 0
      %2320 = vmatprep.subr.bf16.mxu0 0
      %2321 = vmatpush2.bf16.msra.mxu0 0
      %2322 = vmatprep.mubr.bf16.mxu0 0
      %2323 = vmatmul.mubr.bf16.gmra.mxu0 %v2258
      %v2324 = vpop.f32.mrf.mxu0
      %v2325 = vadd.f32 0.0, %v2324
      %v2326 = vpop.f32.mrf.mxu0
      %v2327 = vpop.f32.mrf.mxu0
      %v2328 = vadd.f32 0.0, %v2327
      %v2329 = vpop.f32.mrf.mxu0
      %2330 = vmatprep.mubr.bf16.mxu0 0
      %2331 = vmatmul.mubr.bf16.gmra.mxu0 %v2259
      %v2332 = vpop.f32.mrf.mxu0
      %v2333 = vadd.f32 0.0, %v2332
      %v2334 = vpop.f32.mrf.mxu0
      %v2335 = vpop.f32.mrf.mxu0
      %v2336 = vadd.f32 0.0, %v2335
      %v2337 = vpop.f32.mrf.mxu0
      %2338 = vmatprep.mubr.bf16.mxu0 0
      %2339 = vmatmul.mubr.bf16.gmra.mxu0 %v2260
      %v2340 = vpop.f32.mrf.mxu0
      %v2341 = vadd.f32 0.0, %v2340
      %v2342 = vpop.f32.mrf.mxu0
      %v2343 = vpop.f32.mrf.mxu0
      %v2344 = vadd.f32 0.0, %v2343
      %v2345 = vpop.f32.mrf.mxu0
      %2346 = vmatprep.mubr.bf16.mxu0 0
      %2347 = vmatmul.mubr.bf16.gmra.mxu0 %v2261
      %v2348 = vpop.f32.mrf.mxu0
      %v2349 = vadd.f32 0.0, %v2348
      %v2350 = vpop.f32.mrf.mxu0
      %v2351 = vpop.f32.mrf.mxu0
      %v2352 = vadd.f32 0.0, %v2351
      %v2353 = vpop.f32.mrf.mxu0
      %2354 = vmatprep.mubr.bf16.mxu0 0
      %2355 = vmatmul.mubr.bf16.gmra.mxu0 %v2262
      %v2356 = vpop.f32.mrf.mxu0
      %v2357 = vadd.f32 0.0, %v2356
      %v2358 = vpop.f32.mrf.mxu0
      %v2359 = vpop.f32.mrf.mxu0
      %v2360 = vadd.f32 0.0, %v2359
      %v2361 = vpop.f32.mrf.mxu0
      %2362 = vmatprep.mubr.bf16.mxu0 0
      %2363 = vmatmul.mubr.bf16.gmra.mxu0 %v2263
      %v2364 = vpop.f32.mrf.mxu0
      %v2365 = vadd.f32 0.0, %v2364
      %v2366 = vpop.f32.mrf.mxu0
      %v2367 = vpop.f32.mrf.mxu0
      %v2368 = vadd.f32 0.0, %v2367
      %v2369 = vpop.f32.mrf.mxu0
      %2370 = vmatprep.mubr.bf16.mxu0 0
      %2371 = vmatmul.mubr.bf16.gmra.mxu0 %v2264
      %v2372 = vpop.f32.mrf.mxu0
      %v2373 = vadd.f32 0.0, %v2372
      %v2374 = vpop.f32.mrf.mxu0
      %v2375 = vpop.f32.mrf.mxu0
      %v2376 = vadd.f32 0.0, %v2375
      %v2377 = vpop.f32.mrf.mxu0
      %2378 = vmatprep.mubr.bf16.mxu0 0
      %2379 = vmatmul.mubr.bf16.gmra.mxu0 %v2265
      %v2380 = vpop.f32.mrf.mxu0
      %v2381 = vadd.f32 0.0, %v2380
      %v2382 = vpop.f32.mrf.mxu0
      %v2383 = vpop.f32.mrf.mxu0
      %v2384 = vadd.f32 0.0, %v2383
      %v2385 = vpop.f32.mrf.mxu0
      %2386 = vdwg.mxu0
      %v2387 = vrcp.pop %v2227
      %v2388 = vrcp.pop %v2229
      %v2389 = vrcp.pop %v2231
      %v2390 = vrcp.pop %v2233
      %v2391 = vrcp.pop %v2235
      %v2392 = vrcp.pop %v2237
      %v2393 = vrcp.pop %v2239
      %v2394 = vrcp.pop %v2241
      %v2395 = vrcp.pop %v2243
      %v2396 = vrcp.pop %v2245
      %v2397 = vrcp.pop %v2247
      %v2398 = vrcp.pop %v2249
      %v2399 = vrcp.pop %v2251
      %v2400 = vrcp.pop %v2253
      %v2401 = vrcp.pop %v2255
      %v2402 = vrcp.pop %v2257
      %v2403 = vmul.f32 %v2325, %v2387
      %v2404 = vmul.f32 %v2328, %v2388
      %v2405 = vmul.f32 %v2333, %v2389
      %v2406 = vmul.f32 %v2336, %v2390
      %v2407 = vmul.f32 %v2341, %v2391
      %v2408 = vmul.f32 %v2344, %v2392
      %v2409 = vmul.f32 %v2349, %v2393
      %v2410 = vmul.f32 %v2352, %v2394
      %v2411 = vmul.f32 %v2357, %v2395
      %v2412 = vmul.f32 %v2360, %v2396
      %v2413 = vmul.f32 %v2365, %v2397
      %v2414 = vmul.f32 %v2368, %v2398
      %v2415 = vmul.f32 %v2373, %v2399
      %v2416 = vmul.f32 %v2376, %v2400
      %v2417 = vmul.f32 %v2381, %v2401
      %v2418 = vmul.f32 %v2384, %v2402
      %2435 = vrot.lane.b32.xlu0 %v2403, 24
      %v2436 = vpop.permute.xlu0 %2435
      %2437 = vrot.lane.b32.xlu0 %v2404, 24
      %v2438 = vpop.permute.xlu0 %2437
      %2439 = vrot.lane.b32.xlu0 %v2405, 24
      %v2440 = vpop.permute.xlu0 %2439
      %2441 = vrot.lane.b32.xlu0 %v2406, 24
      %v2442 = vpop.permute.xlu0 %2441
      %2443 = vrot.lane.b32.xlu0 %v2407, 24
      %v2444 = vpop.permute.xlu0 %2443
      %2445 = vrot.lane.b32.xlu0 %v2408, 24
      %v2446 = vpop.permute.xlu0 %2445
      %2447 = vrot.lane.b32.xlu0 %v2409, 24
      %v2448 = vpop.permute.xlu0 %2447
      %2449 = vrot.lane.b32.xlu0 %v2410, 24
      %v2450 = vpop.permute.xlu0 %2449
      %2451 = vrot.lane.b32.xlu0 %v2411, 24
      %v2452 = vpop.permute.xlu0 %2451
      %2453 = vrot.lane.b32.xlu0 %v2412, 24
      %v2454 = vpop.permute.xlu0 %2453
      %2455 = vrot.lane.b32.xlu0 %v2413, 24
      %v2456 = vpop.permute.xlu0 %2455
      %2457 = vrot.lane.b32.xlu0 %v2414, 24
      %v2458 = vpop.permute.xlu0 %2457
      %2459 = vrot.lane.b32.xlu0 %v2415, 24
      %v2460 = vpop.permute.xlu0 %2459
      %2461 = vrot.lane.b32.xlu0 %v2416, 24
      %v2462 = vpop.permute.xlu0 %2461
      %2463 = vrot.lane.b32.xlu0 %v2417, 24
      %v2464 = vpop.permute.xlu0 %2463
      %2465 = vrot.lane.b32.xlu0 %v2418, 24
      %v2466 = vpop.permute.xlu0 %2465
      %vm2483 = vcmask 261312
      %2484 = vst.msk [vmem:[#allocation2] sm:$0xff] %vm2483, %v2436
      %2485 = vst.msk [vmem:[#allocation2 + $0x8] sm:$0xff] %vm2483, %v2438
      %2486 = vst.msk [vmem:[#allocation2 + $0x10] sm:$0xff] %vm2483, %v2440
      %2487 = vst.msk [vmem:[#allocation2 + $0x18] sm:$0xff] %vm2483, %v2442
      %2488 = vst.msk [vmem:[#allocation2 + $0x20] sm:$0xff] %vm2483, %v2444
      %2489 = vst.msk [vmem:[#allocation2 + $0x28] sm:$0xff] %vm2483, %v2446
      %2490 = vst.msk [vmem:[#allocation2 + $0x30] sm:$0xff] %vm2483, %v2448
      %2491 = vst.msk [vmem:[#allocation2 + $0x38] sm:$0xff] %vm2483, %v2450
      %2492 = vst.msk [vmem:[#allocation2 + $0x40] sm:$0xff] %vm2483, %v2452
      %2493 = vst.msk [vmem:[#allocation2 + $0x48] sm:$0xff] %vm2483, %v2454
      %2494 = vst.msk [vmem:[#allocation2 + $0x50] sm:$0xff] %vm2483, %v2456
      %2495 = vst.msk [vmem:[#allocation2 + $0x58] sm:$0xff] %vm2483, %v2458
      %2496 = vst.msk [vmem:[#allocation2 + $0x60] sm:$0xff] %vm2483, %v2460
      %2497 = vst.msk [vmem:[#allocation2 + $0x68] sm:$0xff] %vm2483, %v2462
      %2498 = vst.msk [vmem:[#allocation2 + $0x70] sm:$0xff] %vm2483, %v2464
      %2499 = vst.msk [vmem:[#allocation2 + $0x78] sm:$0xff] %vm2483, %v2466
      %v2500 = vld [vmem:[#allocation2] sm:$0xff]
      %v2501 = vld [vmem:[#allocation2 + $0x8] sm:$0xff]
      %v2502 = vld [vmem:[#allocation2 + $0x10] sm:$0xff]
      %v2503 = vld [vmem:[#allocation2 + $0x18] sm:$0xff]
      %v2504 = vld [vmem:[#allocation2 + $0x20] sm:$0xff]
      %v2505 = vld [vmem:[#allocation2 + $0x28] sm:$0xff]
      %v2506 = vld [vmem:[#allocation2 + $0x30] sm:$0xff]
      %v2507 = vld [vmem:[#allocation2 + $0x38] sm:$0xff]
      %v2508 = vld [vmem:[#allocation2 + $0x40] sm:$0xff]
      %v2509 = vld [vmem:[#allocation2 + $0x48] sm:$0xff]
      %v2510 = vld [vmem:[#allocation2 + $0x50] sm:$0xff]
      %v2511 = vld [vmem:[#allocation2 + $0x58] sm:$0xff]
      %v2512 = vld [vmem:[#allocation2 + $0x60] sm:$0xff]
      %v2513 = vld [vmem:[#allocation2 + $0x68] sm:$0xff]
      %v2514 = vld [vmem:[#allocation2 + $0x70] sm:$0xff]
      %v2515 = vld [vmem:[#allocation2 + $0x78] sm:$0xff]
      %v2516 = vpack.c.bf16 %v2501, %v2500
      %v2517 = vpack.c.bf16 %v2503, %v2502
      %v2518 = vpack.c.bf16 %v2505, %v2504
      %v2519 = vpack.c.bf16 %v2507, %v2506
      %v2520 = vpack.c.bf16 %v2509, %v2508
      %v2521 = vpack.c.bf16 %v2511, %v2510
      %v2522 = vpack.c.bf16 %v2513, %v2512
      %v2523 = vpack.c.bf16 %v2515, %v2514
      %v2532 = vunpack.c.l.b16 %v2516
      %v2533 = vunpack.c.h.b16 %v2516
      %v2534 = vunpack.c.l.b16 %v2517
      %v2535 = vunpack.c.h.b16 %v2517
      %v2536 = vunpack.c.l.b16 %v2518
      %v2537 = vunpack.c.h.b16 %v2518
      %v2538 = vunpack.c.l.b16 %v2519
      %v2539 = vunpack.c.h.b16 %v2519
      %v2540 = vunpack.c.l.b16 %v2520
      %v2541 = vunpack.c.h.b16 %v2520
      %v2542 = vunpack.c.l.b16 %v2521
      %v2543 = vunpack.c.h.b16 %v2521
      %v2544 = vunpack.c.l.b16 %v2522
      %v2545 = vunpack.c.h.b16 %v2522
      %v2546 = vunpack.c.l.b16 %v2523
      %v2547 = vunpack.c.h.b16 %v2523
      %v2548 = vpack.c.b16 %v2532, %v2532
      %v2549 = vpack.c.b16 %v2533, %v2533
      %v2550 = vpack.c.b16 %v2534, %v2534
      %v2551 = vpack.c.b16 %v2535, %v2535
      %v2552 = vpack.c.b16 %v2536, %v2536
      %v2553 = vpack.c.b16 %v2537, %v2537
      %v2554 = vpack.c.b16 %v2538, %v2538
      %v2555 = vpack.c.b16 %v2539, %v2539
      %v2556 = vpack.c.b16 %v2540, %v2540
      %v2557 = vpack.c.b16 %v2541, %v2541
      %v2558 = vpack.c.b16 %v2542, %v2542
      %v2559 = vpack.c.b16 %v2543, %v2543
      %v2560 = vpack.c.b16 %v2544, %v2544
      %v2561 = vpack.c.b16 %v2545, %v2545
      %v2562 = vpack.c.b16 %v2546, %v2546
      %v2563 = vpack.c.b16 %v2547, %v2547
      %vm2580 = vcmask 257024
      %2581 = vst.msk [vmem:[%s248] sm:$0xf] %vm2580, %v2548
      %2582 = vst.msk [vmem:[%s248 + $0x4] sm:$0xf] %vm2580, %v2549
      %2583 = vst.msk [vmem:[%s248 + $0x8] sm:$0xf] %vm2580, %v2550
      %2584 = vst.msk [vmem:[%s248 + $0xc] sm:$0xf] %vm2580, %v2551
      %2585 = vst.msk [vmem:[%s248 + $0x10] sm:$0xf] %vm2580, %v2552
      %2586 = vst.msk [vmem:[%s248 + $0x14] sm:$0xf] %vm2580, %v2553
      %2587 = vst.msk [vmem:[%s248 + $0x18] sm:$0xf] %vm2580, %v2554
      %2588 = vst.msk [vmem:[%s248 + $0x1c] sm:$0xf] %vm2580, %v2555
      %2589 = vst.msk [vmem:[%s248 + $0x20] sm:$0xf] %vm2580, %v2556
      %2590 = vst.msk [vmem:[%s248 + $0x24] sm:$0xf] %vm2580, %v2557
      %2591 = vst.msk [vmem:[%s248 + $0x28] sm:$0xf] %vm2580, %v2558
      %2592 = vst.msk [vmem:[%s248 + $0x2c] sm:$0xf] %vm2580, %v2559
      %2593 = vst.msk [vmem:[%s248 + $0x30] sm:$0xf] %vm2580, %v2560
      %2594 = vst.msk [vmem:[%s248 + $0x34] sm:$0xf] %vm2580, %v2561
      %2595 = vst.msk [vmem:[%s248 + $0x38] sm:$0xf] %vm2580, %v2562
      %2596 = vst.msk [vmem:[%s248 + $0x3c] sm:$0xf] %vm2580, %v2563
      %s2597 = smul.u32 16, %s19
      %p2598 = scmp.lt.s32.totalorder %s18, 1
      %s2599 = scalar_select %p2598, %s18, 1
      %p2600 = scmp.lt.s32.totalorder %s2597, 15
      %s2601 = scalar_select %p2600, %s2597, 15
      %s2602 = smul.addr %s2599, 16
      %s2603 = sadd.s32 %s2601, %s2602
      %s2604 = smul.addr %s2603, 4
      %s2605 = scalar_lea.vmem %s3, %s2604
      // Predicated region
      $region33: #{attention_forward.4} parent=31 // pred_check
        %p2606 = pneg %p126
      $region34: #{attention_forward.4} parent=31 // pred_check_branch
        %2608 = sbr.rel (%p2606) target = $region36
      $region35: #{attention_forward.4} parent=31 // pred_region
        %s2609 = smul.u32 16, %s19
      $region36: #{attention_forward.4} parent=31 // pred_fallthru
        _
    $region32: #{attention_forward.4} parent=5 // pred_fallthru
      _
    %p2610 = scmp.le.s32.totalorder 2, %s9
    // Predicated region
    $region37: #{attention_forward.4} parent=5 // pred_check
      %p2611 = pneg %p2610
    $region38: #{attention_forward.4} parent=5 // pred_check_branch
      %2613 = sbr.rel (%p2611) target = $region40
    $region39: #{attention_forward.4} parent=5 // pred_region
      %s2614 = ssub.s32 %s9, 2
      // Predicated region
      $region41: #{attention_forward.4} parent=39 // pred_check
        %p2615 = pneg %p132
      $region42: #{attention_forward.4} parent=39 // pred_check_branch
        %2617 = sbr.rel (%p2615) target = $region44
      $region43: #{attention_forward.4} parent=39 // pred_region
        %s2618 = smul.u32 16, %s21
        %p2619 = scmp.lt.s32.totalorder %s20, 1
        %s2620 = scalar_select %p2619, %s20, 1
        %p2621 = scmp.lt.s32.totalorder %s2618, 15
        %s2622 = scalar_select %p2621, %s2618, 15
        %s2623 = smul.addr %s2620, 16
        %s2624 = sadd.s32 %s2622, %s2623
        %s2625 = smul.addr %s2624, 4
        %s2626 = scalar_lea.vmem %s3, %s2625
      $region44: #{attention_forward.4} parent=39 // pred_fallthru
        _
    $region40: #{attention_forward.4} parent=5 // pred_fallthru
      _
  $region6: #{attention_forward.4} parent=0 // loop_footer
    %s13 = sadd.s32 1, %s9
  $region7: #{attention_forward.4} parent=0 // loop_footer_branch
    %8 = sbr.rel target = $region3
  $region8: #{attention_forward.4} parent=0 // loop_exit
    _

</llo_original>
